<compile_context>
chip_gen: v5e
topology: v5e:2x2
jax: 0.10.0
libtpu: 0.0.40
codegen_flags: <defaults>
</compile_context>

<pallas_src>
import functools

import jax
import jax.numpy as jnp
from jax.experimental import pallas as pl
from jax.experimental.pallas import tpu as pltpu

DIM = 512          # self.dim in the module (hard-coded)
N_NEIGHBOR = 8     # self.n_neighbor in the module (hard-coded)
N_ITER = 1         # self.n_iter in the module (hard-coded)
LANES = 128        # lane width used for the padded score output


# ----------------------------- Pallas kernel ------------------------------ #
def kgcn_kernel(n_ctx, batch,
                # scalar-prefetch refs (SMEM)
                u_idx, v_idx, nbe, nbr,
                # inputs
                usr_ref, ent_ref, rel_ref,                  # VMEM tables [N,1,D]
                wagg_hbm, bagg_ref, wlin_ref, blin_ref,     # wagg in HBM, rest VMEM
                # outputs
                score_ref, c_ref, item_ref,
                # scratch
                usr_buf, self_buf, nvec_buf, nrel_buf, wagg_buf, sem):
    """Single-shot kernel (everything fits in VMEM).

    u_idx      : [B]      user indices            (SMEM, scalar prefetch)
    v_idx      : [B]      item/entity indices     (SMEM, scalar prefetch)
    nbe        : [B, K]   neighbor entity indices (SMEM, scalar prefetch)
    nbr        : [B, K]   neighbor relation ids   (SMEM, scalar prefetch)
    usr_ref    : [num_user, 1, D]  user embedding table   (VMEM resident)
    ent_ref    : [num_ent,  1, D]  entity embedding table (VMEM resident)
    rel_ref    : [num_rel+1,1, D]  relation embedding table (VMEM resident)
    wagg_hbm   : [D, D]   aggregator Linear weight, pre-transposed, bf16 (HBM)
    bagg_ref   : [1, D]   aggregator Linear bias, f32
    wlin_ref   : [N_CTX, B]  KGCN.Linear weight (Linear(batch_size, N_CTX))
    blin_ref   : [N_CTX, 1]  KGCN.Linear bias
    score_ref  : [B, 128] sigmoid(sum_d user*item), broadcast along lanes
    c_ref      : [N_CTX, D]  c = W_lin @ item + b_lin
    item_ref   : [B, D]   tanh-activated item embeddings
    """
    B = batch
    K = N_NEIGHBOR
    D = DIM

    # --- stream the 512 KiB aggregator weight while we gather/softmax ------
    wcp = pltpu.make_async_copy(wagg_hbm, wagg_buf, sem.at[0])
    wcp.start()

    # --- fused embedding gathers: dynamic leading-dim loads, VMEM -> VMEM --
    # Neighbor buffers are laid out (K*B, D) with row index k*B + b so that a
    # per-k slice [k*B : (k+1)*B] is a contiguous, 8-row-aligned [B, D] block.
    for b in range(B):
        usr_buf[pl.ds(b, 1), :] = usr_ref[u_idx[b]]               # [1, D]
        self_buf[pl.ds(b, 1), :] = ent_ref[v_idx[b]]              # [1, D]
        for k in range(K):
            nvec_buf[pl.ds(k * B + b, 1), :] = ent_ref[nbe[b, k]]
            nrel_buf[pl.ds(k * B + b, 1), :] = rel_ref[nbr[b, k]]

    user = usr_buf[...]                                     # [B, D] f32

    # --- Aggregator._mix_neighbor_vectors, K-sliced (no [B,K,D] temps) -----
    # user_relation_scores[:, k] = sum_d user * nrel[:, k, :]
    ur_cols = []
    for k in range(K):
        nrel_k = nrel_buf[pl.ds(k * B, B), :]               # [B, D]
        ur_cols.append(jnp.sum(user * nrel_k, axis=-1, keepdims=True))  # [B,1]

    # max-stabilized softmax over the K neighbor columns, kept as [B,1] cols
    m = ur_cols[0]
    for k in range(1, K):
        m = jnp.maximum(m, ur_cols[k])
    e_cols = [jnp.exp(col - m) for col in ur_cols]          # K x [B, 1]
    denom = e_cols[0]
    for k in range(1, K):
        denom = denom + e_cols[k]
    inv_denom = pl.reciprocal(denom, approx=True)           # EUP slot, free-ish

    # seed accumulation with the k=0 term (no zeros() materialization)
    agg = (e_cols[0] * inv_denom) * nvec_buf[pl.ds(0, B), :]
    for k in range(1, K):
        nvec_k = nvec_buf[pl.ds(k * B, B), :]               # [B, D]
        agg = agg + (e_cols[k] * inv_denom) * nvec_k        # lane-broadcast

    # --- Aggregator 'sum' mode: tanh(Linear(self + agg)) -------------------
    # bf16 operands, f32 accumulate on the MXU.
    h = (self_buf[...] + agg).astype(jnp.bfloat16)          # [B, D]
    wcp.wait()                                              # weight now in VMEM
    out = jnp.dot(h, wagg_buf[...],
                  preferred_element_type=jnp.float32) + bagg_ref[...]
    item = jnp.tanh(out)                                    # [B, D] f32
    item_ref[...] = item

    # --- scores = sigmoid((user * item).sum(dim=1)), lane-dense output -----
    s = jnp.sum(user * item, axis=-1, keepdims=True)        # [B, 1]
    score_ref[...] = jnp.broadcast_to(jax.nn.sigmoid(s), (B, LANES))

    # --- isLinear branch: c = W_lin @ item + b_lin, computed on the VPU ----
    # contraction dim is only B=8, so an unrolled outer-product accumulation
    # avoids a near-empty MXU matmul.
    wlin = wlin_ref[...]                                    # [N_CTX, B]
    c = jnp.broadcast_to(blin_ref[...], (n_ctx, D))         # [N_CTX, D]
    for b in range(B):
        c = c + wlin[:, b:b + 1] * item[b:b + 1, :]
    c_ref[...] = c


# ------------------------------ wrapper ------------------------------------ #
def kgcn_pallas_core(u_idx, v_idx, nbe, nbr,
                     usr_tab, ent_tab, rel_tab,
                     wagg_t_bf16, bagg, wlin, blin, n_ctx):
    B = int(u_idx.shape[0])
    K = int(nbe.shape[1])
    D = int(usr_tab.shape[1])
    num_user = int(usr_tab.shape[0])
    num_ent = int(ent_tab.shape[0])
    num_rel_rows = int(rel_tab.shape[0])

    # tables reshaped so the gathered axis is the leading (untiled) dim;
    # dynamic integer indexing on that axis is the canonical Pallas pattern.
    usr3 = usr_tab.reshape(num_user, 1, D)
    ent3 = ent_tab.reshape(num_ent, 1, D)
    rel3 = rel_tab.reshape(num_rel_rows, 1, D)

    tbl_map = lambda i, *_: (0, 0, 0)   # prefetch refs arrive as trailing args
    mat_map = lambda i, *_: (0, 0)

    grid_spec = pltpu.PrefetchScalarGridSpec(
        num_scalar_prefetch=4,
        grid=(1,),
        in_specs=[
            pl.BlockSpec((num_user, 1, D), tbl_map),      # usr table -> VMEM
            pl.BlockSpec((num_ent, 1, D), tbl_map),       # ent table -> VMEM
            pl.BlockSpec((num_rel_rows, 1, D), tbl_map),  # rel table -> VMEM
            pl.BlockSpec(memory_space=pl.ANY),            # wagg_t bf16 (HBM)
            pl.BlockSpec((1, D), mat_map),                # bagg
            pl.BlockSpec((n_ctx, B), mat_map),            # wlin
            pl.BlockSpec((n_ctx, 1), mat_map),            # blin
        ],
        out_specs=[
            pl.BlockSpec((B, LANES), mat_map),            # padded scores
            pl.BlockSpec((n_ctx, D), mat_map),            # c
            pl.BlockSpec((B, D), mat_map),                # item
        ],
        scratch_shapes=[
            pltpu.VMEM((B, D), jnp.float32),              # gathered user embeddings
            pltpu.VMEM((B, D), jnp.float32),              # gathered self vectors
            pltpu.VMEM((K * B, D), jnp.float32),          # gathered neighbor entities
            pltpu.VMEM((K * B, D), jnp.float32),          # gathered neighbor relations
            pltpu.VMEM((D, D), jnp.bfloat16),             # streamed aggregator weight
            pltpu.SemaphoreType.DMA((1,)),                # weight-stream semaphore
        ],
    )

    kernel = functools.partial(kgcn_kernel, n_ctx, B)
    score_pad, c, item = pl.pallas_call(
        kernel,
        grid_spec=grid_spec,
        out_shape=[jax.ShapeDtypeStruct((B, LANES), jnp.float32),
                   jax.ShapeDtypeStruct((n_ctx, D), jnp.float32),
                   jax.ShapeDtypeStruct((B, D), jnp.float32)],
        compiler_params=pltpu.CompilerParams(
            dimension_semantics=("arbitrary",)),
    )(u_idx, v_idx, nbe, nbr,
      usr3, ent3, rel3, wagg_t_bf16, bagg, wlin, blin)
    return score_pad[:, 0], c, item


# ------------------------------ JAX glue ---------------------------------- #
def kgcn_forward(u, v, params, adj_ent, adj_rel, n_ctx):
    """Mirrors KGCN.forward(u, v) with r=None, entities=None, relations=None."""
    # _get_neighbors (n_iter = 1): tiny int32 index lookups (scalar prefetch)
    nbe = adj_ent[v]                               # [B, K]
    nbr = adj_rel[v]                               # [B, K]
    entities = [v[:, None], nbe]
    relations = [nbr]

    scores, c, item = kgcn_pallas_core(
        u.astype(jnp.int32), v.astype(jnp.int32),
        nbe.astype(jnp.int32), nbr.astype(jnp.int32),
        params["usr"], params["ent"], params["rel"],
        params["wagg_t_bf16"], params["bagg"], params["wlin"], params["blin"],
        n_ctx)
    return scores, c, entities, relations, item


def kgcn_reference(u, v, params, adj_ent, adj_rel):
    """Pure-JAX f32 reference of the same forward pass (for verification)."""
    user = params["usr"][u]
    self_vec = params["ent"][v]
    nvec = params["ent"][adj_ent[v]]
    nrel = params["rel"][adj_rel[v]]
    ur = jnp.sum(user[:, None, :] * nrel, axis=-1)
    p = jax.nn.softmax(ur, axis=-1)
    agg = jnp.sum(p[:, :, None] * nvec, axis=1)
    h = self_vec + agg
    item = jnp.tanh(h @ params["wagg_t"] + params["bagg"])
    scores = jax.nn.sigmoid(jnp.sum(user * item, axis=-1))
    c = params["wlin"] @ item + params["blin"]
    return scores, c, item


# -------------------------------- main ------------------------------------ #
if __name__ == "__main__":
    # small, deterministic problem setup consistent with the module
    NCLASS = 8          # cfg.TRAINER.CAPKP.NCLASS -> batch_size
    N_CTX = 16          # cfg.TRAINER.CAPKP.N_CTX  -> isLinear == True
    num_user, num_ent, num_rel = 32, 64, 16
    B, D, K = NCLASS, DIM, N_NEIGHBOR

    key = jax.random.PRNGKey(0)
    ks = jax.random.split(key, 10)

    params = {
        "usr": jax.random.normal(ks[0], (num_user, D), jnp.float32) * 0.1,
        "ent": jax.random.normal(ks[1], (num_ent, D), jnp.float32) * 0.1,
        "rel": jax.random.normal(ks[2], (num_rel + 1, D), jnp.float32) * 0.1,
        # Aggregator.weights = nn.Linear(dim, dim): weight [D, D], bias [D]
        # stored pre-transposed so the kernel does x @ W^T as x @ wagg_t
        "wagg_t": (jax.random.normal(ks[3], (D, D), jnp.float32) * 0.02).T,
        "bagg": jax.random.normal(ks[4], (1, D), jnp.float32) * 0.02,
        # KGCN.Linear = nn.Linear(batch_size, N_CTX): weight [N_CTX, B], bias [N_CTX]
        "wlin": jax.random.normal(ks[5], (N_CTX, B), jnp.float32) * 0.1,
        "blin": jax.random.normal(ks[6], (N_CTX, 1), jnp.float32) * 0.1,
    }
    # bf16 copy of the aggregator weight: MXU-native dtype, halves the
    # dominant HBM load (f32 kept only for the reference).
    params["wagg_t_bf16"] = params["wagg_t"].astype(jnp.bfloat16)

    # deterministic stand-in for _gen_adj (random.sample over the kg)
    adj_ent = jax.random.randint(ks[7], (num_ent, K), 0, num_ent, jnp.int32)
    adj_rel = jax.random.randint(ks[8], (num_ent, K), 0, num_rel + 1, jnp.int32)

    u = jax.random.randint(ks[9], (B,), 0, num_user, jnp.int32)
    v = jax.random.randint(jax.random.fold_in(key, 99), (B,), 0, num_ent, jnp.int32)

    # TODO(synk): the `r != None` in-place entity/relation rewrite and the
    # host-side _gen_adj Python loop over `kg` are data-dependent host logic,
    # kept out of the kernel (r=None path implemented).

    sig_scores, c, entities, relations, item = kgcn_forward(
        u, v, params, adj_ent, adj_rel, N_CTX)
    jax.block_until_ready((sig_scores, c, item))

    # verify against a pure-JAX f32 reference (bf16 weight => looser tolerance)
    ref_scores, ref_c, ref_item = kgcn_reference(u, v, params, adj_ent, adj_rel)
    assert sig_scores.shape == (B,)
    assert c.shape == (N_CTX, D)
    assert item.shape == (B, D)
    assert jnp.allclose(sig_scores, ref_scores, atol=1e-2, rtol=1e-2)
    assert jnp.allclose(c, ref_c, atol=1e-2, rtol=1e-2)
    assert jnp.allclose(item, ref_item, atol=1e-2, rtol=1e-2)

    print("KERNEL_OK")
</pallas_src>

<mosaic_0001>
module attributes {stable_mosaic.version = 11 : i64} {
  func.func @kgcn_kernel(%arg0: i32, %arg1: memref<8xi32, #tpu.memory_space<smem>>, %arg2: memref<8xi32, #tpu.memory_space<smem>>, %arg3: memref<8x8xi32, #tpu.memory_space<smem>>, %arg4: memref<8x8xi32, #tpu.memory_space<smem>>, %arg5: memref<32x1x512xf32, #tpu.memory_space<vmem>>, %arg6: memref<64x1x512xf32, #tpu.memory_space<vmem>>, %arg7: memref<17x1x512xf32, #tpu.memory_space<vmem>>, %arg8: memref<512x512xbf16, #tpu.memory_space<any>>, %arg9: memref<1x512xf32, #tpu.memory_space<vmem>>, %arg10: memref<16x8xf32, #tpu.memory_space<vmem>>, %arg11: memref<16x1xf32, #tpu.memory_space<vmem>>, %arg12: memref<8x128xf32, #tpu.memory_space<vmem>>, %arg13: memref<16x512xf32, #tpu.memory_space<vmem>>, %arg14: memref<8x512xf32, #tpu.memory_space<vmem>>, %arg15: memref<8x512xf32, #tpu.memory_space<vmem>>, %arg16: memref<8x512xf32, #tpu.memory_space<vmem>>, %arg17: memref<64x512xf32, #tpu.memory_space<vmem>>, %arg18: memref<64x512xf32, #tpu.memory_space<vmem>>, %arg19: memref<512x512xbf16, #tpu.memory_space<vmem>>, %arg20: memref<1x!tpu.dma_semaphore, #tpu.memory_space<semaphore_mem>>) attributes {dimension_semantics = [#tpu.dimension_semantics<arbitrary>], iteration_bounds = array<i64: 1>, scalar_prefetch = 4 : i64, scratch_operands = 6 : i64, tpu.core_type = #tpu.core_type<tc>, window_params = [{pipeline_mode = #tpu.pipeline_mode<synchronous>, transform_indices = @transform_0, window_bounds = array<i64: 32, 1, 512>}, {pipeline_mode = #tpu.pipeline_mode<synchronous>, transform_indices = @transform_1, window_bounds = array<i64: 64, 1, 512>}, {pipeline_mode = #tpu.pipeline_mode<synchronous>, transform_indices = @transform_2, window_bounds = array<i64: 17, 1, 512>}, {}, {pipeline_mode = #tpu.pipeline_mode<synchronous>, transform_indices = @transform_4, window_bounds = array<i64: 1, 512>}, {pipeline_mode = #tpu.pipeline_mode<synchronous>, transform_indices = @transform_5, window_bounds = array<i64: 16, 8>}, {pipeline_mode = #tpu.pipeline_mode<synchronous>, transform_indices = @transform_6, window_bounds = array<i64: 16, 1>}, {pipeline_mode = #tpu.pipeline_mode<synchronous>, transform_indices = @transform_7, window_bounds = array<i64: 8, 128>}, {pipeline_mode = #tpu.pipeline_mode<synchronous>, transform_indices = @transform_8, window_bounds = array<i64: 16, 512>}, {pipeline_mode = #tpu.pipeline_mode<synchronous>, transform_indices = @transform_9, window_bounds = array<i64: 8, 512>}]} {
    %c0_i32 = arith.constant 0 : i32
    %0 = tpu.memref_slice %arg20[%c0_i32] : memref<1x!tpu.dma_semaphore, #tpu.memory_space<semaphore_mem>> -> memref<1x!tpu.dma_semaphore, #tpu.memory_space<semaphore_mem>>
    %1 = tpu.memref_squeeze %0 : memref<1x!tpu.dma_semaphore, #tpu.memory_space<semaphore_mem>> -> memref<!tpu.dma_semaphore, #tpu.memory_space<semaphore_mem>>
    tpu.enqueue_dma source(%arg8 : memref<512x512xbf16, #tpu.memory_space<any>>) target(%arg19 : memref<512x512xbf16, #tpu.memory_space<vmem>>) target_semaphore(%1 : memref<!tpu.dma_semaphore, #tpu.memory_space<semaphore_mem>>)
    %c0 = arith.constant 0 : index
    %2 = memref.load %arg1[%c0] : memref<8xi32, #tpu.memory_space<smem>>
    %3 = arith.index_cast %2 : i32 to index
    %c0_0 = arith.constant 0 : index
    %c0_1 = arith.constant 0 : index
    %4 = vector.load %arg5[%3, %c0_0, %c0_1] : memref<32x1x512xf32, #tpu.memory_space<vmem>>, vector<1x1x512xf32>
    %5 = vector.shape_cast %4 : vector<1x1x512xf32> to vector<1x512xf32>
    %c0_2 = arith.constant 0 : index
    %c0_3 = arith.constant 0 : index
    %6 = vector.load %arg15[%c0_2, %c0_3] : memref<8x512xf32, #tpu.memory_space<vmem>>, vector<1x512xf32>
    tpu.vector_store %arg15[%c0_2, %c0_3], %5 {strides = array<i32>} : memref<8x512xf32, #tpu.memory_space<vmem>>, vector<1x512xf32>,
    %c0_4 = arith.constant 0 : index
    %7 = memref.load %arg2[%c0_4] : memref<8xi32, #tpu.memory_space<smem>>
    %8 = arith.index_cast %7 : i32 to index
    %c0_5 = arith.constant 0 : index
    %c0_6 = arith.constant 0 : index
    %9 = vector.load %arg6[%8, %c0_5, %c0_6] : memref<64x1x512xf32, #tpu.memory_space<vmem>>, vector<1x1x512xf32>
    %10 = vector.shape_cast %9 : vector<1x1x512xf32> to vector<1x512xf32>
    %c0_7 = arith.constant 0 : index
    %c0_8 = arith.constant 0 : index
    %11 = vector.load %arg16[%c0_7, %c0_8] : memref<8x512xf32, #tpu.memory_space<vmem>>, vector<1x512xf32>
    tpu.vector_store %arg16[%c0_7, %c0_8], %10 {strides = array<i32>} : memref<8x512xf32, #tpu.memory_space<vmem>>, vector<1x512xf32>,
    %c0_9 = arith.constant 0 : index
    %c0_10 = arith.constant 0 : index
    %12 = memref.load %arg3[%c0_9, %c0_10] : memref<8x8xi32, #tpu.memory_space<smem>>
    %13 = arith.index_cast %12 : i32 to index
    %c0_11 = arith.constant 0 : index
    %c0_12 = arith.constant 0 : index
    %14 = vector.load %arg6[%13, %c0_11, %c0_12] : memref<64x1x512xf32, #tpu.memory_space<vmem>>, vector<1x1x512xf32>
    %15 = vector.shape_cast %14 : vector<1x1x512xf32> to vector<1x512xf32>
    %c0_13 = arith.constant 0 : index
    %c0_14 = arith.constant 0 : index
    %16 = vector.load %arg17[%c0_13, %c0_14] : memref<64x512xf32, #tpu.memory_space<vmem>>, vector<1x512xf32>
    tpu.vector_store %arg17[%c0_13, %c0_14], %15 {strides = array<i32>} : memref<64x512xf32, #tpu.memory_space<vmem>>, vector<1x512xf32>,
    %c0_15 = arith.constant 0 : index
    %c0_16 = arith.constant 0 : index
    %17 = memref.load %arg4[%c0_15, %c0_16] : memref<8x8xi32, #tpu.memory_space<smem>>
    %18 = arith.index_cast %17 : i32 to index
    %c0_17 = arith.constant 0 : index
    %c0_18 = arith.constant 0 : index
    %19 = vector.load %arg7[%18, %c0_17, %c0_18] : memref<17x1x512xf32, #tpu.memory_space<vmem>>, vector<1x1x512xf32>
    %20 = vector.shape_cast %19 : vector<1x1x512xf32> to vector<1x512xf32>
    %c0_19 = arith.constant 0 : index
    %c0_20 = arith.constant 0 : index
    %21 = vector.load %arg18[%c0_19, %c0_20] : memref<64x512xf32, #tpu.memory_space<vmem>>, vector<1x512xf32>
    tpu.vector_store %arg18[%c0_19, %c0_20], %20 {strides = array<i32>} : memref<64x512xf32, #tpu.memory_space<vmem>>, vector<1x512xf32>,
    %c0_21 = arith.constant 0 : index
    %c1 = arith.constant 1 : index
    %22 = memref.load %arg3[%c0_21, %c1] : memref<8x8xi32, #tpu.memory_space<smem>>
    %23 = arith.index_cast %22 : i32 to index
    %c0_22 = arith.constant 0 : index
    %c0_23 = arith.constant 0 : index
    %24 = vector.load %arg6[%23, %c0_22, %c0_23] : memref<64x1x512xf32, #tpu.memory_space<vmem>>, vector<1x1x512xf32>
    %25 = vector.shape_cast %24 : vector<1x1x512xf32> to vector<1x512xf32>
    %c8 = arith.constant 8 : index
    %c0_24 = arith.constant 0 : index
    %26 = vector.load %arg17[%c8, %c0_24] : memref<64x512xf32, #tpu.memory_space<vmem>>, vector<1x512xf32>
    tpu.vector_store %arg17[%c8, %c0_24], %25 {strides = array<i32>} : memref<64x512xf32, #tpu.memory_space<vmem>>, vector<1x512xf32>,
    %c0_25 = arith.constant 0 : index
    %c1_26 = arith.constant 1 : index
    %27 = memref.load %arg4[%c0_25, %c1_26] : memref<8x8xi32, #tpu.memory_space<smem>>
    %28 = arith.index_cast %27 : i32 to index
    %c0_27 = arith.constant 0 : index
    %c0_28 = arith.constant 0 : index
    %29 = vector.load %arg7[%28, %c0_27, %c0_28] : memref<17x1x512xf32, #tpu.memory_space<vmem>>, vector<1x1x512xf32>
    %30 = vector.shape_cast %29 : vector<1x1x512xf32> to vector<1x512xf32>
    %c8_29 = arith.constant 8 : index
    %c0_30 = arith.constant 0 : index
    %31 = vector.load %arg18[%c8_29, %c0_30] : memref<64x512xf32, #tpu.memory_space<vmem>>, vector<1x512xf32>
    tpu.vector_store %arg18[%c8_29, %c0_30], %30 {strides = array<i32>} : memref<64x512xf32, #tpu.memory_space<vmem>>, vector<1x512xf32>,
    %c0_31 = arith.constant 0 : index
    %c2 = arith.constant 2 : index
    %32 = memref.load %arg3[%c0_31, %c2] : memref<8x8xi32, #tpu.memory_space<smem>>
    %33 = arith.index_cast %32 : i32 to index
    %c0_32 = arith.constant 0 : index
    %c0_33 = arith.constant 0 : index
    %34 = vector.load %arg6[%33, %c0_32, %c0_33] : memref<64x1x512xf32, #tpu.memory_space<vmem>>, vector<1x1x512xf32>
    %35 = vector.shape_cast %34 : vector<1x1x512xf32> to vector<1x512xf32>
    %c16 = arith.constant 16 : index
    %c0_34 = arith.constant 0 : index
    %36 = vector.load %arg17[%c16, %c0_34] : memref<64x512xf32, #tpu.memory_space<vmem>>, vector<1x512xf32>
    tpu.vector_store %arg17[%c16, %c0_34], %35 {strides = array<i32>} : memref<64x512xf32, #tpu.memory_space<vmem>>, vector<1x512xf32>,
    %c0_35 = arith.constant 0 : index
    %c2_36 = arith.constant 2 : index
    %37 = memref.load %arg4[%c0_35, %c2_36] : memref<8x8xi32, #tpu.memory_space<smem>>
    %38 = arith.index_cast %37 : i32 to index
    %c0_37 = arith.constant 0 : index
    %c0_38 = arith.constant 0 : index
    %39 = vector.load %arg7[%38, %c0_37, %c0_38] : memref<17x1x512xf32, #tpu.memory_space<vmem>>, vector<1x1x512xf32>
    %40 = vector.shape_cast %39 : vector<1x1x512xf32> to vector<1x512xf32>
    %c16_39 = arith.constant 16 : index
    %c0_40 = arith.constant 0 : index
    %41 = vector.load %arg18[%c16_39, %c0_40] : memref<64x512xf32, #tpu.memory_space<vmem>>, vector<1x512xf32>
    tpu.vector_store %arg18[%c16_39, %c0_40], %40 {strides = array<i32>} : memref<64x512xf32, #tpu.memory_space<vmem>>, vector<1x512xf32>,
    %c0_41 = arith.constant 0 : index
    %c3 = arith.constant 3 : index
    %42 = memref.load %arg3[%c0_41, %c3] : memref<8x8xi32, #tpu.memory_space<smem>>
    %43 = arith.index_cast %42 : i32 to index
    %c0_42 = arith.constant 0 : index
    %c0_43 = arith.constant 0 : index
    %44 = vector.load %arg6[%43, %c0_42, %c0_43] : memref<64x1x512xf32, #tpu.memory_space<vmem>>, vector<1x1x512xf32>
    %45 = vector.shape_cast %44 : vector<1x1x512xf32> to vector<1x512xf32>
    %c24 = arith.constant 24 : index
    %c0_44 = arith.constant 0 : index
    %46 = vector.load %arg17[%c24, %c0_44] : memref<64x512xf32, #tpu.memory_space<vmem>>, vector<1x512xf32>
    tpu.vector_store %arg17[%c24, %c0_44], %45 {strides = array<i32>} : memref<64x512xf32, #tpu.memory_space<vmem>>, vector<1x512xf32>,
    %c0_45 = arith.constant 0 : index
    %c3_46 = arith.constant 3 : index
    %47 = memref.load %arg4[%c0_45, %c3_46] : memref<8x8xi32, #tpu.memory_space<smem>>
    %48 = arith.index_cast %47 : i32 to index
    %c0_47 = arith.constant 0 : index
    %c0_48 = arith.constant 0 : index
    %49 = vector.load %arg7[%48, %c0_47, %c0_48] : memref<17x1x512xf32, #tpu.memory_space<vmem>>, vector<1x1x512xf32>
    %50 = vector.shape_cast %49 : vector<1x1x512xf32> to vector<1x512xf32>
    %c24_49 = arith.constant 24 : index
    %c0_50 = arith.constant 0 : index
    %51 = vector.load %arg18[%c24_49, %c0_50] : memref<64x512xf32, #tpu.memory_space<vmem>>, vector<1x512xf32>
    tpu.vector_store %arg18[%c24_49, %c0_50], %50 {strides = array<i32>} : memref<64x512xf32, #tpu.memory_space<vmem>>, vector<1x512xf32>,
    %c0_51 = arith.constant 0 : index
    %c4 = arith.constant 4 : index
    %52 = memref.load %arg3[%c0_51, %c4] : memref<8x8xi32, #tpu.memory_space<smem>>
    %53 = arith.index_cast %52 : i32 to index
    %c0_52 = arith.constant 0 : index
    %c0_53 = arith.constant 0 : index
    %54 = vector.load %arg6[%53, %c0_52, %c0_53] : memref<64x1x512xf32, #tpu.memory_space<vmem>>, vector<1x1x512xf32>
    %55 = vector.shape_cast %54 : vector<1x1x512xf32> to vector<1x512xf32>
    %c32 = arith.constant 32 : index
    %c0_54 = arith.constant 0 : index
    %56 = vector.load %arg17[%c32, %c0_54] : memref<64x512xf32, #tpu.memory_space<vmem>>, vector<1x512xf32>
    tpu.vector_store %arg17[%c32, %c0_54], %55 {strides = array<i32>} : memref<64x512xf32, #tpu.memory_space<vmem>>, vector<1x512xf32>,
    %c0_55 = arith.constant 0 : index
    %c4_56 = arith.constant 4 : index
    %57 = memref.load %arg4[%c0_55, %c4_56] : memref<8x8xi32, #tpu.memory_space<smem>>
    %58 = arith.index_cast %57 : i32 to index
    %c0_57 = arith.constant 0 : index
    %c0_58 = arith.constant 0 : index
    %59 = vector.load %arg7[%58, %c0_57, %c0_58] : memref<17x1x512xf32, #tpu.memory_space<vmem>>, vector<1x1x512xf32>
    %60 = vector.shape_cast %59 : vector<1x1x512xf32> to vector<1x512xf32>
    %c32_59 = arith.constant 32 : index
    %c0_60 = arith.constant 0 : index
    %61 = vector.load %arg18[%c32_59, %c0_60] : memref<64x512xf32, #tpu.memory_space<vmem>>, vector<1x512xf32>
    tpu.vector_store %arg18[%c32_59, %c0_60], %60 {strides = array<i32>} : memref<64x512xf32, #tpu.memory_space<vmem>>, vector<1x512xf32>,
    %c0_61 = arith.constant 0 : index
    %c5 = arith.constant 5 : index
    %62 = memref.load %arg3[%c0_61, %c5] : memref<8x8xi32, #tpu.memory_space<smem>>
    %63 = arith.index_cast %62 : i32 to index
    %c0_62 = arith.constant 0 : index
    %c0_63 = arith.constant 0 : index
    %64 = vector.load %arg6[%63, %c0_62, %c0_63] : memref<64x1x512xf32, #tpu.memory_space<vmem>>, vector<1x1x512xf32>
    %65 = vector.shape_cast %64 : vector<1x1x512xf32> to vector<1x512xf32>
    %c40 = arith.constant 40 : index
    %c0_64 = arith.constant 0 : index
    %66 = vector.load %arg17[%c40, %c0_64] : memref<64x512xf32, #tpu.memory_space<vmem>>, vector<1x512xf32>
    tpu.vector_store %arg17[%c40, %c0_64], %65 {strides = array<i32>} : memref<64x512xf32, #tpu.memory_space<vmem>>, vector<1x512xf32>,
    %c0_65 = arith.constant 0 : index
    %c5_66 = arith.constant 5 : index
    %67 = memref.load %arg4[%c0_65, %c5_66] : memref<8x8xi32, #tpu.memory_space<smem>>
    %68 = arith.index_cast %67 : i32 to index
    %c0_67 = arith.constant 0 : index
    %c0_68 = arith.constant 0 : index
    %69 = vector.load %arg7[%68, %c0_67, %c0_68] : memref<17x1x512xf32, #tpu.memory_space<vmem>>, vector<1x1x512xf32>
    %70 = vector.shape_cast %69 : vector<1x1x512xf32> to vector<1x512xf32>
    %c40_69 = arith.constant 40 : index
    %c0_70 = arith.constant 0 : index
    %71 = vector.load %arg18[%c40_69, %c0_70] : memref<64x512xf32, #tpu.memory_space<vmem>>, vector<1x512xf32>
    tpu.vector_store %arg18[%c40_69, %c0_70], %70 {strides = array<i32>} : memref<64x512xf32, #tpu.memory_space<vmem>>, vector<1x512xf32>,
    %c0_71 = arith.constant 0 : index
    %c6 = arith.constant 6 : index
    %72 = memref.load %arg3[%c0_71, %c6] : memref<8x8xi32, #tpu.memory_space<smem>>
    %73 = arith.index_cast %72 : i32 to index
    %c0_72 = arith.constant 0 : index
    %c0_73 = arith.constant 0 : index
    %74 = vector.load %arg6[%73, %c0_72, %c0_73] : memref<64x1x512xf32, #tpu.memory_space<vmem>>, vector<1x1x512xf32>
    %75 = vector.shape_cast %74 : vector<1x1x512xf32> to vector<1x512xf32>
    %c48 = arith.constant 48 : index
    %c0_74 = arith.constant 0 : index
    %76 = vector.load %arg17[%c48, %c0_74] : memref<64x512xf32, #tpu.memory_space<vmem>>, vector<1x512xf32>
    tpu.vector_store %arg17[%c48, %c0_74], %75 {strides = array<i32>} : memref<64x512xf32, #tpu.memory_space<vmem>>, vector<1x512xf32>,
    %c0_75 = arith.constant 0 : index
    %c6_76 = arith.constant 6 : index
    %77 = memref.load %arg4[%c0_75, %c6_76] : memref<8x8xi32, #tpu.memory_space<smem>>
    %78 = arith.index_cast %77 : i32 to index
    %c0_77 = arith.constant 0 : index
    %c0_78 = arith.constant 0 : index
    %79 = vector.load %arg7[%78, %c0_77, %c0_78] : memref<17x1x512xf32, #tpu.memory_space<vmem>>, vector<1x1x512xf32>
    %80 = vector.shape_cast %79 : vector<1x1x512xf32> to vector<1x512xf32>
    %c48_79 = arith.constant 48 : index
    %c0_80 = arith.constant 0 : index
    %81 = vector.load %arg18[%c48_79, %c0_80] : memref<64x512xf32, #tpu.memory_space<vmem>>, vector<1x512xf32>
    tpu.vector_store %arg18[%c48_79, %c0_80], %80 {strides = array<i32>} : memref<64x512xf32, #tpu.memory_space<vmem>>, vector<1x512xf32>,
    %c0_81 = arith.constant 0 : index
    %c7 = arith.constant 7 : index
    %82 = memref.load %arg3[%c0_81, %c7] : memref<8x8xi32, #tpu.memory_space<smem>>
    %83 = arith.index_cast %82 : i32 to index
    %c0_82 = arith.constant 0 : index
    %c0_83 = arith.constant 0 : index
    %84 = vector.load %arg6[%83, %c0_82, %c0_83] : memref<64x1x512xf32, #tpu.memory_space<vmem>>, vector<1x1x512xf32>
    %85 = vector.shape_cast %84 : vector<1x1x512xf32> to vector<1x512xf32>
    %c56 = arith.constant 56 : index
    %c0_84 = arith.constant 0 : index
    %86 = vector.load %arg17[%c56, %c0_84] : memref<64x512xf32, #tpu.memory_space<vmem>>, vector<1x512xf32>
    tpu.vector_store %arg17[%c56, %c0_84], %85 {strides = array<i32>} : memref<64x512xf32, #tpu.memory_space<vmem>>, vector<1x512xf32>,
    %c0_85 = arith.constant 0 : index
    %c7_86 = arith.constant 7 : index
    %87 = memref.load %arg4[%c0_85, %c7_86] : memref<8x8xi32, #tpu.memory_space<smem>>
    %88 = arith.index_cast %87 : i32 to index
    %c0_87 = arith.constant 0 : index
    %c0_88 = arith.constant 0 : index
    %89 = vector.load %arg7[%88, %c0_87, %c0_88] : memref<17x1x512xf32, #tpu.memory_space<vmem>>, vector<1x1x512xf32>
    %90 = vector.shape_cast %89 : vector<1x1x512xf32> to vector<1x512xf32>
    %c56_89 = arith.constant 56 : index
    %c0_90 = arith.constant 0 : index
    %91 = vector.load %arg18[%c56_89, %c0_90] : memref<64x512xf32, #tpu.memory_space<vmem>>, vector<1x512xf32>
    tpu.vector_store %arg18[%c56_89, %c0_90], %90 {strides = array<i32>} : memref<64x512xf32, #tpu.memory_space<vmem>>, vector<1x512xf32>,
    %c1_91 = arith.constant 1 : index
    %92 = memref.load %arg1[%c1_91] : memref<8xi32, #tpu.memory_space<smem>>
    %93 = arith.index_cast %92 : i32 to index
    %c0_92 = arith.constant 0 : index
    %c0_93 = arith.constant 0 : index
    %94 = vector.load %arg5[%93, %c0_92, %c0_93] : memref<32x1x512xf32, #tpu.memory_space<vmem>>, vector<1x1x512xf32>
    %95 = vector.shape_cast %94 : vector<1x1x512xf32> to vector<1x512xf32>
    %c1_94 = arith.constant 1 : index
    %c0_95 = arith.constant 0 : index
    %96 = vector.load %arg15[%c1_94, %c0_95] : memref<8x512xf32, #tpu.memory_space<vmem>>, vector<1x512xf32>
    tpu.vector_store %arg15[%c1_94, %c0_95], %95 {strides = array<i32>} : memref<8x512xf32, #tpu.memory_space<vmem>>, vector<1x512xf32>,
    %c1_96 = arith.constant 1 : index
    %97 = memref.load %arg2[%c1_96] : memref<8xi32, #tpu.memory_space<smem>>
    %98 = arith.index_cast %97 : i32 to index
    %c0_97 = arith.constant 0 : index
    %c0_98 = arith.constant 0 : index
    %99 = vector.load %arg6[%98, %c0_97, %c0_98] : memref<64x1x512xf32, #tpu.memory_space<vmem>>, vector<1x1x512xf32>
    %100 = vector.shape_cast %99 : vector<1x1x512xf32> to vector<1x512xf32>
    %c1_99 = arith.constant 1 : index
    %c0_100 = arith.constant 0 : index
    %101 = vector.load %arg16[%c1_99, %c0_100] : memref<8x512xf32, #tpu.memory_space<vmem>>, vector<1x512xf32>
    tpu.vector_store %arg16[%c1_99, %c0_100], %100 {strides = array<i32>} : memref<8x512xf32, #tpu.memory_space<vmem>>, vector<1x512xf32>,
    %c1_101 = arith.constant 1 : index
    %c0_102 = arith.constant 0 : index
    %102 = memref.load %arg3[%c1_101, %c0_102] : memref<8x8xi32, #tpu.memory_space<smem>>
    %103 = arith.index_cast %102 : i32 to index
    %c0_103 = arith.constant 0 : index
    %c0_104 = arith.constant 0 : index
    %104 = vector.load %arg6[%103, %c0_103, %c0_104] : memref<64x1x512xf32, #tpu.memory_space<vmem>>, vector<1x1x512xf32>
    %105 = vector.shape_cast %104 : vector<1x1x512xf32> to vector<1x512xf32>
    %c1_105 = arith.constant 1 : index
    %c0_106 = arith.constant 0 : index
    %106 = vector.load %arg17[%c1_105, %c0_106] : memref<64x512xf32, #tpu.memory_space<vmem>>, vector<1x512xf32>
    tpu.vector_store %arg17[%c1_105, %c0_106], %105 {strides = array<i32>} : memref<64x512xf32, #tpu.memory_space<vmem>>, vector<1x512xf32>,
    %c1_107 = arith.constant 1 : index
    %c0_108 = arith.constant 0 : index
    %107 = memref.load %arg4[%c1_107, %c0_108] : memref<8x8xi32, #tpu.memory_space<smem>>
    %108 = arith.index_cast %107 : i32 to index
    %c0_109 = arith.constant 0 : index
    %c0_110 = arith.constant 0 : index
    %109 = vector.load %arg7[%108, %c0_109, %c0_110] : memref<17x1x512xf32, #tpu.memory_space<vmem>>, vector<1x1x512xf32>
    %110 = vector.shape_cast %109 : vector<1x1x512xf32> to vector<1x512xf32>
    %c1_111 = arith.constant 1 : index
    %c0_112 = arith.constant 0 : index
    %111 = vector.load %arg18[%c1_111, %c0_112] : memref<64x512xf32, #tpu.memory_space<vmem>>, vector<1x512xf32>
    tpu.vector_store %arg18[%c1_111, %c0_112], %110 {strides = array<i32>} : memref<64x512xf32, #tpu.memory_space<vmem>>, vector<1x512xf32>,
    %c1_113 = arith.constant 1 : index
    %c1_114 = arith.constant 1 : index
    %112 = memref.load %arg3[%c1_113, %c1_114] : memref<8x8xi32, #tpu.memory_space<smem>>
    %113 = arith.index_cast %112 : i32 to index
    %c0_115 = arith.constant 0 : index
    %c0_116 = arith.constant 0 : index
    %114 = vector.load %arg6[%113, %c0_115, %c0_116] : memref<64x1x512xf32, #tpu.memory_space<vmem>>, vector<1x1x512xf32>
    %115 = vector.shape_cast %114 : vector<1x1x512xf32> to vector<1x512xf32>
    %c9 = arith.constant 9 : index
    %c0_117 = arith.constant 0 : index
    %116 = vector.load %arg17[%c9, %c0_117] : memref<64x512xf32, #tpu.memory_space<vmem>>, vector<1x512xf32>
    tpu.vector_store %arg17[%c9, %c0_117], %115 {strides = array<i32>} : memref<64x512xf32, #tpu.memory_space<vmem>>, vector<1x512xf32>,
    %c1_118 = arith.constant 1 : index
    %c1_119 = arith.constant 1 : index
    %117 = memref.load %arg4[%c1_118, %c1_119] : memref<8x8xi32, #tpu.memory_space<smem>>
    %118 = arith.index_cast %117 : i32 to index
    %c0_120 = arith.constant 0 : index
    %c0_121 = arith.constant 0 : index
    %119 = vector.load %arg7[%118, %c0_120, %c0_121] : memref<17x1x512xf32, #tpu.memory_space<vmem>>, vector<1x1x512xf32>
    %120 = vector.shape_cast %119 : vector<1x1x512xf32> to vector<1x512xf32>
    %c9_122 = arith.constant 9 : index
    %c0_123 = arith.constant 0 : index
    %121 = vector.load %arg18[%c9_122, %c0_123] : memref<64x512xf32, #tpu.memory_space<vmem>>, vector<1x512xf32>
    tpu.vector_store %arg18[%c9_122, %c0_123], %120 {strides = array<i32>} : memref<64x512xf32, #tpu.memory_space<vmem>>, vector<1x512xf32>,
    %c1_124 = arith.constant 1 : index
    %c2_125 = arith.constant 2 : index
    %122 = memref.load %arg3[%c1_124, %c2_125] : memref<8x8xi32, #tpu.memory_space<smem>>
    %123 = arith.index_cast %122 : i32 to index
    %c0_126 = arith.constant 0 : index
    %c0_127 = arith.constant 0 : index
    %124 = vector.load %arg6[%123, %c0_126, %c0_127] : memref<64x1x512xf32, #tpu.memory_space<vmem>>, vector<1x1x512xf32>
    %125 = vector.shape_cast %124 : vector<1x1x512xf32> to vector<1x512xf32>
    %c17 = arith.constant 17 : index
    %c0_128 = arith.constant 0 : index
    %126 = vector.load %arg17[%c17, %c0_128] : memref<64x512xf32, #tpu.memory_space<vmem>>, vector<1x512xf32>
    tpu.vector_store %arg17[%c17, %c0_128], %125 {strides = array<i32>} : memref<64x512xf32, #tpu.memory_space<vmem>>, vector<1x512xf32>,
    %c1_129 = arith.constant 1 : index
    %c2_130 = arith.constant 2 : index
    %127 = memref.load %arg4[%c1_129, %c2_130] : memref<8x8xi32, #tpu.memory_space<smem>>
    %128 = arith.index_cast %127 : i32 to index
    %c0_131 = arith.constant 0 : index
    %c0_132 = arith.constant 0 : index
    %129 = vector.load %arg7[%128, %c0_131, %c0_132] : memref<17x1x512xf32, #tpu.memory_space<vmem>>, vector<1x1x512xf32>
    %130 = vector.shape_cast %129 : vector<1x1x512xf32> to vector<1x512xf32>
    %c17_133 = arith.constant 17 : index
    %c0_134 = arith.constant 0 : index
    %131 = vector.load %arg18[%c17_133, %c0_134] : memref<64x512xf32, #tpu.memory_space<vmem>>, vector<1x512xf32>
    tpu.vector_store %arg18[%c17_133, %c0_134], %130 {strides = array<i32>} : memref<64x512xf32, #tpu.memory_space<vmem>>, vector<1x512xf32>,
    %c1_135 = arith.constant 1 : index
    %c3_136 = arith.constant 3 : index
    %132 = memref.load %arg3[%c1_135, %c3_136] : memref<8x8xi32, #tpu.memory_space<smem>>
    %133 = arith.index_cast %132 : i32 to index
    %c0_137 = arith.constant 0 : index
    %c0_138 = arith.constant 0 : index
    %134 = vector.load %arg6[%133, %c0_137, %c0_138] : memref<64x1x512xf32, #tpu.memory_space<vmem>>, vector<1x1x512xf32>
    %135 = vector.shape_cast %134 : vector<1x1x512xf32> to vector<1x512xf32>
    %c25 = arith.constant 25 : index
    %c0_139 = arith.constant 0 : index
    %136 = vector.load %arg17[%c25, %c0_139] : memref<64x512xf32, #tpu.memory_space<vmem>>, vector<1x512xf32>
    tpu.vector_store %arg17[%c25, %c0_139], %135 {strides = array<i32>} : memref<64x512xf32, #tpu.memory_space<vmem>>, vector<1x512xf32>,
    %c1_140 = arith.constant 1 : index
    %c3_141 = arith.constant 3 : index
    %137 = memref.load %arg4[%c1_140, %c3_141] : memref<8x8xi32, #tpu.memory_space<smem>>
    %138 = arith.index_cast %137 : i32 to index
    %c0_142 = arith.constant 0 : index
    %c0_143 = arith.constant 0 : index
    %139 = vector.load %arg7[%138, %c0_142, %c0_143] : memref<17x1x512xf32, #tpu.memory_space<vmem>>, vector<1x1x512xf32>
    %140 = vector.shape_cast %139 : vector<1x1x512xf32> to vector<1x512xf32>
    %c25_144 = arith.constant 25 : index
    %c0_145 = arith.constant 0 : index
    %141 = vector.load %arg18[%c25_144, %c0_145] : memref<64x512xf32, #tpu.memory_space<vmem>>, vector<1x512xf32>
    tpu.vector_store %arg18[%c25_144, %c0_145], %140 {strides = array<i32>} : memref<64x512xf32, #tpu.memory_space<vmem>>, vector<1x512xf32>,
    %c1_146 = arith.constant 1 : index
    %c4_147 = arith.constant 4 : index
    %142 = memref.load %arg3[%c1_146, %c4_147] : memref<8x8xi32, #tpu.memory_space<smem>>
    %143 = arith.index_cast %142 : i32 to index
    %c0_148 = arith.constant 0 : index
    %c0_149 = arith.constant 0 : index
    %144 = vector.load %arg6[%143, %c0_148, %c0_149] : memref<64x1x512xf32, #tpu.memory_space<vmem>>, vector<1x1x512xf32>
    %145 = vector.shape_cast %144 : vector<1x1x512xf32> to vector<1x512xf32>
    %c33 = arith.constant 33 : index
    %c0_150 = arith.constant 0 : index
    %146 = vector.load %arg17[%c33, %c0_150] : memref<64x512xf32, #tpu.memory_space<vmem>>, vector<1x512xf32>
    tpu.vector_store %arg17[%c33, %c0_150], %145 {strides = array<i32>} : memref<64x512xf32, #tpu.memory_space<vmem>>, vector<1x512xf32>,
    %c1_151 = arith.constant 1 : index
    %c4_152 = arith.constant 4 : index
    %147 = memref.load %arg4[%c1_151, %c4_152] : memref<8x8xi32, #tpu.memory_space<smem>>
    %148 = arith.index_cast %147 : i32 to index
    %c0_153 = arith.constant 0 : index
    %c0_154 = arith.constant 0 : index
    %149 = vector.load %arg7[%148, %c0_153, %c0_154] : memref<17x1x512xf32, #tpu.memory_space<vmem>>, vector<1x1x512xf32>
    %150 = vector.shape_cast %149 : vector<1x1x512xf32> to vector<1x512xf32>
    %c33_155 = arith.constant 33 : index
    %c0_156 = arith.constant 0 : index
    %151 = vector.load %arg18[%c33_155, %c0_156] : memref<64x512xf32, #tpu.memory_space<vmem>>, vector<1x512xf32>
    tpu.vector_store %arg18[%c33_155, %c0_156], %150 {strides = array<i32>} : memref<64x512xf32, #tpu.memory_space<vmem>>, vector<1x512xf32>,
    %c1_157 = arith.constant 1 : index
    %c5_158 = arith.constant 5 : index
    %152 = memref.load %arg3[%c1_157, %c5_158] : memref<8x8xi32, #tpu.memory_space<smem>>
    %153 = arith.index_cast %152 : i32 to index
    %c0_159 = arith.constant 0 : index
    %c0_160 = arith.constant 0 : index
    %154 = vector.load %arg6[%153, %c0_159, %c0_160] : memref<64x1x512xf32, #tpu.memory_space<vmem>>, vector<1x1x512xf32>
    %155 = vector.shape_cast %154 : vector<1x1x512xf32> to vector<1x512xf32>
    %c41 = arith.constant 41 : index
    %c0_161 = arith.constant 0 : index
    %156 = vector.load %arg17[%c41, %c0_161] : memref<64x512xf32, #tpu.memory_space<vmem>>, vector<1x512xf32>
    tpu.vector_store %arg17[%c41, %c0_161], %155 {strides = array<i32>} : memref<64x512xf32, #tpu.memory_space<vmem>>, vector<1x512xf32>,
    %c1_162 = arith.constant 1 : index
    %c5_163 = arith.constant 5 : index
    %157 = memref.load %arg4[%c1_162, %c5_163] : memref<8x8xi32, #tpu.memory_space<smem>>
    %158 = arith.index_cast %157 : i32 to index
    %c0_164 = arith.constant 0 : index
    %c0_165 = arith.constant 0 : index
    %159 = vector.load %arg7[%158, %c0_164, %c0_165] : memref<17x1x512xf32, #tpu.memory_space<vmem>>, vector<1x1x512xf32>
    %160 = vector.shape_cast %159 : vector<1x1x512xf32> to vector<1x512xf32>
    %c41_166 = arith.constant 41 : index
    %c0_167 = arith.constant 0 : index
    %161 = vector.load %arg18[%c41_166, %c0_167] : memref<64x512xf32, #tpu.memory_space<vmem>>, vector<1x512xf32>
    tpu.vector_store %arg18[%c41_166, %c0_167], %160 {strides = array<i32>} : memref<64x512xf32, #tpu.memory_space<vmem>>, vector<1x512xf32>,
    %c1_168 = arith.constant 1 : index
    %c6_169 = arith.constant 6 : index
    %162 = memref.load %arg3[%c1_168, %c6_169] : memref<8x8xi32, #tpu.memory_space<smem>>
    %163 = arith.index_cast %162 : i32 to index
    %c0_170 = arith.constant 0 : index
    %c0_171 = arith.constant 0 : index
    %164 = vector.load %arg6[%163, %c0_170, %c0_171] : memref<64x1x512xf32, #tpu.memory_space<vmem>>, vector<1x1x512xf32>
    %165 = vector.shape_cast %164 : vector<1x1x512xf32> to vector<1x512xf32>
    %c49 = arith.constant 49 : index
    %c0_172 = arith.constant 0 : index
    %166 = vector.load %arg17[%c49, %c0_172] : memref<64x512xf32, #tpu.memory_space<vmem>>, vector<1x512xf32>
    tpu.vector_store %arg17[%c49, %c0_172], %165 {strides = array<i32>} : memref<64x512xf32, #tpu.memory_space<vmem>>, vector<1x512xf32>,
    %c1_173 = arith.constant 1 : index
    %c6_174 = arith.constant 6 : index
    %167 = memref.load %arg4[%c1_173, %c6_174] : memref<8x8xi32, #tpu.memory_space<smem>>
    %168 = arith.index_cast %167 : i32 to index
    %c0_175 = arith.constant 0 : index
    %c0_176 = arith.constant 0 : index
    %169 = vector.load %arg7[%168, %c0_175, %c0_176] : memref<17x1x512xf32, #tpu.memory_space<vmem>>, vector<1x1x512xf32>
    %170 = vector.shape_cast %169 : vector<1x1x512xf32> to vector<1x512xf32>
    %c49_177 = arith.constant 49 : index
    %c0_178 = arith.constant 0 : index
    %171 = vector.load %arg18[%c49_177, %c0_178] : memref<64x512xf32, #tpu.memory_space<vmem>>, vector<1x512xf32>
    tpu.vector_store %arg18[%c49_177, %c0_178], %170 {strides = array<i32>} : memref<64x512xf32, #tpu.memory_space<vmem>>, vector<1x512xf32>,
    %c1_179 = arith.constant 1 : index
    %c7_180 = arith.constant 7 : index
    %172 = memref.load %arg3[%c1_179, %c7_180] : memref<8x8xi32, #tpu.memory_space<smem>>
    %173 = arith.index_cast %172 : i32 to index
    %c0_181 = arith.constant 0 : index
    %c0_182 = arith.constant 0 : index
    %174 = vector.load %arg6[%173, %c0_181, %c0_182] : memref<64x1x512xf32, #tpu.memory_space<vmem>>, vector<1x1x512xf32>
    %175 = vector.shape_cast %174 : vector<1x1x512xf32> to vector<1x512xf32>
    %c57 = arith.constant 57 : index
    %c0_183 = arith.constant 0 : index
    %176 = vector.load %arg17[%c57, %c0_183] : memref<64x512xf32, #tpu.memory_space<vmem>>, vector<1x512xf32>
    tpu.vector_store %arg17[%c57, %c0_183], %175 {strides = array<i32>} : memref<64x512xf32, #tpu.memory_space<vmem>>, vector<1x512xf32>,
    %c1_184 = arith.constant 1 : index
    %c7_185 = arith.constant 7 : index
    %177 = memref.load %arg4[%c1_184, %c7_185] : memref<8x8xi32, #tpu.memory_space<smem>>
    %178 = arith.index_cast %177 : i32 to index
    %c0_186 = arith.constant 0 : index
    %c0_187 = arith.constant 0 : index
    %179 = vector.load %arg7[%178, %c0_186, %c0_187] : memref<17x1x512xf32, #tpu.memory_space<vmem>>, vector<1x1x512xf32>
    %180 = vector.shape_cast %179 : vector<1x1x512xf32> to vector<1x512xf32>
    %c57_188 = arith.constant 57 : index
    %c0_189 = arith.constant 0 : index
    %181 = vector.load %arg18[%c57_188, %c0_189] : memref<64x512xf32, #tpu.memory_space<vmem>>, vector<1x512xf32>
    tpu.vector_store %arg18[%c57_188, %c0_189], %180 {strides = array<i32>} : memref<64x512xf32, #tpu.memory_space<vmem>>, vector<1x512xf32>,
    %c2_190 = arith.constant 2 : index
    %182 = memref.load %arg1[%c2_190] : memref<8xi32, #tpu.memory_space<smem>>
    %183 = arith.index_cast %182 : i32 to index
    %c0_191 = arith.constant 0 : index
    %c0_192 = arith.constant 0 : index
    %184 = vector.load %arg5[%183, %c0_191, %c0_192] : memref<32x1x512xf32, #tpu.memory_space<vmem>>, vector<1x1x512xf32>
    %185 = vector.shape_cast %184 : vector<1x1x512xf32> to vector<1x512xf32>
    %c2_193 = arith.constant 2 : index
    %c0_194 = arith.constant 0 : index
    %186 = vector.load %arg15[%c2_193, %c0_194] : memref<8x512xf32, #tpu.memory_space<vmem>>, vector<1x512xf32>
    tpu.vector_store %arg15[%c2_193, %c0_194], %185 {strides = array<i32>} : memref<8x512xf32, #tpu.memory_space<vmem>>, vector<1x512xf32>,
    %c2_195 = arith.constant 2 : index
    %187 = memref.load %arg2[%c2_195] : memref<8xi32, #tpu.memory_space<smem>>
    %188 = arith.index_cast %187 : i32 to index
    %c0_196 = arith.constant 0 : index
    %c0_197 = arith.constant 0 : index
    %189 = vector.load %arg6[%188, %c0_196, %c0_197] : memref<64x1x512xf32, #tpu.memory_space<vmem>>, vector<1x1x512xf32>
    %190 = vector.shape_cast %189 : vector<1x1x512xf32> to vector<1x512xf32>
    %c2_198 = arith.constant 2 : index
    %c0_199 = arith.constant 0 : index
    %191 = vector.load %arg16[%c2_198, %c0_199] : memref<8x512xf32, #tpu.memory_space<vmem>>, vector<1x512xf32>
    tpu.vector_store %arg16[%c2_198, %c0_199], %190 {strides = array<i32>} : memref<8x512xf32, #tpu.memory_space<vmem>>, vector<1x512xf32>,
    %c2_200 = arith.constant 2 : index
    %c0_201 = arith.constant 0 : index
    %192 = memref.load %arg3[%c2_200, %c0_201] : memref<8x8xi32, #tpu.memory_space<smem>>
    %193 = arith.index_cast %192 : i32 to index
    %c0_202 = arith.constant 0 : index
    %c0_203 = arith.constant 0 : index
    %194 = vector.load %arg6[%193, %c0_202, %c0_203] : memref<64x1x512xf32, #tpu.memory_space<vmem>>, vector<1x1x512xf32>
    %195 = vector.shape_cast %194 : vector<1x1x512xf32> to vector<1x512xf32>
    %c2_204 = arith.constant 2 : index
    %c0_205 = arith.constant 0 : index
    %196 = vector.load %arg17[%c2_204, %c0_205] : memref<64x512xf32, #tpu.memory_space<vmem>>, vector<1x512xf32>
    tpu.vector_store %arg17[%c2_204, %c0_205], %195 {strides = array<i32>} : memref<64x512xf32, #tpu.memory_space<vmem>>, vector<1x512xf32>,
    %c2_206 = arith.constant 2 : index
    %c0_207 = arith.constant 0 : index
    %197 = memref.load %arg4[%c2_206, %c0_207] : memref<8x8xi32, #tpu.memory_space<smem>>
    %198 = arith.index_cast %197 : i32 to index
    %c0_208 = arith.constant 0 : index
    %c0_209 = arith.constant 0 : index
    %199 = vector.load %arg7[%198, %c0_208, %c0_209] : memref<17x1x512xf32, #tpu.memory_space<vmem>>, vector<1x1x512xf32>
    %200 = vector.shape_cast %199 : vector<1x1x512xf32> to vector<1x512xf32>
    %c2_210 = arith.constant 2 : index
    %c0_211 = arith.constant 0 : index
    %201 = vector.load %arg18[%c2_210, %c0_211] : memref<64x512xf32, #tpu.memory_space<vmem>>, vector<1x512xf32>
    tpu.vector_store %arg18[%c2_210, %c0_211], %200 {strides = array<i32>} : memref<64x512xf32, #tpu.memory_space<vmem>>, vector<1x512xf32>,
    %c2_212 = arith.constant 2 : index
    %c1_213 = arith.constant 1 : index
    %202 = memref.load %arg3[%c2_212, %c1_213] : memref<8x8xi32, #tpu.memory_space<smem>>
    %203 = arith.index_cast %202 : i32 to index
    %c0_214 = arith.constant 0 : index
    %c0_215 = arith.constant 0 : index
    %204 = vector.load %arg6[%203, %c0_214, %c0_215] : memref<64x1x512xf32, #tpu.memory_space<vmem>>, vector<1x1x512xf32>
    %205 = vector.shape_cast %204 : vector<1x1x512xf32> to vector<1x512xf32>
    %c10 = arith.constant 10 : index
    %c0_216 = arith.constant 0 : index
    %206 = vector.load %arg17[%c10, %c0_216] : memref<64x512xf32, #tpu.memory_space<vmem>>, vector<1x512xf32>
    tpu.vector_store %arg17[%c10, %c0_216], %205 {strides = array<i32>} : memref<64x512xf32, #tpu.memory_space<vmem>>, vector<1x512xf32>,
    %c2_217 = arith.constant 2 : index
    %c1_218 = arith.constant 1 : index
    %207 = memref.load %arg4[%c2_217, %c1_218] : memref<8x8xi32, #tpu.memory_space<smem>>
    %208 = arith.index_cast %207 : i32 to index
    %c0_219 = arith.constant 0 : index
    %c0_220 = arith.constant 0 : index
    %209 = vector.load %arg7[%208, %c0_219, %c0_220] : memref<17x1x512xf32, #tpu.memory_space<vmem>>, vector<1x1x512xf32>
    %210 = vector.shape_cast %209 : vector<1x1x512xf32> to vector<1x512xf32>
    %c10_221 = arith.constant 10 : index
    %c0_222 = arith.constant 0 : index
    %211 = vector.load %arg18[%c10_221, %c0_222] : memref<64x512xf32, #tpu.memory_space<vmem>>, vector<1x512xf32>
    tpu.vector_store %arg18[%c10_221, %c0_222], %210 {strides = array<i32>} : memref<64x512xf32, #tpu.memory_space<vmem>>, vector<1x512xf32>,
    %c2_223 = arith.constant 2 : index
    %c2_224 = arith.constant 2 : index
    %212 = memref.load %arg3[%c2_223, %c2_224] : memref<8x8xi32, #tpu.memory_space<smem>>
    %213 = arith.index_cast %212 : i32 to index
    %c0_225 = arith.constant 0 : index
    %c0_226 = arith.constant 0 : index
    %214 = vector.load %arg6[%213, %c0_225, %c0_226] : memref<64x1x512xf32, #tpu.memory_space<vmem>>, vector<1x1x512xf32>
    %215 = vector.shape_cast %214 : vector<1x1x512xf32> to vector<1x512xf32>
    %c18 = arith.constant 18 : index
    %c0_227 = arith.constant 0 : index
    %216 = vector.load %arg17[%c18, %c0_227] : memref<64x512xf32, #tpu.memory_space<vmem>>, vector<1x512xf32>
    tpu.vector_store %arg17[%c18, %c0_227], %215 {strides = array<i32>} : memref<64x512xf32, #tpu.memory_space<vmem>>, vector<1x512xf32>,
    %c2_228 = arith.constant 2 : index
    %c2_229 = arith.constant 2 : index
    %217 = memref.load %arg4[%c2_228, %c2_229] : memref<8x8xi32, #tpu.memory_space<smem>>
    %218 = arith.index_cast %217 : i32 to index
    %c0_230 = arith.constant 0 : index
    %c0_231 = arith.constant 0 : index
    %219 = vector.load %arg7[%218, %c0_230, %c0_231] : memref<17x1x512xf32, #tpu.memory_space<vmem>>, vector<1x1x512xf32>
    %220 = vector.shape_cast %219 : vector<1x1x512xf32> to vector<1x512xf32>
    %c18_232 = arith.constant 18 : index
    %c0_233 = arith.constant 0 : index
    %221 = vector.load %arg18[%c18_232, %c0_233] : memref<64x512xf32, #tpu.memory_space<vmem>>, vector<1x512xf32>
    tpu.vector_store %arg18[%c18_232, %c0_233], %220 {strides = array<i32>} : memref<64x512xf32, #tpu.memory_space<vmem>>, vector<1x512xf32>,
    %c2_234 = arith.constant 2 : index
    %c3_235 = arith.constant 3 : index
    %222 = memref.load %arg3[%c2_234, %c3_235] : memref<8x8xi32, #tpu.memory_space<smem>>
    %223 = arith.index_cast %222 : i32 to index
    %c0_236 = arith.constant 0 : index
    %c0_237 = arith.constant 0 : index
    %224 = vector.load %arg6[%223, %c0_236, %c0_237] : memref<64x1x512xf32, #tpu.memory_space<vmem>>, vector<1x1x512xf32>
    %225 = vector.shape_cast %224 : vector<1x1x512xf32> to vector<1x512xf32>
    %c26 = arith.constant 26 : index
    %c0_238 = arith.constant 0 : index
    %226 = vector.load %arg17[%c26, %c0_238] : memref<64x512xf32, #tpu.memory_space<vmem>>, vector<1x512xf32>
    tpu.vector_store %arg17[%c26, %c0_238], %225 {strides = array<i32>} : memref<64x512xf32, #tpu.memory_space<vmem>>, vector<1x512xf32>,
    %c2_239 = arith.constant 2 : index
    %c3_240 = arith.constant 3 : index
    %227 = memref.load %arg4[%c2_239, %c3_240] : memref<8x8xi32, #tpu.memory_space<smem>>
    %228 = arith.index_cast %227 : i32 to index
    %c0_241 = arith.constant 0 : index
    %c0_242 = arith.constant 0 : index
    %229 = vector.load %arg7[%228, %c0_241, %c0_242] : memref<17x1x512xf32, #tpu.memory_space<vmem>>, vector<1x1x512xf32>
    %230 = vector.shape_cast %229 : vector<1x1x512xf32> to vector<1x512xf32>
    %c26_243 = arith.constant 26 : index
    %c0_244 = arith.constant 0 : index
    %231 = vector.load %arg18[%c26_243, %c0_244] : memref<64x512xf32, #tpu.memory_space<vmem>>, vector<1x512xf32>
    tpu.vector_store %arg18[%c26_243, %c0_244], %230 {strides = array<i32>} : memref<64x512xf32, #tpu.memory_space<vmem>>, vector<1x512xf32>,
    %c2_245 = arith.constant 2 : index
    %c4_246 = arith.constant 4 : index
    %232 = memref.load %arg3[%c2_245, %c4_246] : memref<8x8xi32, #tpu.memory_space<smem>>
    %233 = arith.index_cast %232 : i32 to index
    %c0_247 = arith.constant 0 : index
    %c0_248 = arith.constant 0 : index
    %234 = vector.load %arg6[%233, %c0_247, %c0_248] : memref<64x1x512xf32, #tpu.memory_space<vmem>>, vector<1x1x512xf32>
    %235 = vector.shape_cast %234 : vector<1x1x512xf32> to vector<1x512xf32>
    %c34 = arith.constant 34 : index
    %c0_249 = arith.constant 0 : index
    %236 = vector.load %arg17[%c34, %c0_249] : memref<64x512xf32, #tpu.memory_space<vmem>>, vector<1x512xf32>
    tpu.vector_store %arg17[%c34, %c0_249], %235 {strides = array<i32>} : memref<64x512xf32, #tpu.memory_space<vmem>>, vector<1x512xf32>,
    %c2_250 = arith.constant 2 : index
    %c4_251 = arith.constant 4 : index
    %237 = memref.load %arg4[%c2_250, %c4_251] : memref<8x8xi32, #tpu.memory_space<smem>>
    %238 = arith.index_cast %237 : i32 to index
    %c0_252 = arith.constant 0 : index
    %c0_253 = arith.constant 0 : index
    %239 = vector.load %arg7[%238, %c0_252, %c0_253] : memref<17x1x512xf32, #tpu.memory_space<vmem>>, vector<1x1x512xf32>
    %240 = vector.shape_cast %239 : vector<1x1x512xf32> to vector<1x512xf32>
    %c34_254 = arith.constant 34 : index
    %c0_255 = arith.constant 0 : index
    %241 = vector.load %arg18[%c34_254, %c0_255] : memref<64x512xf32, #tpu.memory_space<vmem>>, vector<1x512xf32>
    tpu.vector_store %arg18[%c34_254, %c0_255], %240 {strides = array<i32>} : memref<64x512xf32, #tpu.memory_space<vmem>>, vector<1x512xf32>,
    %c2_256 = arith.constant 2 : index
    %c5_257 = arith.constant 5 : index
    %242 = memref.load %arg3[%c2_256, %c5_257] : memref<8x8xi32, #tpu.memory_space<smem>>
    %243 = arith.index_cast %242 : i32 to index
    %c0_258 = arith.constant 0 : index
    %c0_259 = arith.constant 0 : index
    %244 = vector.load %arg6[%243, %c0_258, %c0_259] : memref<64x1x512xf32, #tpu.memory_space<vmem>>, vector<1x1x512xf32>
    %245 = vector.shape_cast %244 : vector<1x1x512xf32> to vector<1x512xf32>
    %c42 = arith.constant 42 : index
    %c0_260 = arith.constant 0 : index
    %246 = vector.load %arg17[%c42, %c0_260] : memref<64x512xf32, #tpu.memory_space<vmem>>, vector<1x512xf32>
    tpu.vector_store %arg17[%c42, %c0_260], %245 {strides = array<i32>} : memref<64x512xf32, #tpu.memory_space<vmem>>, vector<1x512xf32>,
    %c2_261 = arith.constant 2 : index
    %c5_262 = arith.constant 5 : index
    %247 = memref.load %arg4[%c2_261, %c5_262] : memref<8x8xi32, #tpu.memory_space<smem>>
    %248 = arith.index_cast %247 : i32 to index
    %c0_263 = arith.constant 0 : index
    %c0_264 = arith.constant 0 : index
    %249 = vector.load %arg7[%248, %c0_263, %c0_264] : memref<17x1x512xf32, #tpu.memory_space<vmem>>, vector<1x1x512xf32>
    %250 = vector.shape_cast %249 : vector<1x1x512xf32> to vector<1x512xf32>
    %c42_265 = arith.constant 42 : index
    %c0_266 = arith.constant 0 : index
    %251 = vector.load %arg18[%c42_265, %c0_266] : memref<64x512xf32, #tpu.memory_space<vmem>>, vector<1x512xf32>
    tpu.vector_store %arg18[%c42_265, %c0_266], %250 {strides = array<i32>} : memref<64x512xf32, #tpu.memory_space<vmem>>, vector<1x512xf32>,
    %c2_267 = arith.constant 2 : index
    %c6_268 = arith.constant 6 : index
    %252 = memref.load %arg3[%c2_267, %c6_268] : memref<8x8xi32, #tpu.memory_space<smem>>
    %253 = arith.index_cast %252 : i32 to index
    %c0_269 = arith.constant 0 : index
    %c0_270 = arith.constant 0 : index
    %254 = vector.load %arg6[%253, %c0_269, %c0_270] : memref<64x1x512xf32, #tpu.memory_space<vmem>>, vector<1x1x512xf32>
    %255 = vector.shape_cast %254 : vector<1x1x512xf32> to vector<1x512xf32>
    %c50 = arith.constant 50 : index
    %c0_271 = arith.constant 0 : index
    %256 = vector.load %arg17[%c50, %c0_271] : memref<64x512xf32, #tpu.memory_space<vmem>>, vector<1x512xf32>
    tpu.vector_store %arg17[%c50, %c0_271], %255 {strides = array<i32>} : memref<64x512xf32, #tpu.memory_space<vmem>>, vector<1x512xf32>,
    %c2_272 = arith.constant 2 : index
    %c6_273 = arith.constant 6 : index
    %257 = memref.load %arg4[%c2_272, %c6_273] : memref<8x8xi32, #tpu.memory_space<smem>>
    %258 = arith.index_cast %257 : i32 to index
    %c0_274 = arith.constant 0 : index
    %c0_275 = arith.constant 0 : index
    %259 = vector.load %arg7[%258, %c0_274, %c0_275] : memref<17x1x512xf32, #tpu.memory_space<vmem>>, vector<1x1x512xf32>
    %260 = vector.shape_cast %259 : vector<1x1x512xf32> to vector<1x512xf32>
    %c50_276 = arith.constant 50 : index
    %c0_277 = arith.constant 0 : index
    %261 = vector.load %arg18[%c50_276, %c0_277] : memref<64x512xf32, #tpu.memory_space<vmem>>, vector<1x512xf32>
    tpu.vector_store %arg18[%c50_276, %c0_277], %260 {strides = array<i32>} : memref<64x512xf32, #tpu.memory_space<vmem>>, vector<1x512xf32>,
    %c2_278 = arith.constant 2 : index
    %c7_279 = arith.constant 7 : index
    %262 = memref.load %arg3[%c2_278, %c7_279] : memref<8x8xi32, #tpu.memory_space<smem>>
    %263 = arith.index_cast %262 : i32 to index
    %c0_280 = arith.constant 0 : index
    %c0_281 = arith.constant 0 : index
    %264 = vector.load %arg6[%263, %c0_280, %c0_281] : memref<64x1x512xf32, #tpu.memory_space<vmem>>, vector<1x1x512xf32>
    %265 = vector.shape_cast %264 : vector<1x1x512xf32> to vector<1x512xf32>
    %c58 = arith.constant 58 : index
    %c0_282 = arith.constant 0 : index
    %266 = vector.load %arg17[%c58, %c0_282] : memref<64x512xf32, #tpu.memory_space<vmem>>, vector<1x512xf32>
    tpu.vector_store %arg17[%c58, %c0_282], %265 {strides = array<i32>} : memref<64x512xf32, #tpu.memory_space<vmem>>, vector<1x512xf32>,
    %c2_283 = arith.constant 2 : index
    %c7_284 = arith.constant 7 : index
    %267 = memref.load %arg4[%c2_283, %c7_284] : memref<8x8xi32, #tpu.memory_space<smem>>
    %268 = arith.index_cast %267 : i32 to index
    %c0_285 = arith.constant 0 : index
    %c0_286 = arith.constant 0 : index
    %269 = vector.load %arg7[%268, %c0_285, %c0_286] : memref<17x1x512xf32, #tpu.memory_space<vmem>>, vector<1x1x512xf32>
    %270 = vector.shape_cast %269 : vector<1x1x512xf32> to vector<1x512xf32>
    %c58_287 = arith.constant 58 : index
    %c0_288 = arith.constant 0 : index
    %271 = vector.load %arg18[%c58_287, %c0_288] : memref<64x512xf32, #tpu.memory_space<vmem>>, vector<1x512xf32>
    tpu.vector_store %arg18[%c58_287, %c0_288], %270 {strides = array<i32>} : memref<64x512xf32, #tpu.memory_space<vmem>>, vector<1x512xf32>,
    %c3_289 = arith.constant 3 : index
    %272 = memref.load %arg1[%c3_289] : memref<8xi32, #tpu.memory_space<smem>>
    %273 = arith.index_cast %272 : i32 to index
    %c0_290 = arith.constant 0 : index
    %c0_291 = arith.constant 0 : index
    %274 = vector.load %arg5[%273, %c0_290, %c0_291] : memref<32x1x512xf32, #tpu.memory_space<vmem>>, vector<1x1x512xf32>
    %275 = vector.shape_cast %274 : vector<1x1x512xf32> to vector<1x512xf32>
    %c3_292 = arith.constant 3 : index
    %c0_293 = arith.constant 0 : index
    %276 = vector.load %arg15[%c3_292, %c0_293] : memref<8x512xf32, #tpu.memory_space<vmem>>, vector<1x512xf32>
    tpu.vector_store %arg15[%c3_292, %c0_293], %275 {strides = array<i32>} : memref<8x512xf32, #tpu.memory_space<vmem>>, vector<1x512xf32>,
    %c3_294 = arith.constant 3 : index
    %277 = memref.load %arg2[%c3_294] : memref<8xi32, #tpu.memory_space<smem>>
    %278 = arith.index_cast %277 : i32 to index
    %c0_295 = arith.constant 0 : index
    %c0_296 = arith.constant 0 : index
    %279 = vector.load %arg6[%278, %c0_295, %c0_296] : memref<64x1x512xf32, #tpu.memory_space<vmem>>, vector<1x1x512xf32>
    %280 = vector.shape_cast %279 : vector<1x1x512xf32> to vector<1x512xf32>
    %c3_297 = arith.constant 3 : index
    %c0_298 = arith.constant 0 : index
    %281 = vector.load %arg16[%c3_297, %c0_298] : memref<8x512xf32, #tpu.memory_space<vmem>>, vector<1x512xf32>
    tpu.vector_store %arg16[%c3_297, %c0_298], %280 {strides = array<i32>} : memref<8x512xf32, #tpu.memory_space<vmem>>, vector<1x512xf32>,
    %c3_299 = arith.constant 3 : index
    %c0_300 = arith.constant 0 : index
    %282 = memref.load %arg3[%c3_299, %c0_300] : memref<8x8xi32, #tpu.memory_space<smem>>
    %283 = arith.index_cast %282 : i32 to index
    %c0_301 = arith.constant 0 : index
    %c0_302 = arith.constant 0 : index
    %284 = vector.load %arg6[%283, %c0_301, %c0_302] : memref<64x1x512xf32, #tpu.memory_space<vmem>>, vector<1x1x512xf32>
    %285 = vector.shape_cast %284 : vector<1x1x512xf32> to vector<1x512xf32>
    %c3_303 = arith.constant 3 : index
    %c0_304 = arith.constant 0 : index
    %286 = vector.load %arg17[%c3_303, %c0_304] : memref<64x512xf32, #tpu.memory_space<vmem>>, vector<1x512xf32>
    tpu.vector_store %arg17[%c3_303, %c0_304], %285 {strides = array<i32>} : memref<64x512xf32, #tpu.memory_space<vmem>>, vector<1x512xf32>,
    %c3_305 = arith.constant 3 : index
    %c0_306 = arith.constant 0 : index
    %287 = memref.load %arg4[%c3_305, %c0_306] : memref<8x8xi32, #tpu.memory_space<smem>>
    %288 = arith.index_cast %287 : i32 to index
    %c0_307 = arith.constant 0 : index
    %c0_308 = arith.constant 0 : index
    %289 = vector.load %arg7[%288, %c0_307, %c0_308] : memref<17x1x512xf32, #tpu.memory_space<vmem>>, vector<1x1x512xf32>
    %290 = vector.shape_cast %289 : vector<1x1x512xf32> to vector<1x512xf32>
    %c3_309 = arith.constant 3 : index
    %c0_310 = arith.constant 0 : index
    %291 = vector.load %arg18[%c3_309, %c0_310] : memref<64x512xf32, #tpu.memory_space<vmem>>, vector<1x512xf32>
    tpu.vector_store %arg18[%c3_309, %c0_310], %290 {strides = array<i32>} : memref<64x512xf32, #tpu.memory_space<vmem>>, vector<1x512xf32>,
    %c3_311 = arith.constant 3 : index
    %c1_312 = arith.constant 1 : index
    %292 = memref.load %arg3[%c3_311, %c1_312] : memref<8x8xi32, #tpu.memory_space<smem>>
    %293 = arith.index_cast %292 : i32 to index
    %c0_313 = arith.constant 0 : index
    %c0_314 = arith.constant 0 : index
    %294 = vector.load %arg6[%293, %c0_313, %c0_314] : memref<64x1x512xf32, #tpu.memory_space<vmem>>, vector<1x1x512xf32>
    %295 = vector.shape_cast %294 : vector<1x1x512xf32> to vector<1x512xf32>
    %c11 = arith.constant 11 : index
    %c0_315 = arith.constant 0 : index
    %296 = vector.load %arg17[%c11, %c0_315] : memref<64x512xf32, #tpu.memory_space<vmem>>, vector<1x512xf32>
    tpu.vector_store %arg17[%c11, %c0_315], %295 {strides = array<i32>} : memref<64x512xf32, #tpu.memory_space<vmem>>, vector<1x512xf32>,
    %c3_316 = arith.constant 3 : index
    %c1_317 = arith.constant 1 : index
    %297 = memref.load %arg4[%c3_316, %c1_317] : memref<8x8xi32, #tpu.memory_space<smem>>
    %298 = arith.index_cast %297 : i32 to index
    %c0_318 = arith.constant 0 : index
    %c0_319 = arith.constant 0 : index
    %299 = vector.load %arg7[%298, %c0_318, %c0_319] : memref<17x1x512xf32, #tpu.memory_space<vmem>>, vector<1x1x512xf32>
    %300 = vector.shape_cast %299 : vector<1x1x512xf32> to vector<1x512xf32>
    %c11_320 = arith.constant 11 : index
    %c0_321 = arith.constant 0 : index
    %301 = vector.load %arg18[%c11_320, %c0_321] : memref<64x512xf32, #tpu.memory_space<vmem>>, vector<1x512xf32>
    tpu.vector_store %arg18[%c11_320, %c0_321], %300 {strides = array<i32>} : memref<64x512xf32, #tpu.memory_space<vmem>>, vector<1x512xf32>,
    %c3_322 = arith.constant 3 : index
    %c2_323 = arith.constant 2 : index
    %302 = memref.load %arg3[%c3_322, %c2_323] : memref<8x8xi32, #tpu.memory_space<smem>>
    %303 = arith.index_cast %302 : i32 to index
    %c0_324 = arith.constant 0 : index
    %c0_325 = arith.constant 0 : index
    %304 = vector.load %arg6[%303, %c0_324, %c0_325] : memref<64x1x512xf32, #tpu.memory_space<vmem>>, vector<1x1x512xf32>
    %305 = vector.shape_cast %304 : vector<1x1x512xf32> to vector<1x512xf32>
    %c19 = arith.constant 19 : index
    %c0_326 = arith.constant 0 : index
    %306 = vector.load %arg17[%c19, %c0_326] : memref<64x512xf32, #tpu.memory_space<vmem>>, vector<1x512xf32>
    tpu.vector_store %arg17[%c19, %c0_326], %305 {strides = array<i32>} : memref<64x512xf32, #tpu.memory_space<vmem>>, vector<1x512xf32>,
    %c3_327 = arith.constant 3 : index
    %c2_328 = arith.constant 2 : index
    %307 = memref.load %arg4[%c3_327, %c2_328] : memref<8x8xi32, #tpu.memory_space<smem>>
    %308 = arith.index_cast %307 : i32 to index
    %c0_329 = arith.constant 0 : index
    %c0_330 = arith.constant 0 : index
    %309 = vector.load %arg7[%308, %c0_329, %c0_330] : memref<17x1x512xf32, #tpu.memory_space<vmem>>, vector<1x1x512xf32>
    %310 = vector.shape_cast %309 : vector<1x1x512xf32> to vector<1x512xf32>
    %c19_331 = arith.constant 19 : index
    %c0_332 = arith.constant 0 : index
    %311 = vector.load %arg18[%c19_331, %c0_332] : memref<64x512xf32, #tpu.memory_space<vmem>>, vector<1x512xf32>
    tpu.vector_store %arg18[%c19_331, %c0_332], %310 {strides = array<i32>} : memref<64x512xf32, #tpu.memory_space<vmem>>, vector<1x512xf32>,
    %c3_333 = arith.constant 3 : index
    %c3_334 = arith.constant 3 : index
    %312 = memref.load %arg3[%c3_333, %c3_334] : memref<8x8xi32, #tpu.memory_space<smem>>
    %313 = arith.index_cast %312 : i32 to index
    %c0_335 = arith.constant 0 : index
    %c0_336 = arith.constant 0 : index
    %314 = vector.load %arg6[%313, %c0_335, %c0_336] : memref<64x1x512xf32, #tpu.memory_space<vmem>>, vector<1x1x512xf32>
    %315 = vector.shape_cast %314 : vector<1x1x512xf32> to vector<1x512xf32>
    %c27 = arith.constant 27 : index
    %c0_337 = arith.constant 0 : index
    %316 = vector.load %arg17[%c27, %c0_337] : memref<64x512xf32, #tpu.memory_space<vmem>>, vector<1x512xf32>
    tpu.vector_store %arg17[%c27, %c0_337], %315 {strides = array<i32>} : memref<64x512xf32, #tpu.memory_space<vmem>>, vector<1x512xf32>,
    %c3_338 = arith.constant 3 : index
    %c3_339 = arith.constant 3 : index
    %317 = memref.load %arg4[%c3_338, %c3_339] : memref<8x8xi32, #tpu.memory_space<smem>>
    %318 = arith.index_cast %317 : i32 to index
    %c0_340 = arith.constant 0 : index
    %c0_341 = arith.constant 0 : index
    %319 = vector.load %arg7[%318, %c0_340, %c0_341] : memref<17x1x512xf32, #tpu.memory_space<vmem>>, vector<1x1x512xf32>
    %320 = vector.shape_cast %319 : vector<1x1x512xf32> to vector<1x512xf32>
    %c27_342 = arith.constant 27 : index
    %c0_343 = arith.constant 0 : index
    %321 = vector.load %arg18[%c27_342, %c0_343] : memref<64x512xf32, #tpu.memory_space<vmem>>, vector<1x512xf32>
    tpu.vector_store %arg18[%c27_342, %c0_343], %320 {strides = array<i32>} : memref<64x512xf32, #tpu.memory_space<vmem>>, vector<1x512xf32>,
    %c3_344 = arith.constant 3 : index
    %c4_345 = arith.constant 4 : index
    %322 = memref.load %arg3[%c3_344, %c4_345] : memref<8x8xi32, #tpu.memory_space<smem>>
    %323 = arith.index_cast %322 : i32 to index
    %c0_346 = arith.constant 0 : index
    %c0_347 = arith.constant 0 : index
    %324 = vector.load %arg6[%323, %c0_346, %c0_347] : memref<64x1x512xf32, #tpu.memory_space<vmem>>, vector<1x1x512xf32>
    %325 = vector.shape_cast %324 : vector<1x1x512xf32> to vector<1x512xf32>
    %c35 = arith.constant 35 : index
    %c0_348 = arith.constant 0 : index
    %326 = vector.load %arg17[%c35, %c0_348] : memref<64x512xf32, #tpu.memory_space<vmem>>, vector<1x512xf32>
    tpu.vector_store %arg17[%c35, %c0_348], %325 {strides = array<i32>} : memref<64x512xf32, #tpu.memory_space<vmem>>, vector<1x512xf32>,
    %c3_349 = arith.constant 3 : index
    %c4_350 = arith.constant 4 : index
    %327 = memref.load %arg4[%c3_349, %c4_350] : memref<8x8xi32, #tpu.memory_space<smem>>
    %328 = arith.index_cast %327 : i32 to index
    %c0_351 = arith.constant 0 : index
    %c0_352 = arith.constant 0 : index
    %329 = vector.load %arg7[%328, %c0_351, %c0_352] : memref<17x1x512xf32, #tpu.memory_space<vmem>>, vector<1x1x512xf32>
    %330 = vector.shape_cast %329 : vector<1x1x512xf32> to vector<1x512xf32>
    %c35_353 = arith.constant 35 : index
    %c0_354 = arith.constant 0 : index
    %331 = vector.load %arg18[%c35_353, %c0_354] : memref<64x512xf32, #tpu.memory_space<vmem>>, vector<1x512xf32>
    tpu.vector_store %arg18[%c35_353, %c0_354], %330 {strides = array<i32>} : memref<64x512xf32, #tpu.memory_space<vmem>>, vector<1x512xf32>,
    %c3_355 = arith.constant 3 : index
    %c5_356 = arith.constant 5 : index
    %332 = memref.load %arg3[%c3_355, %c5_356] : memref<8x8xi32, #tpu.memory_space<smem>>
    %333 = arith.index_cast %332 : i32 to index
    %c0_357 = arith.constant 0 : index
    %c0_358 = arith.constant 0 : index
    %334 = vector.load %arg6[%333, %c0_357, %c0_358] : memref<64x1x512xf32, #tpu.memory_space<vmem>>, vector<1x1x512xf32>
    %335 = vector.shape_cast %334 : vector<1x1x512xf32> to vector<1x512xf32>
    %c43 = arith.constant 43 : index
    %c0_359 = arith.constant 0 : index
    %336 = vector.load %arg17[%c43, %c0_359] : memref<64x512xf32, #tpu.memory_space<vmem>>, vector<1x512xf32>
    tpu.vector_store %arg17[%c43, %c0_359], %335 {strides = array<i32>} : memref<64x512xf32, #tpu.memory_space<vmem>>, vector<1x512xf32>,
    %c3_360 = arith.constant 3 : index
    %c5_361 = arith.constant 5 : index
    %337 = memref.load %arg4[%c3_360, %c5_361] : memref<8x8xi32, #tpu.memory_space<smem>>
    %338 = arith.index_cast %337 : i32 to index
    %c0_362 = arith.constant 0 : index
    %c0_363 = arith.constant 0 : index
    %339 = vector.load %arg7[%338, %c0_362, %c0_363] : memref<17x1x512xf32, #tpu.memory_space<vmem>>, vector<1x1x512xf32>
    %340 = vector.shape_cast %339 : vector<1x1x512xf32> to vector<1x512xf32>
    %c43_364 = arith.constant 43 : index
    %c0_365 = arith.constant 0 : index
    %341 = vector.load %arg18[%c43_364, %c0_365] : memref<64x512xf32, #tpu.memory_space<vmem>>, vector<1x512xf32>
    tpu.vector_store %arg18[%c43_364, %c0_365], %340 {strides = array<i32>} : memref<64x512xf32, #tpu.memory_space<vmem>>, vector<1x512xf32>,
    %c3_366 = arith.constant 3 : index
    %c6_367 = arith.constant 6 : index
    %342 = memref.load %arg3[%c3_366, %c6_367] : memref<8x8xi32, #tpu.memory_space<smem>>
    %343 = arith.index_cast %342 : i32 to index
    %c0_368 = arith.constant 0 : index
    %c0_369 = arith.constant 0 : index
    %344 = vector.load %arg6[%343, %c0_368, %c0_369] : memref<64x1x512xf32, #tpu.memory_space<vmem>>, vector<1x1x512xf32>
    %345 = vector.shape_cast %344 : vector<1x1x512xf32> to vector<1x512xf32>
    %c51 = arith.constant 51 : index
    %c0_370 = arith.constant 0 : index
    %346 = vector.load %arg17[%c51, %c0_370] : memref<64x512xf32, #tpu.memory_space<vmem>>, vector<1x512xf32>
    tpu.vector_store %arg17[%c51, %c0_370], %345 {strides = array<i32>} : memref<64x512xf32, #tpu.memory_space<vmem>>, vector<1x512xf32>,
    %c3_371 = arith.constant 3 : index
    %c6_372 = arith.constant 6 : index
    %347 = memref.load %arg4[%c3_371, %c6_372] : memref<8x8xi32, #tpu.memory_space<smem>>
    %348 = arith.index_cast %347 : i32 to index
    %c0_373 = arith.constant 0 : index
    %c0_374 = arith.constant 0 : index
    %349 = vector.load %arg7[%348, %c0_373, %c0_374] : memref<17x1x512xf32, #tpu.memory_space<vmem>>, vector<1x1x512xf32>
    %350 = vector.shape_cast %349 : vector<1x1x512xf32> to vector<1x512xf32>
    %c51_375 = arith.constant 51 : index
    %c0_376 = arith.constant 0 : index
    %351 = vector.load %arg18[%c51_375, %c0_376] : memref<64x512xf32, #tpu.memory_space<vmem>>, vector<1x512xf32>
    tpu.vector_store %arg18[%c51_375, %c0_376], %350 {strides = array<i32>} : memref<64x512xf32, #tpu.memory_space<vmem>>, vector<1x512xf32>,
    %c3_377 = arith.constant 3 : index
    %c7_378 = arith.constant 7 : index
    %352 = memref.load %arg3[%c3_377, %c7_378] : memref<8x8xi32, #tpu.memory_space<smem>>
    %353 = arith.index_cast %352 : i32 to index
    %c0_379 = arith.constant 0 : index
    %c0_380 = arith.constant 0 : index
    %354 = vector.load %arg6[%353, %c0_379, %c0_380] : memref<64x1x512xf32, #tpu.memory_space<vmem>>, vector<1x1x512xf32>
    %355 = vector.shape_cast %354 : vector<1x1x512xf32> to vector<1x512xf32>
    %c59 = arith.constant 59 : index
    %c0_381 = arith.constant 0 : index
    %356 = vector.load %arg17[%c59, %c0_381] : memref<64x512xf32, #tpu.memory_space<vmem>>, vector<1x512xf32>
    tpu.vector_store %arg17[%c59, %c0_381], %355 {strides = array<i32>} : memref<64x512xf32, #tpu.memory_space<vmem>>, vector<1x512xf32>,
    %c3_382 = arith.constant 3 : index
    %c7_383 = arith.constant 7 : index
    %357 = memref.load %arg4[%c3_382, %c7_383] : memref<8x8xi32, #tpu.memory_space<smem>>
    %358 = arith.index_cast %357 : i32 to index
    %c0_384 = arith.constant 0 : index
    %c0_385 = arith.constant 0 : index
    %359 = vector.load %arg7[%358, %c0_384, %c0_385] : memref<17x1x512xf32, #tpu.memory_space<vmem>>, vector<1x1x512xf32>
    %360 = vector.shape_cast %359 : vector<1x1x512xf32> to vector<1x512xf32>
    %c59_386 = arith.constant 59 : index
    %c0_387 = arith.constant 0 : index
    %361 = vector.load %arg18[%c59_386, %c0_387] : memref<64x512xf32, #tpu.memory_space<vmem>>, vector<1x512xf32>
    tpu.vector_store %arg18[%c59_386, %c0_387], %360 {strides = array<i32>} : memref<64x512xf32, #tpu.memory_space<vmem>>, vector<1x512xf32>,
    %c4_388 = arith.constant 4 : index
    %362 = memref.load %arg1[%c4_388] : memref<8xi32, #tpu.memory_space<smem>>
    %363 = arith.index_cast %362 : i32 to index
    %c0_389 = arith.constant 0 : index
    %c0_390 = arith.constant 0 : index
    %364 = vector.load %arg5[%363, %c0_389, %c0_390] : memref<32x1x512xf32, #tpu.memory_space<vmem>>, vector<1x1x512xf32>
    %365 = vector.shape_cast %364 : vector<1x1x512xf32> to vector<1x512xf32>
    %c4_391 = arith.constant 4 : index
    %c0_392 = arith.constant 0 : index
    %366 = vector.load %arg15[%c4_391, %c0_392] : memref<8x512xf32, #tpu.memory_space<vmem>>, vector<1x512xf32>
    tpu.vector_store %arg15[%c4_391, %c0_392], %365 {strides = array<i32>} : memref<8x512xf32, #tpu.memory_space<vmem>>, vector<1x512xf32>,
    %c4_393 = arith.constant 4 : index
    %367 = memref.load %arg2[%c4_393] : memref<8xi32, #tpu.memory_space<smem>>
    %368 = arith.index_cast %367 : i32 to index
    %c0_394 = arith.constant 0 : index
    %c0_395 = arith.constant 0 : index
    %369 = vector.load %arg6[%368, %c0_394, %c0_395] : memref<64x1x512xf32, #tpu.memory_space<vmem>>, vector<1x1x512xf32>
    %370 = vector.shape_cast %369 : vector<1x1x512xf32> to vector<1x512xf32>
    %c4_396 = arith.constant 4 : index
    %c0_397 = arith.constant 0 : index
    %371 = vector.load %arg16[%c4_396, %c0_397] : memref<8x512xf32, #tpu.memory_space<vmem>>, vector<1x512xf32>
    tpu.vector_store %arg16[%c4_396, %c0_397], %370 {strides = array<i32>} : memref<8x512xf32, #tpu.memory_space<vmem>>, vector<1x512xf32>,
    %c4_398 = arith.constant 4 : index
    %c0_399 = arith.constant 0 : index
    %372 = memref.load %arg3[%c4_398, %c0_399] : memref<8x8xi32, #tpu.memory_space<smem>>
    %373 = arith.index_cast %372 : i32 to index
    %c0_400 = arith.constant 0 : index
    %c0_401 = arith.constant 0 : index
    %374 = vector.load %arg6[%373, %c0_400, %c0_401] : memref<64x1x512xf32, #tpu.memory_space<vmem>>, vector<1x1x512xf32>
    %375 = vector.shape_cast %374 : vector<1x1x512xf32> to vector<1x512xf32>
    %c4_402 = arith.constant 4 : index
    %c0_403 = arith.constant 0 : index
    %376 = vector.load %arg17[%c4_402, %c0_403] : memref<64x512xf32, #tpu.memory_space<vmem>>, vector<1x512xf32>
    tpu.vector_store %arg17[%c4_402, %c0_403], %375 {strides = array<i32>} : memref<64x512xf32, #tpu.memory_space<vmem>>, vector<1x512xf32>,
    %c4_404 = arith.constant 4 : index
    %c0_405 = arith.constant 0 : index
    %377 = memref.load %arg4[%c4_404, %c0_405] : memref<8x8xi32, #tpu.memory_space<smem>>
    %378 = arith.index_cast %377 : i32 to index
    %c0_406 = arith.constant 0 : index
    %c0_407 = arith.constant 0 : index
    %379 = vector.load %arg7[%378, %c0_406, %c0_407] : memref<17x1x512xf32, #tpu.memory_space<vmem>>, vector<1x1x512xf32>
    %380 = vector.shape_cast %379 : vector<1x1x512xf32> to vector<1x512xf32>
    %c4_408 = arith.constant 4 : index
    %c0_409 = arith.constant 0 : index
    %381 = vector.load %arg18[%c4_408, %c0_409] : memref<64x512xf32, #tpu.memory_space<vmem>>, vector<1x512xf32>
    tpu.vector_store %arg18[%c4_408, %c0_409], %380 {strides = array<i32>} : memref<64x512xf32, #tpu.memory_space<vmem>>, vector<1x512xf32>,
    %c4_410 = arith.constant 4 : index
    %c1_411 = arith.constant 1 : index
    %382 = memref.load %arg3[%c4_410, %c1_411] : memref<8x8xi32, #tpu.memory_space<smem>>
    %383 = arith.index_cast %382 : i32 to index
    %c0_412 = arith.constant 0 : index
    %c0_413 = arith.constant 0 : index
    %384 = vector.load %arg6[%383, %c0_412, %c0_413] : memref<64x1x512xf32, #tpu.memory_space<vmem>>, vector<1x1x512xf32>
    %385 = vector.shape_cast %384 : vector<1x1x512xf32> to vector<1x512xf32>
    %c12 = arith.constant 12 : index
    %c0_414 = arith.constant 0 : index
    %386 = vector.load %arg17[%c12, %c0_414] : memref<64x512xf32, #tpu.memory_space<vmem>>, vector<1x512xf32>
    tpu.vector_store %arg17[%c12, %c0_414], %385 {strides = array<i32>} : memref<64x512xf32, #tpu.memory_space<vmem>>, vector<1x512xf32>,
    %c4_415 = arith.constant 4 : index
    %c1_416 = arith.constant 1 : index
    %387 = memref.load %arg4[%c4_415, %c1_416] : memref<8x8xi32, #tpu.memory_space<smem>>
    %388 = arith.index_cast %387 : i32 to index
    %c0_417 = arith.constant 0 : index
    %c0_418 = arith.constant 0 : index
    %389 = vector.load %arg7[%388, %c0_417, %c0_418] : memref<17x1x512xf32, #tpu.memory_space<vmem>>, vector<1x1x512xf32>
    %390 = vector.shape_cast %389 : vector<1x1x512xf32> to vector<1x512xf32>
    %c12_419 = arith.constant 12 : index
    %c0_420 = arith.constant 0 : index
    %391 = vector.load %arg18[%c12_419, %c0_420] : memref<64x512xf32, #tpu.memory_space<vmem>>, vector<1x512xf32>
    tpu.vector_store %arg18[%c12_419, %c0_420], %390 {strides = array<i32>} : memref<64x512xf32, #tpu.memory_space<vmem>>, vector<1x512xf32>,
    %c4_421 = arith.constant 4 : index
    %c2_422 = arith.constant 2 : index
    %392 = memref.load %arg3[%c4_421, %c2_422] : memref<8x8xi32, #tpu.memory_space<smem>>
    %393 = arith.index_cast %392 : i32 to index
    %c0_423 = arith.constant 0 : index
    %c0_424 = arith.constant 0 : index
    %394 = vector.load %arg6[%393, %c0_423, %c0_424] : memref<64x1x512xf32, #tpu.memory_space<vmem>>, vector<1x1x512xf32>
    %395 = vector.shape_cast %394 : vector<1x1x512xf32> to vector<1x512xf32>
    %c20 = arith.constant 20 : index
    %c0_425 = arith.constant 0 : index
    %396 = vector.load %arg17[%c20, %c0_425] : memref<64x512xf32, #tpu.memory_space<vmem>>, vector<1x512xf32>
    tpu.vector_store %arg17[%c20, %c0_425], %395 {strides = array<i32>} : memref<64x512xf32, #tpu.memory_space<vmem>>, vector<1x512xf32>,
    %c4_426 = arith.constant 4 : index
    %c2_427 = arith.constant 2 : index
    %397 = memref.load %arg4[%c4_426, %c2_427] : memref<8x8xi32, #tpu.memory_space<smem>>
    %398 = arith.index_cast %397 : i32 to index
    %c0_428 = arith.constant 0 : index
    %c0_429 = arith.constant 0 : index
    %399 = vector.load %arg7[%398, %c0_428, %c0_429] : memref<17x1x512xf32, #tpu.memory_space<vmem>>, vector<1x1x512xf32>
    %400 = vector.shape_cast %399 : vector<1x1x512xf32> to vector<1x512xf32>
    %c20_430 = arith.constant 20 : index
    %c0_431 = arith.constant 0 : index
    %401 = vector.load %arg18[%c20_430, %c0_431] : memref<64x512xf32, #tpu.memory_space<vmem>>, vector<1x512xf32>
    tpu.vector_store %arg18[%c20_430, %c0_431], %400 {strides = array<i32>} : memref<64x512xf32, #tpu.memory_space<vmem>>, vector<1x512xf32>,
    %c4_432 = arith.constant 4 : index
    %c3_433 = arith.constant 3 : index
    %402 = memref.load %arg3[%c4_432, %c3_433] : memref<8x8xi32, #tpu.memory_space<smem>>
    %403 = arith.index_cast %402 : i32 to index
    %c0_434 = arith.constant 0 : index
    %c0_435 = arith.constant 0 : index
    %404 = vector.load %arg6[%403, %c0_434, %c0_435] : memref<64x1x512xf32, #tpu.memory_space<vmem>>, vector<1x1x512xf32>
    %405 = vector.shape_cast %404 : vector<1x1x512xf32> to vector<1x512xf32>
    %c28 = arith.constant 28 : index
    %c0_436 = arith.constant 0 : index
    %406 = vector.load %arg17[%c28, %c0_436] : memref<64x512xf32, #tpu.memory_space<vmem>>, vector<1x512xf32>
    tpu.vector_store %arg17[%c28, %c0_436], %405 {strides = array<i32>} : memref<64x512xf32, #tpu.memory_space<vmem>>, vector<1x512xf32>,
    %c4_437 = arith.constant 4 : index
    %c3_438 = arith.constant 3 : index
    %407 = memref.load %arg4[%c4_437, %c3_438] : memref<8x8xi32, #tpu.memory_space<smem>>
    %408 = arith.index_cast %407 : i32 to index
    %c0_439 = arith.constant 0 : index
    %c0_440 = arith.constant 0 : index
    %409 = vector.load %arg7[%408, %c0_439, %c0_440] : memref<17x1x512xf32, #tpu.memory_space<vmem>>, vector<1x1x512xf32>
    %410 = vector.shape_cast %409 : vector<1x1x512xf32> to vector<1x512xf32>
    %c28_441 = arith.constant 28 : index
    %c0_442 = arith.constant 0 : index
    %411 = vector.load %arg18[%c28_441, %c0_442] : memref<64x512xf32, #tpu.memory_space<vmem>>, vector<1x512xf32>
    tpu.vector_store %arg18[%c28_441, %c0_442], %410 {strides = array<i32>} : memref<64x512xf32, #tpu.memory_space<vmem>>, vector<1x512xf32>,
    %c4_443 = arith.constant 4 : index
    %c4_444 = arith.constant 4 : index
    %412 = memref.load %arg3[%c4_443, %c4_444] : memref<8x8xi32, #tpu.memory_space<smem>>
    %413 = arith.index_cast %412 : i32 to index
    %c0_445 = arith.constant 0 : index
    %c0_446 = arith.constant 0 : index
    %414 = vector.load %arg6[%413, %c0_445, %c0_446] : memref<64x1x512xf32, #tpu.memory_space<vmem>>, vector<1x1x512xf32>
    %415 = vector.shape_cast %414 : vector<1x1x512xf32> to vector<1x512xf32>
    %c36 = arith.constant 36 : index
    %c0_447 = arith.constant 0 : index
    %416 = vector.load %arg17[%c36, %c0_447] : memref<64x512xf32, #tpu.memory_space<vmem>>, vector<1x512xf32>
    tpu.vector_store %arg17[%c36, %c0_447], %415 {strides = array<i32>} : memref<64x512xf32, #tpu.memory_space<vmem>>, vector<1x512xf32>,
    %c4_448 = arith.constant 4 : index
    %c4_449 = arith.constant 4 : index
    %417 = memref.load %arg4[%c4_448, %c4_449] : memref<8x8xi32, #tpu.memory_space<smem>>
    %418 = arith.index_cast %417 : i32 to index
    %c0_450 = arith.constant 0 : index
    %c0_451 = arith.constant 0 : index
    %419 = vector.load %arg7[%418, %c0_450, %c0_451] : memref<17x1x512xf32, #tpu.memory_space<vmem>>, vector<1x1x512xf32>
    %420 = vector.shape_cast %419 : vector<1x1x512xf32> to vector<1x512xf32>
    %c36_452 = arith.constant 36 : index
    %c0_453 = arith.constant 0 : index
    %421 = vector.load %arg18[%c36_452, %c0_453] : memref<64x512xf32, #tpu.memory_space<vmem>>, vector<1x512xf32>
    tpu.vector_store %arg18[%c36_452, %c0_453], %420 {strides = array<i32>} : memref<64x512xf32, #tpu.memory_space<vmem>>, vector<1x512xf32>,
    %c4_454 = arith.constant 4 : index
    %c5_455 = arith.constant 5 : index
    %422 = memref.load %arg3[%c4_454, %c5_455] : memref<8x8xi32, #tpu.memory_space<smem>>
    %423 = arith.index_cast %422 : i32 to index
    %c0_456 = arith.constant 0 : index
    %c0_457 = arith.constant 0 : index
    %424 = vector.load %arg6[%423, %c0_456, %c0_457] : memref<64x1x512xf32, #tpu.memory_space<vmem>>, vector<1x1x512xf32>
    %425 = vector.shape_cast %424 : vector<1x1x512xf32> to vector<1x512xf32>
    %c44 = arith.constant 44 : index
    %c0_458 = arith.constant 0 : index
    %426 = vector.load %arg17[%c44, %c0_458] : memref<64x512xf32, #tpu.memory_space<vmem>>, vector<1x512xf32>
    tpu.vector_store %arg17[%c44, %c0_458], %425 {strides = array<i32>} : memref<64x512xf32, #tpu.memory_space<vmem>>, vector<1x512xf32>,
    %c4_459 = arith.constant 4 : index
    %c5_460 = arith.constant 5 : index
    %427 = memref.load %arg4[%c4_459, %c5_460] : memref<8x8xi32, #tpu.memory_space<smem>>
    %428 = arith.index_cast %427 : i32 to index
    %c0_461 = arith.constant 0 : index
    %c0_462 = arith.constant 0 : index
    %429 = vector.load %arg7[%428, %c0_461, %c0_462] : memref<17x1x512xf32, #tpu.memory_space<vmem>>, vector<1x1x512xf32>
    %430 = vector.shape_cast %429 : vector<1x1x512xf32> to vector<1x512xf32>
    %c44_463 = arith.constant 44 : index
    %c0_464 = arith.constant 0 : index
    %431 = vector.load %arg18[%c44_463, %c0_464] : memref<64x512xf32, #tpu.memory_space<vmem>>, vector<1x512xf32>
    tpu.vector_store %arg18[%c44_463, %c0_464], %430 {strides = array<i32>} : memref<64x512xf32, #tpu.memory_space<vmem>>, vector<1x512xf32>,
    %c4_465 = arith.constant 4 : index
    %c6_466 = arith.constant 6 : index
    %432 = memref.load %arg3[%c4_465, %c6_466] : memref<8x8xi32, #tpu.memory_space<smem>>
    %433 = arith.index_cast %432 : i32 to index
    %c0_467 = arith.constant 0 : index
    %c0_468 = arith.constant 0 : index
    %434 = vector.load %arg6[%433, %c0_467, %c0_468] : memref<64x1x512xf32, #tpu.memory_space<vmem>>, vector<1x1x512xf32>
    %435 = vector.shape_cast %434 : vector<1x1x512xf32> to vector<1x512xf32>
    %c52 = arith.constant 52 : index
    %c0_469 = arith.constant 0 : index
    %436 = vector.load %arg17[%c52, %c0_469] : memref<64x512xf32, #tpu.memory_space<vmem>>, vector<1x512xf32>
    tpu.vector_store %arg17[%c52, %c0_469], %435 {strides = array<i32>} : memref<64x512xf32, #tpu.memory_space<vmem>>, vector<1x512xf32>,
    %c4_470 = arith.constant 4 : index
    %c6_471 = arith.constant 6 : index
    %437 = memref.load %arg4[%c4_470, %c6_471] : memref<8x8xi32, #tpu.memory_space<smem>>
    %438 = arith.index_cast %437 : i32 to index
    %c0_472 = arith.constant 0 : index
    %c0_473 = arith.constant 0 : index
    %439 = vector.load %arg7[%438, %c0_472, %c0_473] : memref<17x1x512xf32, #tpu.memory_space<vmem>>, vector<1x1x512xf32>
    %440 = vector.shape_cast %439 : vector<1x1x512xf32> to vector<1x512xf32>
    %c52_474 = arith.constant 52 : index
    %c0_475 = arith.constant 0 : index
    %441 = vector.load %arg18[%c52_474, %c0_475] : memref<64x512xf32, #tpu.memory_space<vmem>>, vector<1x512xf32>
    tpu.vector_store %arg18[%c52_474, %c0_475], %440 {strides = array<i32>} : memref<64x512xf32, #tpu.memory_space<vmem>>, vector<1x512xf32>,
    %c4_476 = arith.constant 4 : index
    %c7_477 = arith.constant 7 : index
    %442 = memref.load %arg3[%c4_476, %c7_477] : memref<8x8xi32, #tpu.memory_space<smem>>
    %443 = arith.index_cast %442 : i32 to index
    %c0_478 = arith.constant 0 : index
    %c0_479 = arith.constant 0 : index
    %444 = vector.load %arg6[%443, %c0_478, %c0_479] : memref<64x1x512xf32, #tpu.memory_space<vmem>>, vector<1x1x512xf32>
    %445 = vector.shape_cast %444 : vector<1x1x512xf32> to vector<1x512xf32>
    %c60 = arith.constant 60 : index
    %c0_480 = arith.constant 0 : index
    %446 = vector.load %arg17[%c60, %c0_480] : memref<64x512xf32, #tpu.memory_space<vmem>>, vector<1x512xf32>
    tpu.vector_store %arg17[%c60, %c0_480], %445 {strides = array<i32>} : memref<64x512xf32, #tpu.memory_space<vmem>>, vector<1x512xf32>,
    %c4_481 = arith.constant 4 : index
    %c7_482 = arith.constant 7 : index
    %447 = memref.load %arg4[%c4_481, %c7_482] : memref<8x8xi32, #tpu.memory_space<smem>>
    %448 = arith.index_cast %447 : i32 to index
    %c0_483 = arith.constant 0 : index
    %c0_484 = arith.constant 0 : index
    %449 = vector.load %arg7[%448, %c0_483, %c0_484] : memref<17x1x512xf32, #tpu.memory_space<vmem>>, vector<1x1x512xf32>
    %450 = vector.shape_cast %449 : vector<1x1x512xf32> to vector<1x512xf32>
    %c60_485 = arith.constant 60 : index
    %c0_486 = arith.constant 0 : index
    %451 = vector.load %arg18[%c60_485, %c0_486] : memref<64x512xf32, #tpu.memory_space<vmem>>, vector<1x512xf32>
    tpu.vector_store %arg18[%c60_485, %c0_486], %450 {strides = array<i32>} : memref<64x512xf32, #tpu.memory_space<vmem>>, vector<1x512xf32>,
    %c5_487 = arith.constant 5 : index
    %452 = memref.load %arg1[%c5_487] : memref<8xi32, #tpu.memory_space<smem>>
    %453 = arith.index_cast %452 : i32 to index
    %c0_488 = arith.constant 0 : index
    %c0_489 = arith.constant 0 : index
    %454 = vector.load %arg5[%453, %c0_488, %c0_489] : memref<32x1x512xf32, #tpu.memory_space<vmem>>, vector<1x1x512xf32>
    %455 = vector.shape_cast %454 : vector<1x1x512xf32> to vector<1x512xf32>
    %c5_490 = arith.constant 5 : index
    %c0_491 = arith.constant 0 : index
    %456 = vector.load %arg15[%c5_490, %c0_491] : memref<8x512xf32, #tpu.memory_space<vmem>>, vector<1x512xf32>
    tpu.vector_store %arg15[%c5_490, %c0_491], %455 {strides = array<i32>} : memref<8x512xf32, #tpu.memory_space<vmem>>, vector<1x512xf32>,
    %c5_492 = arith.constant 5 : index
    %457 = memref.load %arg2[%c5_492] : memref<8xi32, #tpu.memory_space<smem>>
    %458 = arith.index_cast %457 : i32 to index
    %c0_493 = arith.constant 0 : index
    %c0_494 = arith.constant 0 : index
    %459 = vector.load %arg6[%458, %c0_493, %c0_494] : memref<64x1x512xf32, #tpu.memory_space<vmem>>, vector<1x1x512xf32>
    %460 = vector.shape_cast %459 : vector<1x1x512xf32> to vector<1x512xf32>
    %c5_495 = arith.constant 5 : index
    %c0_496 = arith.constant 0 : index
    %461 = vector.load %arg16[%c5_495, %c0_496] : memref<8x512xf32, #tpu.memory_space<vmem>>, vector<1x512xf32>
    tpu.vector_store %arg16[%c5_495, %c0_496], %460 {strides = array<i32>} : memref<8x512xf32, #tpu.memory_space<vmem>>, vector<1x512xf32>,
    %c5_497 = arith.constant 5 : index
    %c0_498 = arith.constant 0 : index
    %462 = memref.load %arg3[%c5_497, %c0_498] : memref<8x8xi32, #tpu.memory_space<smem>>
    %463 = arith.index_cast %462 : i32 to index
    %c0_499 = arith.constant 0 : index
    %c0_500 = arith.constant 0 : index
    %464 = vector.load %arg6[%463, %c0_499, %c0_500] : memref<64x1x512xf32, #tpu.memory_space<vmem>>, vector<1x1x512xf32>
    %465 = vector.shape_cast %464 : vector<1x1x512xf32> to vector<1x512xf32>
    %c5_501 = arith.constant 5 : index
    %c0_502 = arith.constant 0 : index
    %466 = vector.load %arg17[%c5_501, %c0_502] : memref<64x512xf32, #tpu.memory_space<vmem>>, vector<1x512xf32>
    tpu.vector_store %arg17[%c5_501, %c0_502], %465 {strides = array<i32>} : memref<64x512xf32, #tpu.memory_space<vmem>>, vector<1x512xf32>,
    %c5_503 = arith.constant 5 : index
    %c0_504 = arith.constant 0 : index
    %467 = memref.load %arg4[%c5_503, %c0_504] : memref<8x8xi32, #tpu.memory_space<smem>>
    %468 = arith.index_cast %467 : i32 to index
    %c0_505 = arith.constant 0 : index
    %c0_506 = arith.constant 0 : index
    %469 = vector.load %arg7[%468, %c0_505, %c0_506] : memref<17x1x512xf32, #tpu.memory_space<vmem>>, vector<1x1x512xf32>
    %470 = vector.shape_cast %469 : vector<1x1x512xf32> to vector<1x512xf32>
    %c5_507 = arith.constant 5 : index
    %c0_508 = arith.constant 0 : index
    %471 = vector.load %arg18[%c5_507, %c0_508] : memref<64x512xf32, #tpu.memory_space<vmem>>, vector<1x512xf32>
    tpu.vector_store %arg18[%c5_507, %c0_508], %470 {strides = array<i32>} : memref<64x512xf32, #tpu.memory_space<vmem>>, vector<1x512xf32>,
    %c5_509 = arith.constant 5 : index
    %c1_510 = arith.constant 1 : index
    %472 = memref.load %arg3[%c5_509, %c1_510] : memref<8x8xi32, #tpu.memory_space<smem>>
    %473 = arith.index_cast %472 : i32 to index
    %c0_511 = arith.constant 0 : index
    %c0_512 = arith.constant 0 : index
    %474 = vector.load %arg6[%473, %c0_511, %c0_512] : memref<64x1x512xf32, #tpu.memory_space<vmem>>, vector<1x1x512xf32>
    %475 = vector.shape_cast %474 : vector<1x1x512xf32> to vector<1x512xf32>
    %c13 = arith.constant 13 : index
    %c0_513 = arith.constant 0 : index
    %476 = vector.load %arg17[%c13, %c0_513] : memref<64x512xf32, #tpu.memory_space<vmem>>, vector<1x512xf32>
    tpu.vector_store %arg17[%c13, %c0_513], %475 {strides = array<i32>} : memref<64x512xf32, #tpu.memory_space<vmem>>, vector<1x512xf32>,
    %c5_514 = arith.constant 5 : index
    %c1_515 = arith.constant 1 : index
    %477 = memref.load %arg4[%c5_514, %c1_515] : memref<8x8xi32, #tpu.memory_space<smem>>
    %478 = arith.index_cast %477 : i32 to index
    %c0_516 = arith.constant 0 : index
    %c0_517 = arith.constant 0 : index
    %479 = vector.load %arg7[%478, %c0_516, %c0_517] : memref<17x1x512xf32, #tpu.memory_space<vmem>>, vector<1x1x512xf32>
    %480 = vector.shape_cast %479 : vector<1x1x512xf32> to vector<1x512xf32>
    %c13_518 = arith.constant 13 : index
    %c0_519 = arith.constant 0 : index
    %481 = vector.load %arg18[%c13_518, %c0_519] : memref<64x512xf32, #tpu.memory_space<vmem>>, vector<1x512xf32>
    tpu.vector_store %arg18[%c13_518, %c0_519], %480 {strides = array<i32>} : memref<64x512xf32, #tpu.memory_space<vmem>>, vector<1x512xf32>,
    %c5_520 = arith.constant 5 : index
    %c2_521 = arith.constant 2 : index
    %482 = memref.load %arg3[%c5_520, %c2_521] : memref<8x8xi32, #tpu.memory_space<smem>>
    %483 = arith.index_cast %482 : i32 to index
    %c0_522 = arith.constant 0 : index
    %c0_523 = arith.constant 0 : index
    %484 = vector.load %arg6[%483, %c0_522, %c0_523] : memref<64x1x512xf32, #tpu.memory_space<vmem>>, vector<1x1x512xf32>
    %485 = vector.shape_cast %484 : vector<1x1x512xf32> to vector<1x512xf32>
    %c21 = arith.constant 21 : index
    %c0_524 = arith.constant 0 : index
    %486 = vector.load %arg17[%c21, %c0_524] : memref<64x512xf32, #tpu.memory_space<vmem>>, vector<1x512xf32>
    tpu.vector_store %arg17[%c21, %c0_524], %485 {strides = array<i32>} : memref<64x512xf32, #tpu.memory_space<vmem>>, vector<1x512xf32>,
    %c5_525 = arith.constant 5 : index
    %c2_526 = arith.constant 2 : index
    %487 = memref.load %arg4[%c5_525, %c2_526] : memref<8x8xi32, #tpu.memory_space<smem>>
    %488 = arith.index_cast %487 : i32 to index
    %c0_527 = arith.constant 0 : index
    %c0_528 = arith.constant 0 : index
    %489 = vector.load %arg7[%488, %c0_527, %c0_528] : memref<17x1x512xf32, #tpu.memory_space<vmem>>, vector<1x1x512xf32>
    %490 = vector.shape_cast %489 : vector<1x1x512xf32> to vector<1x512xf32>
    %c21_529 = arith.constant 21 : index
    %c0_530 = arith.constant 0 : index
    %491 = vector.load %arg18[%c21_529, %c0_530] : memref<64x512xf32, #tpu.memory_space<vmem>>, vector<1x512xf32>
    tpu.vector_store %arg18[%c21_529, %c0_530], %490 {strides = array<i32>} : memref<64x512xf32, #tpu.memory_space<vmem>>, vector<1x512xf32>,
    %c5_531 = arith.constant 5 : index
    %c3_532 = arith.constant 3 : index
    %492 = memref.load %arg3[%c5_531, %c3_532] : memref<8x8xi32, #tpu.memory_space<smem>>
    %493 = arith.index_cast %492 : i32 to index
    %c0_533 = arith.constant 0 : index
    %c0_534 = arith.constant 0 : index
    %494 = vector.load %arg6[%493, %c0_533, %c0_534] : memref<64x1x512xf32, #tpu.memory_space<vmem>>, vector<1x1x512xf32>
    %495 = vector.shape_cast %494 : vector<1x1x512xf32> to vector<1x512xf32>
    %c29 = arith.constant 29 : index
    %c0_535 = arith.constant 0 : index
    %496 = vector.load %arg17[%c29, %c0_535] : memref<64x512xf32, #tpu.memory_space<vmem>>, vector<1x512xf32>
    tpu.vector_store %arg17[%c29, %c0_535], %495 {strides = array<i32>} : memref<64x512xf32, #tpu.memory_space<vmem>>, vector<1x512xf32>,
    %c5_536 = arith.constant 5 : index
    %c3_537 = arith.constant 3 : index
    %497 = memref.load %arg4[%c5_536, %c3_537] : memref<8x8xi32, #tpu.memory_space<smem>>
    %498 = arith.index_cast %497 : i32 to index
    %c0_538 = arith.constant 0 : index
    %c0_539 = arith.constant 0 : index
    %499 = vector.load %arg7[%498, %c0_538, %c0_539] : memref<17x1x512xf32, #tpu.memory_space<vmem>>, vector<1x1x512xf32>
    %500 = vector.shape_cast %499 : vector<1x1x512xf32> to vector<1x512xf32>
    %c29_540 = arith.constant 29 : index
    %c0_541 = arith.constant 0 : index
    %501 = vector.load %arg18[%c29_540, %c0_541] : memref<64x512xf32, #tpu.memory_space<vmem>>, vector<1x512xf32>
    tpu.vector_store %arg18[%c29_540, %c0_541], %500 {strides = array<i32>} : memref<64x512xf32, #tpu.memory_space<vmem>>, vector<1x512xf32>,
    %c5_542 = arith.constant 5 : index
    %c4_543 = arith.constant 4 : index
    %502 = memref.load %arg3[%c5_542, %c4_543] : memref<8x8xi32, #tpu.memory_space<smem>>
    %503 = arith.index_cast %502 : i32 to index
    %c0_544 = arith.constant 0 : index
    %c0_545 = arith.constant 0 : index
    %504 = vector.load %arg6[%503, %c0_544, %c0_545] : memref<64x1x512xf32, #tpu.memory_space<vmem>>, vector<1x1x512xf32>
    %505 = vector.shape_cast %504 : vector<1x1x512xf32> to vector<1x512xf32>
    %c37 = arith.constant 37 : index
    %c0_546 = arith.constant 0 : index
    %506 = vector.load %arg17[%c37, %c0_546] : memref<64x512xf32, #tpu.memory_space<vmem>>, vector<1x512xf32>
    tpu.vector_store %arg17[%c37, %c0_546], %505 {strides = array<i32>} : memref<64x512xf32, #tpu.memory_space<vmem>>, vector<1x512xf32>,
    %c5_547 = arith.constant 5 : index
    %c4_548 = arith.constant 4 : index
    %507 = memref.load %arg4[%c5_547, %c4_548] : memref<8x8xi32, #tpu.memory_space<smem>>
    %508 = arith.index_cast %507 : i32 to index
    %c0_549 = arith.constant 0 : index
    %c0_550 = arith.constant 0 : index
    %509 = vector.load %arg7[%508, %c0_549, %c0_550] : memref<17x1x512xf32, #tpu.memory_space<vmem>>, vector<1x1x512xf32>
    %510 = vector.shape_cast %509 : vector<1x1x512xf32> to vector<1x512xf32>
    %c37_551 = arith.constant 37 : index
    %c0_552 = arith.constant 0 : index
    %511 = vector.load %arg18[%c37_551, %c0_552] : memref<64x512xf32, #tpu.memory_space<vmem>>, vector<1x512xf32>
    tpu.vector_store %arg18[%c37_551, %c0_552], %510 {strides = array<i32>} : memref<64x512xf32, #tpu.memory_space<vmem>>, vector<1x512xf32>,
    %c5_553 = arith.constant 5 : index
    %c5_554 = arith.constant 5 : index
    %512 = memref.load %arg3[%c5_553, %c5_554] : memref<8x8xi32, #tpu.memory_space<smem>>
    %513 = arith.index_cast %512 : i32 to index
    %c0_555 = arith.constant 0 : index
    %c0_556 = arith.constant 0 : index
    %514 = vector.load %arg6[%513, %c0_555, %c0_556] : memref<64x1x512xf32, #tpu.memory_space<vmem>>, vector<1x1x512xf32>
    %515 = vector.shape_cast %514 : vector<1x1x512xf32> to vector<1x512xf32>
    %c45 = arith.constant 45 : index
    %c0_557 = arith.constant 0 : index
    %516 = vector.load %arg17[%c45, %c0_557] : memref<64x512xf32, #tpu.memory_space<vmem>>, vector<1x512xf32>
    tpu.vector_store %arg17[%c45, %c0_557], %515 {strides = array<i32>} : memref<64x512xf32, #tpu.memory_space<vmem>>, vector<1x512xf32>,
    %c5_558 = arith.constant 5 : index
    %c5_559 = arith.constant 5 : index
    %517 = memref.load %arg4[%c5_558, %c5_559] : memref<8x8xi32, #tpu.memory_space<smem>>
    %518 = arith.index_cast %517 : i32 to index
    %c0_560 = arith.constant 0 : index
    %c0_561 = arith.constant 0 : index
    %519 = vector.load %arg7[%518, %c0_560, %c0_561] : memref<17x1x512xf32, #tpu.memory_space<vmem>>, vector<1x1x512xf32>
    %520 = vector.shape_cast %519 : vector<1x1x512xf32> to vector<1x512xf32>
    %c45_562 = arith.constant 45 : index
    %c0_563 = arith.constant 0 : index
    %521 = vector.load %arg18[%c45_562, %c0_563] : memref<64x512xf32, #tpu.memory_space<vmem>>, vector<1x512xf32>
    tpu.vector_store %arg18[%c45_562, %c0_563], %520 {strides = array<i32>} : memref<64x512xf32, #tpu.memory_space<vmem>>, vector<1x512xf32>,
    %c5_564 = arith.constant 5 : index
    %c6_565 = arith.constant 6 : index
    %522 = memref.load %arg3[%c5_564, %c6_565] : memref<8x8xi32, #tpu.memory_space<smem>>
    %523 = arith.index_cast %522 : i32 to index
    %c0_566 = arith.constant 0 : index
    %c0_567 = arith.constant 0 : index
    %524 = vector.load %arg6[%523, %c0_566, %c0_567] : memref<64x1x512xf32, #tpu.memory_space<vmem>>, vector<1x1x512xf32>
    %525 = vector.shape_cast %524 : vector<1x1x512xf32> to vector<1x512xf32>
    %c53 = arith.constant 53 : index
    %c0_568 = arith.constant 0 : index
    %526 = vector.load %arg17[%c53, %c0_568] : memref<64x512xf32, #tpu.memory_space<vmem>>, vector<1x512xf32>
    tpu.vector_store %arg17[%c53, %c0_568], %525 {strides = array<i32>} : memref<64x512xf32, #tpu.memory_space<vmem>>, vector<1x512xf32>,
    %c5_569 = arith.constant 5 : index
    %c6_570 = arith.constant 6 : index
    %527 = memref.load %arg4[%c5_569, %c6_570] : memref<8x8xi32, #tpu.memory_space<smem>>
    %528 = arith.index_cast %527 : i32 to index
    %c0_571 = arith.constant 0 : index
    %c0_572 = arith.constant 0 : index
    %529 = vector.load %arg7[%528, %c0_571, %c0_572] : memref<17x1x512xf32, #tpu.memory_space<vmem>>, vector<1x1x512xf32>
    %530 = vector.shape_cast %529 : vector<1x1x512xf32> to vector<1x512xf32>
    %c53_573 = arith.constant 53 : index
    %c0_574 = arith.constant 0 : index
    %531 = vector.load %arg18[%c53_573, %c0_574] : memref<64x512xf32, #tpu.memory_space<vmem>>, vector<1x512xf32>
    tpu.vector_store %arg18[%c53_573, %c0_574], %530 {strides = array<i32>} : memref<64x512xf32, #tpu.memory_space<vmem>>, vector<1x512xf32>,
    %c5_575 = arith.constant 5 : index
    %c7_576 = arith.constant 7 : index
    %532 = memref.load %arg3[%c5_575, %c7_576] : memref<8x8xi32, #tpu.memory_space<smem>>
    %533 = arith.index_cast %532 : i32 to index
    %c0_577 = arith.constant 0 : index
    %c0_578 = arith.constant 0 : index
    %534 = vector.load %arg6[%533, %c0_577, %c0_578] : memref<64x1x512xf32, #tpu.memory_space<vmem>>, vector<1x1x512xf32>
    %535 = vector.shape_cast %534 : vector<1x1x512xf32> to vector<1x512xf32>
    %c61 = arith.constant 61 : index
    %c0_579 = arith.constant 0 : index
    %536 = vector.load %arg17[%c61, %c0_579] : memref<64x512xf32, #tpu.memory_space<vmem>>, vector<1x512xf32>
    tpu.vector_store %arg17[%c61, %c0_579], %535 {strides = array<i32>} : memref<64x512xf32, #tpu.memory_space<vmem>>, vector<1x512xf32>,
    %c5_580 = arith.constant 5 : index
    %c7_581 = arith.constant 7 : index
    %537 = memref.load %arg4[%c5_580, %c7_581] : memref<8x8xi32, #tpu.memory_space<smem>>
    %538 = arith.index_cast %537 : i32 to index
    %c0_582 = arith.constant 0 : index
    %c0_583 = arith.constant 0 : index
    %539 = vector.load %arg7[%538, %c0_582, %c0_583] : memref<17x1x512xf32, #tpu.memory_space<vmem>>, vector<1x1x512xf32>
    %540 = vector.shape_cast %539 : vector<1x1x512xf32> to vector<1x512xf32>
    %c61_584 = arith.constant 61 : index
    %c0_585 = arith.constant 0 : index
    %541 = vector.load %arg18[%c61_584, %c0_585] : memref<64x512xf32, #tpu.memory_space<vmem>>, vector<1x512xf32>
    tpu.vector_store %arg18[%c61_584, %c0_585], %540 {strides = array<i32>} : memref<64x512xf32, #tpu.memory_space<vmem>>, vector<1x512xf32>,
    %c6_586 = arith.constant 6 : index
    %542 = memref.load %arg1[%c6_586] : memref<8xi32, #tpu.memory_space<smem>>
    %543 = arith.index_cast %542 : i32 to index
    %c0_587 = arith.constant 0 : index
    %c0_588 = arith.constant 0 : index
    %544 = vector.load %arg5[%543, %c0_587, %c0_588] : memref<32x1x512xf32, #tpu.memory_space<vmem>>, vector<1x1x512xf32>
    %545 = vector.shape_cast %544 : vector<1x1x512xf32> to vector<1x512xf32>
    %c6_589 = arith.constant 6 : index
    %c0_590 = arith.constant 0 : index
    %546 = vector.load %arg15[%c6_589, %c0_590] : memref<8x512xf32, #tpu.memory_space<vmem>>, vector<1x512xf32>
    tpu.vector_store %arg15[%c6_589, %c0_590], %545 {strides = array<i32>} : memref<8x512xf32, #tpu.memory_space<vmem>>, vector<1x512xf32>,
    %c6_591 = arith.constant 6 : index
    %547 = memref.load %arg2[%c6_591] : memref<8xi32, #tpu.memory_space<smem>>
    %548 = arith.index_cast %547 : i32 to index
    %c0_592 = arith.constant 0 : index
    %c0_593 = arith.constant 0 : index
    %549 = vector.load %arg6[%548, %c0_592, %c0_593] : memref<64x1x512xf32, #tpu.memory_space<vmem>>, vector<1x1x512xf32>
    %550 = vector.shape_cast %549 : vector<1x1x512xf32> to vector<1x512xf32>
    %c6_594 = arith.constant 6 : index
    %c0_595 = arith.constant 0 : index
    %551 = vector.load %arg16[%c6_594, %c0_595] : memref<8x512xf32, #tpu.memory_space<vmem>>, vector<1x512xf32>
    tpu.vector_store %arg16[%c6_594, %c0_595], %550 {strides = array<i32>} : memref<8x512xf32, #tpu.memory_space<vmem>>, vector<1x512xf32>,
    %c6_596 = arith.constant 6 : index
    %c0_597 = arith.constant 0 : index
    %552 = memref.load %arg3[%c6_596, %c0_597] : memref<8x8xi32, #tpu.memory_space<smem>>
    %553 = arith.index_cast %552 : i32 to index
    %c0_598 = arith.constant 0 : index
    %c0_599 = arith.constant 0 : index
    %554 = vector.load %arg6[%553, %c0_598, %c0_599] : memref<64x1x512xf32, #tpu.memory_space<vmem>>, vector<1x1x512xf32>
    %555 = vector.shape_cast %554 : vector<1x1x512xf32> to vector<1x512xf32>
    %c6_600 = arith.constant 6 : index
    %c0_601 = arith.constant 0 : index
    %556 = vector.load %arg17[%c6_600, %c0_601] : memref<64x512xf32, #tpu.memory_space<vmem>>, vector<1x512xf32>
    tpu.vector_store %arg17[%c6_600, %c0_601], %555 {strides = array<i32>} : memref<64x512xf32, #tpu.memory_space<vmem>>, vector<1x512xf32>,
    %c6_602 = arith.constant 6 : index
    %c0_603 = arith.constant 0 : index
    %557 = memref.load %arg4[%c6_602, %c0_603] : memref<8x8xi32, #tpu.memory_space<smem>>
    %558 = arith.index_cast %557 : i32 to index
    %c0_604 = arith.constant 0 : index
    %c0_605 = arith.constant 0 : index
    %559 = vector.load %arg7[%558, %c0_604, %c0_605] : memref<17x1x512xf32, #tpu.memory_space<vmem>>, vector<1x1x512xf32>
    %560 = vector.shape_cast %559 : vector<1x1x512xf32> to vector<1x512xf32>
    %c6_606 = arith.constant 6 : index
    %c0_607 = arith.constant 0 : index
    %561 = vector.load %arg18[%c6_606, %c0_607] : memref<64x512xf32, #tpu.memory_space<vmem>>, vector<1x512xf32>
    tpu.vector_store %arg18[%c6_606, %c0_607], %560 {strides = array<i32>} : memref<64x512xf32, #tpu.memory_space<vmem>>, vector<1x512xf32>,
    %c6_608 = arith.constant 6 : index
    %c1_609 = arith.constant 1 : index
    %562 = memref.load %arg3[%c6_608, %c1_609] : memref<8x8xi32, #tpu.memory_space<smem>>
    %563 = arith.index_cast %562 : i32 to index
    %c0_610 = arith.constant 0 : index
    %c0_611 = arith.constant 0 : index
    %564 = vector.load %arg6[%563, %c0_610, %c0_611] : memref<64x1x512xf32, #tpu.memory_space<vmem>>, vector<1x1x512xf32>
    %565 = vector.shape_cast %564 : vector<1x1x512xf32> to vector<1x512xf32>
    %c14 = arith.constant 14 : index
    %c0_612 = arith.constant 0 : index
    %566 = vector.load %arg17[%c14, %c0_612] : memref<64x512xf32, #tpu.memory_space<vmem>>, vector<1x512xf32>
    tpu.vector_store %arg17[%c14, %c0_612], %565 {strides = array<i32>} : memref<64x512xf32, #tpu.memory_space<vmem>>, vector<1x512xf32>,
    %c6_613 = arith.constant 6 : index
    %c1_614 = arith.constant 1 : index
    %567 = memref.load %arg4[%c6_613, %c1_614] : memref<8x8xi32, #tpu.memory_space<smem>>
    %568 = arith.index_cast %567 : i32 to index
    %c0_615 = arith.constant 0 : index
    %c0_616 = arith.constant 0 : index
    %569 = vector.load %arg7[%568, %c0_615, %c0_616] : memref<17x1x512xf32, #tpu.memory_space<vmem>>, vector<1x1x512xf32>
    %570 = vector.shape_cast %569 : vector<1x1x512xf32> to vector<1x512xf32>
    %c14_617 = arith.constant 14 : index
    %c0_618 = arith.constant 0 : index
    %571 = vector.load %arg18[%c14_617, %c0_618] : memref<64x512xf32, #tpu.memory_space<vmem>>, vector<1x512xf32>
    tpu.vector_store %arg18[%c14_617, %c0_618], %570 {strides = array<i32>} : memref<64x512xf32, #tpu.memory_space<vmem>>, vector<1x512xf32>,
    %c6_619 = arith.constant 6 : index
    %c2_620 = arith.constant 2 : index
    %572 = memref.load %arg3[%c6_619, %c2_620] : memref<8x8xi32, #tpu.memory_space<smem>>
    %573 = arith.index_cast %572 : i32 to index
    %c0_621 = arith.constant 0 : index
    %c0_622 = arith.constant 0 : index
    %574 = vector.load %arg6[%573, %c0_621, %c0_622] : memref<64x1x512xf32, #tpu.memory_space<vmem>>, vector<1x1x512xf32>
    %575 = vector.shape_cast %574 : vector<1x1x512xf32> to vector<1x512xf32>
    %c22 = arith.constant 22 : index
    %c0_623 = arith.constant 0 : index
    %576 = vector.load %arg17[%c22, %c0_623] : memref<64x512xf32, #tpu.memory_space<vmem>>, vector<1x512xf32>
    tpu.vector_store %arg17[%c22, %c0_623], %575 {strides = array<i32>} : memref<64x512xf32, #tpu.memory_space<vmem>>, vector<1x512xf32>,
    %c6_624 = arith.constant 6 : index
    %c2_625 = arith.constant 2 : index
    %577 = memref.load %arg4[%c6_624, %c2_625] : memref<8x8xi32, #tpu.memory_space<smem>>
    %578 = arith.index_cast %577 : i32 to index
    %c0_626 = arith.constant 0 : index
    %c0_627 = arith.constant 0 : index
    %579 = vector.load %arg7[%578, %c0_626, %c0_627] : memref<17x1x512xf32, #tpu.memory_space<vmem>>, vector<1x1x512xf32>
    %580 = vector.shape_cast %579 : vector<1x1x512xf32> to vector<1x512xf32>
    %c22_628 = arith.constant 22 : index
    %c0_629 = arith.constant 0 : index
    %581 = vector.load %arg18[%c22_628, %c0_629] : memref<64x512xf32, #tpu.memory_space<vmem>>, vector<1x512xf32>
    tpu.vector_store %arg18[%c22_628, %c0_629], %580 {strides = array<i32>} : memref<64x512xf32, #tpu.memory_space<vmem>>, vector<1x512xf32>,
    %c6_630 = arith.constant 6 : index
    %c3_631 = arith.constant 3 : index
    %582 = memref.load %arg3[%c6_630, %c3_631] : memref<8x8xi32, #tpu.memory_space<smem>>
    %583 = arith.index_cast %582 : i32 to index
    %c0_632 = arith.constant 0 : index
    %c0_633 = arith.constant 0 : index
    %584 = vector.load %arg6[%583, %c0_632, %c0_633] : memref<64x1x512xf32, #tpu.memory_space<vmem>>, vector<1x1x512xf32>
    %585 = vector.shape_cast %584 : vector<1x1x512xf32> to vector<1x512xf32>
    %c30 = arith.constant 30 : index
    %c0_634 = arith.constant 0 : index
    %586 = vector.load %arg17[%c30, %c0_634] : memref<64x512xf32, #tpu.memory_space<vmem>>, vector<1x512xf32>
    tpu.vector_store %arg17[%c30, %c0_634], %585 {strides = array<i32>} : memref<64x512xf32, #tpu.memory_space<vmem>>, vector<1x512xf32>,
    %c6_635 = arith.constant 6 : index
    %c3_636 = arith.constant 3 : index
    %587 = memref.load %arg4[%c6_635, %c3_636] : memref<8x8xi32, #tpu.memory_space<smem>>
    %588 = arith.index_cast %587 : i32 to index
    %c0_637 = arith.constant 0 : index
    %c0_638 = arith.constant 0 : index
    %589 = vector.load %arg7[%588, %c0_637, %c0_638] : memref<17x1x512xf32, #tpu.memory_space<vmem>>, vector<1x1x512xf32>
    %590 = vector.shape_cast %589 : vector<1x1x512xf32> to vector<1x512xf32>
    %c30_639 = arith.constant 30 : index
    %c0_640 = arith.constant 0 : index
    %591 = vector.load %arg18[%c30_639, %c0_640] : memref<64x512xf32, #tpu.memory_space<vmem>>, vector<1x512xf32>
    tpu.vector_store %arg18[%c30_639, %c0_640], %590 {strides = array<i32>} : memref<64x512xf32, #tpu.memory_space<vmem>>, vector<1x512xf32>,
    %c6_641 = arith.constant 6 : index
    %c4_642 = arith.constant 4 : index
    %592 = memref.load %arg3[%c6_641, %c4_642] : memref<8x8xi32, #tpu.memory_space<smem>>
    %593 = arith.index_cast %592 : i32 to index
    %c0_643 = arith.constant 0 : index
    %c0_644 = arith.constant 0 : index
    %594 = vector.load %arg6[%593, %c0_643, %c0_644] : memref<64x1x512xf32, #tpu.memory_space<vmem>>, vector<1x1x512xf32>
    %595 = vector.shape_cast %594 : vector<1x1x512xf32> to vector<1x512xf32>
    %c38 = arith.constant 38 : index
    %c0_645 = arith.constant 0 : index
    %596 = vector.load %arg17[%c38, %c0_645] : memref<64x512xf32, #tpu.memory_space<vmem>>, vector<1x512xf32>
    tpu.vector_store %arg17[%c38, %c0_645], %595 {strides = array<i32>} : memref<64x512xf32, #tpu.memory_space<vmem>>, vector<1x512xf32>,
    %c6_646 = arith.constant 6 : index
    %c4_647 = arith.constant 4 : index
    %597 = memref.load %arg4[%c6_646, %c4_647] : memref<8x8xi32, #tpu.memory_space<smem>>
    %598 = arith.index_cast %597 : i32 to index
    %c0_648 = arith.constant 0 : index
    %c0_649 = arith.constant 0 : index
    %599 = vector.load %arg7[%598, %c0_648, %c0_649] : memref<17x1x512xf32, #tpu.memory_space<vmem>>, vector<1x1x512xf32>
    %600 = vector.shape_cast %599 : vector<1x1x512xf32> to vector<1x512xf32>
    %c38_650 = arith.constant 38 : index
    %c0_651 = arith.constant 0 : index
    %601 = vector.load %arg18[%c38_650, %c0_651] : memref<64x512xf32, #tpu.memory_space<vmem>>, vector<1x512xf32>
    tpu.vector_store %arg18[%c38_650, %c0_651], %600 {strides = array<i32>} : memref<64x512xf32, #tpu.memory_space<vmem>>, vector<1x512xf32>,
    %c6_652 = arith.constant 6 : index
    %c5_653 = arith.constant 5 : index
    %602 = memref.load %arg3[%c6_652, %c5_653] : memref<8x8xi32, #tpu.memory_space<smem>>
    %603 = arith.index_cast %602 : i32 to index
    %c0_654 = arith.constant 0 : index
    %c0_655 = arith.constant 0 : index
    %604 = vector.load %arg6[%603, %c0_654, %c0_655] : memref<64x1x512xf32, #tpu.memory_space<vmem>>, vector<1x1x512xf32>
    %605 = vector.shape_cast %604 : vector<1x1x512xf32> to vector<1x512xf32>
    %c46 = arith.constant 46 : index
    %c0_656 = arith.constant 0 : index
    %606 = vector.load %arg17[%c46, %c0_656] : memref<64x512xf32, #tpu.memory_space<vmem>>, vector<1x512xf32>
    tpu.vector_store %arg17[%c46, %c0_656], %605 {strides = array<i32>} : memref<64x512xf32, #tpu.memory_space<vmem>>, vector<1x512xf32>,
    %c6_657 = arith.constant 6 : index
    %c5_658 = arith.constant 5 : index
    %607 = memref.load %arg4[%c6_657, %c5_658] : memref<8x8xi32, #tpu.memory_space<smem>>
    %608 = arith.index_cast %607 : i32 to index
    %c0_659 = arith.constant 0 : index
    %c0_660 = arith.constant 0 : index
    %609 = vector.load %arg7[%608, %c0_659, %c0_660] : memref<17x1x512xf32, #tpu.memory_space<vmem>>, vector<1x1x512xf32>
    %610 = vector.shape_cast %609 : vector<1x1x512xf32> to vector<1x512xf32>
    %c46_661 = arith.constant 46 : index
    %c0_662 = arith.constant 0 : index
    %611 = vector.load %arg18[%c46_661, %c0_662] : memref<64x512xf32, #tpu.memory_space<vmem>>, vector<1x512xf32>
    tpu.vector_store %arg18[%c46_661, %c0_662], %610 {strides = array<i32>} : memref<64x512xf32, #tpu.memory_space<vmem>>, vector<1x512xf32>,
    %c6_663 = arith.constant 6 : index
    %c6_664 = arith.constant 6 : index
    %612 = memref.load %arg3[%c6_663, %c6_664] : memref<8x8xi32, #tpu.memory_space<smem>>
    %613 = arith.index_cast %612 : i32 to index
    %c0_665 = arith.constant 0 : index
    %c0_666 = arith.constant 0 : index
    %614 = vector.load %arg6[%613, %c0_665, %c0_666] : memref<64x1x512xf32, #tpu.memory_space<vmem>>, vector<1x1x512xf32>
    %615 = vector.shape_cast %614 : vector<1x1x512xf32> to vector<1x512xf32>
    %c54 = arith.constant 54 : index
    %c0_667 = arith.constant 0 : index
    %616 = vector.load %arg17[%c54, %c0_667] : memref<64x512xf32, #tpu.memory_space<vmem>>, vector<1x512xf32>
    tpu.vector_store %arg17[%c54, %c0_667], %615 {strides = array<i32>} : memref<64x512xf32, #tpu.memory_space<vmem>>, vector<1x512xf32>,
    %c6_668 = arith.constant 6 : index
    %c6_669 = arith.constant 6 : index
    %617 = memref.load %arg4[%c6_668, %c6_669] : memref<8x8xi32, #tpu.memory_space<smem>>
    %618 = arith.index_cast %617 : i32 to index
    %c0_670 = arith.constant 0 : index
    %c0_671 = arith.constant 0 : index
    %619 = vector.load %arg7[%618, %c0_670, %c0_671] : memref<17x1x512xf32, #tpu.memory_space<vmem>>, vector<1x1x512xf32>
    %620 = vector.shape_cast %619 : vector<1x1x512xf32> to vector<1x512xf32>
    %c54_672 = arith.constant 54 : index
    %c0_673 = arith.constant 0 : index
    %621 = vector.load %arg18[%c54_672, %c0_673] : memref<64x512xf32, #tpu.memory_space<vmem>>, vector<1x512xf32>
    tpu.vector_store %arg18[%c54_672, %c0_673], %620 {strides = array<i32>} : memref<64x512xf32, #tpu.memory_space<vmem>>, vector<1x512xf32>,
    %c6_674 = arith.constant 6 : index
    %c7_675 = arith.constant 7 : index
    %622 = memref.load %arg3[%c6_674, %c7_675] : memref<8x8xi32, #tpu.memory_space<smem>>
    %623 = arith.index_cast %622 : i32 to index
    %c0_676 = arith.constant 0 : index
    %c0_677 = arith.constant 0 : index
    %624 = vector.load %arg6[%623, %c0_676, %c0_677] : memref<64x1x512xf32, #tpu.memory_space<vmem>>, vector<1x1x512xf32>
    %625 = vector.shape_cast %624 : vector<1x1x512xf32> to vector<1x512xf32>
    %c62 = arith.constant 62 : index
    %c0_678 = arith.constant 0 : index
    %626 = vector.load %arg17[%c62, %c0_678] : memref<64x512xf32, #tpu.memory_space<vmem>>, vector<1x512xf32>
    tpu.vector_store %arg17[%c62, %c0_678], %625 {strides = array<i32>} : memref<64x512xf32, #tpu.memory_space<vmem>>, vector<1x512xf32>,
    %c6_679 = arith.constant 6 : index
    %c7_680 = arith.constant 7 : index
    %627 = memref.load %arg4[%c6_679, %c7_680] : memref<8x8xi32, #tpu.memory_space<smem>>
    %628 = arith.index_cast %627 : i32 to index
    %c0_681 = arith.constant 0 : index
    %c0_682 = arith.constant 0 : index
    %629 = vector.load %arg7[%628, %c0_681, %c0_682] : memref<17x1x512xf32, #tpu.memory_space<vmem>>, vector<1x1x512xf32>
    %630 = vector.shape_cast %629 : vector<1x1x512xf32> to vector<1x512xf32>
    %c62_683 = arith.constant 62 : index
    %c0_684 = arith.constant 0 : index
    %631 = vector.load %arg18[%c62_683, %c0_684] : memref<64x512xf32, #tpu.memory_space<vmem>>, vector<1x512xf32>
    tpu.vector_store %arg18[%c62_683, %c0_684], %630 {strides = array<i32>} : memref<64x512xf32, #tpu.memory_space<vmem>>, vector<1x512xf32>,
    %c7_685 = arith.constant 7 : index
    %632 = memref.load %arg1[%c7_685] : memref<8xi32, #tpu.memory_space<smem>>
    %633 = arith.index_cast %632 : i32 to index
    %c0_686 = arith.constant 0 : index
    %c0_687 = arith.constant 0 : index
    %634 = vector.load %arg5[%633, %c0_686, %c0_687] : memref<32x1x512xf32, #tpu.memory_space<vmem>>, vector<1x1x512xf32>
    %635 = vector.shape_cast %634 : vector<1x1x512xf32> to vector<1x512xf32>
    %c7_688 = arith.constant 7 : index
    %c0_689 = arith.constant 0 : index
    %636 = vector.load %arg15[%c7_688, %c0_689] : memref<8x512xf32, #tpu.memory_space<vmem>>, vector<1x512xf32>
    tpu.vector_store %arg15[%c7_688, %c0_689], %635 {strides = array<i32>} : memref<8x512xf32, #tpu.memory_space<vmem>>, vector<1x512xf32>,
    %c7_690 = arith.constant 7 : index
    %637 = memref.load %arg2[%c7_690] : memref<8xi32, #tpu.memory_space<smem>>
    %638 = arith.index_cast %637 : i32 to index
    %c0_691 = arith.constant 0 : index
    %c0_692 = arith.constant 0 : index
    %639 = vector.load %arg6[%638, %c0_691, %c0_692] : memref<64x1x512xf32, #tpu.memory_space<vmem>>, vector<1x1x512xf32>
    %640 = vector.shape_cast %639 : vector<1x1x512xf32> to vector<1x512xf32>
    %c7_693 = arith.constant 7 : index
    %c0_694 = arith.constant 0 : index
    %641 = vector.load %arg16[%c7_693, %c0_694] : memref<8x512xf32, #tpu.memory_space<vmem>>, vector<1x512xf32>
    tpu.vector_store %arg16[%c7_693, %c0_694], %640 {strides = array<i32>} : memref<8x512xf32, #tpu.memory_space<vmem>>, vector<1x512xf32>,
    %c7_695 = arith.constant 7 : index
    %c0_696 = arith.constant 0 : index
    %642 = memref.load %arg3[%c7_695, %c0_696] : memref<8x8xi32, #tpu.memory_space<smem>>
    %643 = arith.index_cast %642 : i32 to index
    %c0_697 = arith.constant 0 : index
    %c0_698 = arith.constant 0 : index
    %644 = vector.load %arg6[%643, %c0_697, %c0_698] : memref<64x1x512xf32, #tpu.memory_space<vmem>>, vector<1x1x512xf32>
    %645 = vector.shape_cast %644 : vector<1x1x512xf32> to vector<1x512xf32>
    %c7_699 = arith.constant 7 : index
    %c0_700 = arith.constant 0 : index
    %646 = vector.load %arg17[%c7_699, %c0_700] : memref<64x512xf32, #tpu.memory_space<vmem>>, vector<1x512xf32>
    tpu.vector_store %arg17[%c7_699, %c0_700], %645 {strides = array<i32>} : memref<64x512xf32, #tpu.memory_space<vmem>>, vector<1x512xf32>,
    %c7_701 = arith.constant 7 : index
    %c0_702 = arith.constant 0 : index
    %647 = memref.load %arg4[%c7_701, %c0_702] : memref<8x8xi32, #tpu.memory_space<smem>>
    %648 = arith.index_cast %647 : i32 to index
    %c0_703 = arith.constant 0 : index
    %c0_704 = arith.constant 0 : index
    %649 = vector.load %arg7[%648, %c0_703, %c0_704] : memref<17x1x512xf32, #tpu.memory_space<vmem>>, vector<1x1x512xf32>
    %650 = vector.shape_cast %649 : vector<1x1x512xf32> to vector<1x512xf32>
    %c7_705 = arith.constant 7 : index
    %c0_706 = arith.constant 0 : index
    %651 = vector.load %arg18[%c7_705, %c0_706] : memref<64x512xf32, #tpu.memory_space<vmem>>, vector<1x512xf32>
    tpu.vector_store %arg18[%c7_705, %c0_706], %650 {strides = array<i32>} : memref<64x512xf32, #tpu.memory_space<vmem>>, vector<1x512xf32>,
    %c7_707 = arith.constant 7 : index
    %c1_708 = arith.constant 1 : index
    %652 = memref.load %arg3[%c7_707, %c1_708] : memref<8x8xi32, #tpu.memory_space<smem>>
    %653 = arith.index_cast %652 : i32 to index
    %c0_709 = arith.constant 0 : index
    %c0_710 = arith.constant 0 : index
    %654 = vector.load %arg6[%653, %c0_709, %c0_710] : memref<64x1x512xf32, #tpu.memory_space<vmem>>, vector<1x1x512xf32>
    %655 = vector.shape_cast %654 : vector<1x1x512xf32> to vector<1x512xf32>
    %c15 = arith.constant 15 : index
    %c0_711 = arith.constant 0 : index
    %656 = vector.load %arg17[%c15, %c0_711] : memref<64x512xf32, #tpu.memory_space<vmem>>, vector<1x512xf32>
    tpu.vector_store %arg17[%c15, %c0_711], %655 {strides = array<i32>} : memref<64x512xf32, #tpu.memory_space<vmem>>, vector<1x512xf32>,
    %c7_712 = arith.constant 7 : index
    %c1_713 = arith.constant 1 : index
    %657 = memref.load %arg4[%c7_712, %c1_713] : memref<8x8xi32, #tpu.memory_space<smem>>
    %658 = arith.index_cast %657 : i32 to index
    %c0_714 = arith.constant 0 : index
    %c0_715 = arith.constant 0 : index
    %659 = vector.load %arg7[%658, %c0_714, %c0_715] : memref<17x1x512xf32, #tpu.memory_space<vmem>>, vector<1x1x512xf32>
    %660 = vector.shape_cast %659 : vector<1x1x512xf32> to vector<1x512xf32>
    %c15_716 = arith.constant 15 : index
    %c0_717 = arith.constant 0 : index
    %661 = vector.load %arg18[%c15_716, %c0_717] : memref<64x512xf32, #tpu.memory_space<vmem>>, vector<1x512xf32>
    tpu.vector_store %arg18[%c15_716, %c0_717], %660 {strides = array<i32>} : memref<64x512xf32, #tpu.memory_space<vmem>>, vector<1x512xf32>,
    %c7_718 = arith.constant 7 : index
    %c2_719 = arith.constant 2 : index
    %662 = memref.load %arg3[%c7_718, %c2_719] : memref<8x8xi32, #tpu.memory_space<smem>>
    %663 = arith.index_cast %662 : i32 to index
    %c0_720 = arith.constant 0 : index
    %c0_721 = arith.constant 0 : index
    %664 = vector.load %arg6[%663, %c0_720, %c0_721] : memref<64x1x512xf32, #tpu.memory_space<vmem>>, vector<1x1x512xf32>
    %665 = vector.shape_cast %664 : vector<1x1x512xf32> to vector<1x512xf32>
    %c23 = arith.constant 23 : index
    %c0_722 = arith.constant 0 : index
    %666 = vector.load %arg17[%c23, %c0_722] : memref<64x512xf32, #tpu.memory_space<vmem>>, vector<1x512xf32>
    tpu.vector_store %arg17[%c23, %c0_722], %665 {strides = array<i32>} : memref<64x512xf32, #tpu.memory_space<vmem>>, vector<1x512xf32>,
    %c7_723 = arith.constant 7 : index
    %c2_724 = arith.constant 2 : index
    %667 = memref.load %arg4[%c7_723, %c2_724] : memref<8x8xi32, #tpu.memory_space<smem>>
    %668 = arith.index_cast %667 : i32 to index
    %c0_725 = arith.constant 0 : index
    %c0_726 = arith.constant 0 : index
    %669 = vector.load %arg7[%668, %c0_725, %c0_726] : memref<17x1x512xf32, #tpu.memory_space<vmem>>, vector<1x1x512xf32>
    %670 = vector.shape_cast %669 : vector<1x1x512xf32> to vector<1x512xf32>
    %c23_727 = arith.constant 23 : index
    %c0_728 = arith.constant 0 : index
    %671 = vector.load %arg18[%c23_727, %c0_728] : memref<64x512xf32, #tpu.memory_space<vmem>>, vector<1x512xf32>
    tpu.vector_store %arg18[%c23_727, %c0_728], %670 {strides = array<i32>} : memref<64x512xf32, #tpu.memory_space<vmem>>, vector<1x512xf32>,
    %c7_729 = arith.constant 7 : index
    %c3_730 = arith.constant 3 : index
    %672 = memref.load %arg3[%c7_729, %c3_730] : memref<8x8xi32, #tpu.memory_space<smem>>
    %673 = arith.index_cast %672 : i32 to index
    %c0_731 = arith.constant 0 : index
    %c0_732 = arith.constant 0 : index
    %674 = vector.load %arg6[%673, %c0_731, %c0_732] : memref<64x1x512xf32, #tpu.memory_space<vmem>>, vector<1x1x512xf32>
    %675 = vector.shape_cast %674 : vector<1x1x512xf32> to vector<1x512xf32>
    %c31 = arith.constant 31 : index
    %c0_733 = arith.constant 0 : index
    %676 = vector.load %arg17[%c31, %c0_733] : memref<64x512xf32, #tpu.memory_space<vmem>>, vector<1x512xf32>
    tpu.vector_store %arg17[%c31, %c0_733], %675 {strides = array<i32>} : memref<64x512xf32, #tpu.memory_space<vmem>>, vector<1x512xf32>,
    %c7_734 = arith.constant 7 : index
    %c3_735 = arith.constant 3 : index
    %677 = memref.load %arg4[%c7_734, %c3_735] : memref<8x8xi32, #tpu.memory_space<smem>>
    %678 = arith.index_cast %677 : i32 to index
    %c0_736 = arith.constant 0 : index
    %c0_737 = arith.constant 0 : index
    %679 = vector.load %arg7[%678, %c0_736, %c0_737] : memref<17x1x512xf32, #tpu.memory_space<vmem>>, vector<1x1x512xf32>
    %680 = vector.shape_cast %679 : vector<1x1x512xf32> to vector<1x512xf32>
    %c31_738 = arith.constant 31 : index
    %c0_739 = arith.constant 0 : index
    %681 = vector.load %arg18[%c31_738, %c0_739] : memref<64x512xf32, #tpu.memory_space<vmem>>, vector<1x512xf32>
    tpu.vector_store %arg18[%c31_738, %c0_739], %680 {strides = array<i32>} : memref<64x512xf32, #tpu.memory_space<vmem>>, vector<1x512xf32>,
    %c7_740 = arith.constant 7 : index
    %c4_741 = arith.constant 4 : index
    %682 = memref.load %arg3[%c7_740, %c4_741] : memref<8x8xi32, #tpu.memory_space<smem>>
    %683 = arith.index_cast %682 : i32 to index
    %c0_742 = arith.constant 0 : index
    %c0_743 = arith.constant 0 : index
    %684 = vector.load %arg6[%683, %c0_742, %c0_743] : memref<64x1x512xf32, #tpu.memory_space<vmem>>, vector<1x1x512xf32>
    %685 = vector.shape_cast %684 : vector<1x1x512xf32> to vector<1x512xf32>
    %c39 = arith.constant 39 : index
    %c0_744 = arith.constant 0 : index
    %686 = vector.load %arg17[%c39, %c0_744] : memref<64x512xf32, #tpu.memory_space<vmem>>, vector<1x512xf32>
    tpu.vector_store %arg17[%c39, %c0_744], %685 {strides = array<i32>} : memref<64x512xf32, #tpu.memory_space<vmem>>, vector<1x512xf32>,
    %c7_745 = arith.constant 7 : index
    %c4_746 = arith.constant 4 : index
    %687 = memref.load %arg4[%c7_745, %c4_746] : memref<8x8xi32, #tpu.memory_space<smem>>
    %688 = arith.index_cast %687 : i32 to index
    %c0_747 = arith.constant 0 : index
    %c0_748 = arith.constant 0 : index
    %689 = vector.load %arg7[%688, %c0_747, %c0_748] : memref<17x1x512xf32, #tpu.memory_space<vmem>>, vector<1x1x512xf32>
    %690 = vector.shape_cast %689 : vector<1x1x512xf32> to vector<1x512xf32>
    %c39_749 = arith.constant 39 : index
    %c0_750 = arith.constant 0 : index
    %691 = vector.load %arg18[%c39_749, %c0_750] : memref<64x512xf32, #tpu.memory_space<vmem>>, vector<1x512xf32>
    tpu.vector_store %arg18[%c39_749, %c0_750], %690 {strides = array<i32>} : memref<64x512xf32, #tpu.memory_space<vmem>>, vector<1x512xf32>,
    %c7_751 = arith.constant 7 : index
    %c5_752 = arith.constant 5 : index
    %692 = memref.load %arg3[%c7_751, %c5_752] : memref<8x8xi32, #tpu.memory_space<smem>>
    %693 = arith.index_cast %692 : i32 to index
    %c0_753 = arith.constant 0 : index
    %c0_754 = arith.constant 0 : index
    %694 = vector.load %arg6[%693, %c0_753, %c0_754] : memref<64x1x512xf32, #tpu.memory_space<vmem>>, vector<1x1x512xf32>
    %695 = vector.shape_cast %694 : vector<1x1x512xf32> to vector<1x512xf32>
    %c47 = arith.constant 47 : index
    %c0_755 = arith.constant 0 : index
    %696 = vector.load %arg17[%c47, %c0_755] : memref<64x512xf32, #tpu.memory_space<vmem>>, vector<1x512xf32>
    tpu.vector_store %arg17[%c47, %c0_755], %695 {strides = array<i32>} : memref<64x512xf32, #tpu.memory_space<vmem>>, vector<1x512xf32>,
    %c7_756 = arith.constant 7 : index
    %c5_757 = arith.constant 5 : index
    %697 = memref.load %arg4[%c7_756, %c5_757] : memref<8x8xi32, #tpu.memory_space<smem>>
    %698 = arith.index_cast %697 : i32 to index
    %c0_758 = arith.constant 0 : index
    %c0_759 = arith.constant 0 : index
    %699 = vector.load %arg7[%698, %c0_758, %c0_759] : memref<17x1x512xf32, #tpu.memory_space<vmem>>, vector<1x1x512xf32>
    %700 = vector.shape_cast %699 : vector<1x1x512xf32> to vector<1x512xf32>
    %c47_760 = arith.constant 47 : index
    %c0_761 = arith.constant 0 : index
    %701 = vector.load %arg18[%c47_760, %c0_761] : memref<64x512xf32, #tpu.memory_space<vmem>>, vector<1x512xf32>
    tpu.vector_store %arg18[%c47_760, %c0_761], %700 {strides = array<i32>} : memref<64x512xf32, #tpu.memory_space<vmem>>, vector<1x512xf32>,
    %c7_762 = arith.constant 7 : index
    %c6_763 = arith.constant 6 : index
    %702 = memref.load %arg3[%c7_762, %c6_763] : memref<8x8xi32, #tpu.memory_space<smem>>
    %703 = arith.index_cast %702 : i32 to index
    %c0_764 = arith.constant 0 : index
    %c0_765 = arith.constant 0 : index
    %704 = vector.load %arg6[%703, %c0_764, %c0_765] : memref<64x1x512xf32, #tpu.memory_space<vmem>>, vector<1x1x512xf32>
    %705 = vector.shape_cast %704 : vector<1x1x512xf32> to vector<1x512xf32>
    %c55 = arith.constant 55 : index
    %c0_766 = arith.constant 0 : index
    %706 = vector.load %arg17[%c55, %c0_766] : memref<64x512xf32, #tpu.memory_space<vmem>>, vector<1x512xf32>
    tpu.vector_store %arg17[%c55, %c0_766], %705 {strides = array<i32>} : memref<64x512xf32, #tpu.memory_space<vmem>>, vector<1x512xf32>,
    %c7_767 = arith.constant 7 : index
    %c6_768 = arith.constant 6 : index
    %707 = memref.load %arg4[%c7_767, %c6_768] : memref<8x8xi32, #tpu.memory_space<smem>>
    %708 = arith.index_cast %707 : i32 to index
    %c0_769 = arith.constant 0 : index
    %c0_770 = arith.constant 0 : index
    %709 = vector.load %arg7[%708, %c0_769, %c0_770] : memref<17x1x512xf32, #tpu.memory_space<vmem>>, vector<1x1x512xf32>
    %710 = vector.shape_cast %709 : vector<1x1x512xf32> to vector<1x512xf32>
    %c55_771 = arith.constant 55 : index
    %c0_772 = arith.constant 0 : index
    %711 = vector.load %arg18[%c55_771, %c0_772] : memref<64x512xf32, #tpu.memory_space<vmem>>, vector<1x512xf32>
    tpu.vector_store %arg18[%c55_771, %c0_772], %710 {strides = array<i32>} : memref<64x512xf32, #tpu.memory_space<vmem>>, vector<1x512xf32>,
    %c7_773 = arith.constant 7 : index
    %c7_774 = arith.constant 7 : index
    %712 = memref.load %arg3[%c7_773, %c7_774] : memref<8x8xi32, #tpu.memory_space<smem>>
    %713 = arith.index_cast %712 : i32 to index
    %c0_775 = arith.constant 0 : index
    %c0_776 = arith.constant 0 : index
    %714 = vector.load %arg6[%713, %c0_775, %c0_776] : memref<64x1x512xf32, #tpu.memory_space<vmem>>, vector<1x1x512xf32>
    %715 = vector.shape_cast %714 : vector<1x1x512xf32> to vector<1x512xf32>
    %c63 = arith.constant 63 : index
    %c0_777 = arith.constant 0 : index
    %716 = vector.load %arg17[%c63, %c0_777] : memref<64x512xf32, #tpu.memory_space<vmem>>, vector<1x512xf32>
    tpu.vector_store %arg17[%c63, %c0_777], %715 {strides = array<i32>} : memref<64x512xf32, #tpu.memory_space<vmem>>, vector<1x512xf32>,
    %c7_778 = arith.constant 7 : index
    %c7_779 = arith.constant 7 : index
    %717 = memref.load %arg4[%c7_778, %c7_779] : memref<8x8xi32, #tpu.memory_space<smem>>
    %718 = arith.index_cast %717 : i32 to index
    %c0_780 = arith.constant 0 : index
    %c0_781 = arith.constant 0 : index
    %719 = vector.load %arg7[%718, %c0_780, %c0_781] : memref<17x1x512xf32, #tpu.memory_space<vmem>>, vector<1x1x512xf32>
    %720 = vector.shape_cast %719 : vector<1x1x512xf32> to vector<1x512xf32>
    %c63_782 = arith.constant 63 : index
    %c0_783 = arith.constant 0 : index
    %721 = vector.load %arg18[%c63_782, %c0_783] : memref<64x512xf32, #tpu.memory_space<vmem>>, vector<1x512xf32>
    tpu.vector_store %arg18[%c63_782, %c0_783], %720 {strides = array<i32>} : memref<64x512xf32, #tpu.memory_space<vmem>>, vector<1x512xf32>,
    %c0_784 = arith.constant 0 : index
    %c0_785 = arith.constant 0 : index
    %722 = vector.load %arg15[%c0_784, %c0_785] : memref<8x512xf32, #tpu.memory_space<vmem>>, vector<8x512xf32>
    %c0_786 = arith.constant 0 : index
    %c0_787 = arith.constant 0 : index
    %723 = vector.load %arg18[%c0_786, %c0_787] : memref<64x512xf32, #tpu.memory_space<vmem>>, vector<8x512xf32>
    %724 = arith.mulf %722, %723 : vector<8x512xf32>
    %cst = arith.constant dense<0.000000e+00> : vector<8xf32>
    %725 = vector.multi_reduction <add>, %724, %cst [1] : vector<8x512xf32> to vector<8xf32>
    %726 = vector.shape_cast %725 : vector<8xf32> to vector<8x1xf32>
    %c8_788 = arith.constant 8 : index
    %c0_789 = arith.constant 0 : index
    %727 = vector.load %arg18[%c8_788, %c0_789] : memref<64x512xf32, #tpu.memory_space<vmem>>, vector<8x512xf32>
    %728 = arith.mulf %722, %727 : vector<8x512xf32>
    %cst_790 = arith.constant dense<0.000000e+00> : vector<8xf32>
    %729 = vector.multi_reduction <add>, %728, %cst_790 [1] : vector<8x512xf32> to vector<8xf32>
    %730 = vector.shape_cast %729 : vector<8xf32> to vector<8x1xf32>
    %c16_791 = arith.constant 16 : index
    %c0_792 = arith.constant 0 : index
    %731 = vector.load %arg18[%c16_791, %c0_792] : memref<64x512xf32, #tpu.memory_space<vmem>>, vector<8x512xf32>
    %732 = arith.mulf %722, %731 : vector<8x512xf32>
    %cst_793 = arith.constant dense<0.000000e+00> : vector<8xf32>
    %733 = vector.multi_reduction <add>, %732, %cst_793 [1] : vector<8x512xf32> to vector<8xf32>
    %734 = vector.shape_cast %733 : vector<8xf32> to vector<8x1xf32>
    %c24_794 = arith.constant 24 : index
    %c0_795 = arith.constant 0 : index
    %735 = vector.load %arg18[%c24_794, %c0_795] : memref<64x512xf32, #tpu.memory_space<vmem>>, vector<8x512xf32>
    %736 = arith.mulf %722, %735 : vector<8x512xf32>
    %cst_796 = arith.constant dense<0.000000e+00> : vector<8xf32>
    %737 = vector.multi_reduction <add>, %736, %cst_796 [1] : vector<8x512xf32> to vector<8xf32>
    %738 = vector.shape_cast %737 : vector<8xf32> to vector<8x1xf32>
    %c32_797 = arith.constant 32 : index
    %c0_798 = arith.constant 0 : index
    %739 = vector.load %arg18[%c32_797, %c0_798] : memref<64x512xf32, #tpu.memory_space<vmem>>, vector<8x512xf32>
    %740 = arith.mulf %722, %739 : vector<8x512xf32>
    %cst_799 = arith.constant dense<0.000000e+00> : vector<8xf32>
    %741 = vector.multi_reduction <add>, %740, %cst_799 [1] : vector<8x512xf32> to vector<8xf32>
    %742 = vector.shape_cast %741 : vector<8xf32> to vector<8x1xf32>
    %c40_800 = arith.constant 40 : index
    %c0_801 = arith.constant 0 : index
    %743 = vector.load %arg18[%c40_800, %c0_801] : memref<64x512xf32, #tpu.memory_space<vmem>>, vector<8x512xf32>
    %744 = arith.mulf %722, %743 : vector<8x512xf32>
    %cst_802 = arith.constant dense<0.000000e+00> : vector<8xf32>
    %745 = vector.multi_reduction <add>, %744, %cst_802 [1] : vector<8x512xf32> to vector<8xf32>
    %746 = vector.shape_cast %745 : vector<8xf32> to vector<8x1xf32>
    %c48_803 = arith.constant 48 : index
    %c0_804 = arith.constant 0 : index
    %747 = vector.load %arg18[%c48_803, %c0_804] : memref<64x512xf32, #tpu.memory_space<vmem>>, vector<8x512xf32>
    %748 = arith.mulf %722, %747 : vector<8x512xf32>
    %cst_805 = arith.constant dense<0.000000e+00> : vector<8xf32>
    %749 = vector.multi_reduction <add>, %748, %cst_805 [1] : vector<8x512xf32> to vector<8xf32>
    %750 = vector.shape_cast %749 : vector<8xf32> to vector<8x1xf32>
    %c56_806 = arith.constant 56 : index
    %c0_807 = arith.constant 0 : index
    %751 = vector.load %arg18[%c56_806, %c0_807] : memref<64x512xf32, #tpu.memory_space<vmem>>, vector<8x512xf32>
    %752 = arith.mulf %722, %751 : vector<8x512xf32>
    %cst_808 = arith.constant dense<0.000000e+00> : vector<8xf32>
    %753 = vector.multi_reduction <add>, %752, %cst_808 [1] : vector<8x512xf32> to vector<8xf32>
    %754 = vector.shape_cast %753 : vector<8xf32> to vector<8x1xf32>
    %755 = arith.maximumf %726, %730 : vector<8x1xf32>
    %756 = arith.maximumf %755, %734 : vector<8x1xf32>
    %757 = arith.maximumf %756, %738 : vector<8x1xf32>
    %758 = arith.maximumf %757, %742 : vector<8x1xf32>
    %759 = arith.maximumf %758, %746 : vector<8x1xf32>
    %760 = arith.maximumf %759, %750 : vector<8x1xf32>
    %761 = arith.maximumf %760, %754 : vector<8x1xf32>
    %762 = arith.subf %726, %761 : vector<8x1xf32>
    %763 = math.exp %762 : vector<8x1xf32>
    %764 = arith.subf %730, %761 : vector<8x1xf32>
    %765 = math.exp %764 : vector<8x1xf32>
    %766 = arith.subf %734, %761 : vector<8x1xf32>
    %767 = math.exp %766 : vector<8x1xf32>
    %768 = arith.subf %738, %761 : vector<8x1xf32>
    %769 = math.exp %768 : vector<8x1xf32>
    %770 = arith.subf %742, %761 : vector<8x1xf32>
    %771 = math.exp %770 : vector<8x1xf32>
    %772 = arith.subf %746, %761 : vector<8x1xf32>
    %773 = math.exp %772 : vector<8x1xf32>
    %774 = arith.subf %750, %761 : vector<8x1xf32>
    %775 = math.exp %774 : vector<8x1xf32>
    %776 = arith.subf %754, %761 : vector<8x1xf32>
    %777 = math.exp %776 : vector<8x1xf32>
    %778 = arith.addf %763, %765 : vector<8x1xf32>
    %779 = arith.addf %778, %767 : vector<8x1xf32>
    %780 = arith.addf %779, %769 : vector<8x1xf32>
    %781 = arith.addf %780, %771 : vector<8x1xf32>
    %782 = arith.addf %781, %773 : vector<8x1xf32>
    %783 = arith.addf %782, %775 : vector<8x1xf32>
    %784 = arith.addf %783, %777 : vector<8x1xf32>
    %785 = tpu.reciprocal %784 {approx = true} : vector<8x1xf32> -> vector<8x1xf32>
    %786 = arith.mulf %763, %785 : vector<8x1xf32>
    %c0_809 = arith.constant 0 : index
    %c0_810 = arith.constant 0 : index
    %787 = vector.load %arg17[%c0_809, %c0_810] : memref<64x512xf32, #tpu.memory_space<vmem>>, vector<8x512xf32>
    %788 = vector.broadcast %786 : vector<8x1xf32> to vector<8x512xf32>
    %789 = arith.mulf %788, %787 : vector<8x512xf32>
    %c8_811 = arith.constant 8 : index
    %c0_812 = arith.constant 0 : index
    %790 = vector.load %arg17[%c8_811, %c0_812] : memref<64x512xf32, #tpu.memory_space<vmem>>, vector<8x512xf32>
    %791 = arith.mulf %765, %785 : vector<8x1xf32>
    %792 = vector.broadcast %791 : vector<8x1xf32> to vector<8x512xf32>
    %793 = arith.mulf %792, %790 : vector<8x512xf32>
    %794 = arith.addf %789, %793 : vector<8x512xf32>
    %c16_813 = arith.constant 16 : index
    %c0_814 = arith.constant 0 : index
    %795 = vector.load %arg17[%c16_813, %c0_814] : memref<64x512xf32, #tpu.memory_space<vmem>>, vector<8x512xf32>
    %796 = arith.mulf %767, %785 : vector<8x1xf32>
    %797 = vector.broadcast %796 : vector<8x1xf32> to vector<8x512xf32>
    %798 = arith.mulf %797, %795 : vector<8x512xf32>
    %799 = arith.addf %794, %798 : vector<8x512xf32>
    %c24_815 = arith.constant 24 : index
    %c0_816 = arith.constant 0 : index
    %800 = vector.load %arg17[%c24_815, %c0_816] : memref<64x512xf32, #tpu.memory_space<vmem>>, vector<8x512xf32>
    %801 = arith.mulf %769, %785 : vector<8x1xf32>
    %802 = vector.broadcast %801 : vector<8x1xf32> to vector<8x512xf32>
    %803 = arith.mulf %802, %800 : vector<8x512xf32>
    %804 = arith.addf %799, %803 : vector<8x512xf32>
    %c32_817 = arith.constant 32 : index
    %c0_818 = arith.constant 0 : index
    %805 = vector.load %arg17[%c32_817, %c0_818] : memref<64x512xf32, #tpu.memory_space<vmem>>, vector<8x512xf32>
    %806 = arith.mulf %771, %785 : vector<8x1xf32>
    %807 = vector.broadcast %806 : vector<8x1xf32> to vector<8x512xf32>
    %808 = arith.mulf %807, %805 : vector<8x512xf32>
    %809 = arith.addf %804, %808 : vector<8x512xf32>
    %c40_819 = arith.constant 40 : index
    %c0_820 = arith.constant 0 : index
    %810 = vector.load %arg17[%c40_819, %c0_820] : memref<64x512xf32, #tpu.memory_space<vmem>>, vector<8x512xf32>
    %811 = arith.mulf %773, %785 : vector<8x1xf32>
    %812 = vector.broadcast %811 : vector<8x1xf32> to vector<8x512xf32>
    %813 = arith.mulf %812, %810 : vector<8x512xf32>
    %814 = arith.addf %809, %813 : vector<8x512xf32>
    %c48_821 = arith.constant 48 : index
    %c0_822 = arith.constant 0 : index
    %815 = vector.load %arg17[%c48_821, %c0_822] : memref<64x512xf32, #tpu.memory_space<vmem>>, vector<8x512xf32>
    %816 = arith.mulf %775, %785 : vector<8x1xf32>
    %817 = vector.broadcast %816 : vector<8x1xf32> to vector<8x512xf32>
    %818 = arith.mulf %817, %815 : vector<8x512xf32>
    %819 = arith.addf %814, %818 : vector<8x512xf32>
    %c56_823 = arith.constant 56 : index
    %c0_824 = arith.constant 0 : index
    %820 = vector.load %arg17[%c56_823, %c0_824] : memref<64x512xf32, #tpu.memory_space<vmem>>, vector<8x512xf32>
    %821 = arith.mulf %777, %785 : vector<8x1xf32>
    %822 = vector.broadcast %821 : vector<8x1xf32> to vector<8x512xf32>
    %823 = arith.mulf %822, %820 : vector<8x512xf32>
    %824 = arith.addf %819, %823 : vector<8x512xf32>
    %c0_825 = arith.constant 0 : index
    %c0_826 = arith.constant 0 : index
    %825 = vector.load %arg16[%c0_825, %c0_826] : memref<8x512xf32, #tpu.memory_space<vmem>>, vector<8x512xf32>
    %826 = arith.addf %825, %824 : vector<8x512xf32>
    %827 = arith.truncf %826 : vector<8x512xf32> to vector<8x512xbf16>
    %c0_i32_827 = arith.constant 0 : i32
    %828 = tpu.memref_slice %arg20[%c0_i32_827] : memref<1x!tpu.dma_semaphore, #tpu.memory_space<semaphore_mem>> -> memref<1x!tpu.dma_semaphore, #tpu.memory_space<semaphore_mem>>
    %829 = tpu.memref_squeeze %828 : memref<1x!tpu.dma_semaphore, #tpu.memory_space<semaphore_mem>> -> memref<!tpu.dma_semaphore, #tpu.memory_space<semaphore_mem>>
    tpu.wait_dma2 semaphore(%829 : memref<!tpu.dma_semaphore, #tpu.memory_space<semaphore_mem>>) src(%arg8 : memref<512x512xbf16, #tpu.memory_space<any>>) dst(%arg19 : memref<512x512xbf16, #tpu.memory_space<vmem>>)
    %c0_828 = arith.constant 0 : index
    %c0_829 = arith.constant 0 : index
    %830 = vector.load %arg19[%c0_828, %c0_829] : memref<512x512xbf16, #tpu.memory_space<vmem>>, vector<512x512xbf16>
    %cst_830 = arith.constant dense<0.000000e+00> : vector<8x512xf32>
    %831 = tpu.matmul %827, %830, %cst_830 {dimension_numbers = #tpu.dot_dimension_numbers<[1], [0], [0], [1], [0, 0, 1, 1], [], []>} : vector<8x512xbf16>, vector<512x512xbf16>, vector<8x512xf32> -> vector<8x512xf32>
    %c0_831 = arith.constant 0 : index
    %c0_832 = arith.constant 0 : index
    %832 = vector.load %arg9[%c0_831, %c0_832] : memref<1x512xf32, #tpu.memory_space<vmem>>, vector<1x512xf32>
    %833 = vector.broadcast %832 : vector<1x512xf32> to vector<8x512xf32>
    %834 = arith.addf %831, %833 : vector<8x512xf32>
    %835 = math.tanh %834 : vector<8x512xf32>
    %c0_833 = arith.constant 0 : index
    %c0_834 = arith.constant 0 : index
    %836 = vector.load %arg14[%c0_833, %c0_834] : memref<8x512xf32, #tpu.memory_space<vmem>>, vector<8x512xf32>
    tpu.vector_store %arg14[%c0_833, %c0_834], %835 {strides = array<i32>} : memref<8x512xf32, #tpu.memory_space<vmem>>, vector<8x512xf32>,
    %837 = arith.mulf %722, %835 : vector<8x512xf32>
    %cst_835 = arith.constant dense<0.000000e+00> : vector<8xf32>
    %838 = vector.multi_reduction <add>, %837, %cst_835 [1] : vector<8x512xf32> to vector<8xf32>
    %839 = vector.shape_cast %838 : vector<8xf32> to vector<8x1xf32>
    %840 = arith.negf %839 : vector<8x1xf32>
    %841 = math.exp %840 : vector<8x1xf32>
    %cst_836 = arith.constant 1.000000e+00 : f32
    %842 = vector.broadcast %cst_836 : f32 to vector<8x1xf32>
    %843 = arith.addf %842, %841 : vector<8x1xf32>
    %844 = arith.divf %842, %843 : vector<8x1xf32>
    %845 = vector.shape_cast %844 : vector<8x1xf32> to vector<8x1xf32>
    %846 = vector.broadcast %845 : vector<8x1xf32> to vector<8x128xf32>
    %c0_837 = arith.constant 0 : index
    %c0_838 = arith.constant 0 : index
    %847 = vector.load %arg12[%c0_837, %c0_838] : memref<8x128xf32, #tpu.memory_space<vmem>>, vector<8x128xf32>
    tpu.vector_store %arg12[%c0_837, %c0_838], %846 {strides = array<i32>} : memref<8x128xf32, #tpu.memory_space<vmem>>, vector<8x128xf32>,
    %c0_839 = arith.constant 0 : index
    %c0_840 = arith.constant 0 : index
    %848 = vector.load %arg10[%c0_839, %c0_840] : memref<16x8xf32, #tpu.memory_space<vmem>>, vector<16x8xf32>
    %c0_841 = arith.constant 0 : index
    %c0_842 = arith.constant 0 : index
    %849 = vector.load %arg11[%c0_841, %c0_842] : memref<16x1xf32, #tpu.memory_space<vmem>>, vector<16x1xf32>
    %850 = vector.shape_cast %849 : vector<16x1xf32> to vector<16x1xf32>
    %851 = vector.broadcast %850 : vector<16x1xf32> to vector<16x512xf32>
    %852 = vector.extract_strided_slice %848 {offsets = [0, 0], sizes = [16, 1], strides = [1, 1]} : vector<16x8xf32> to vector<16x1xf32>
    %853 = vector.extract_strided_slice %835 {offsets = [0, 0], sizes = [1, 512], strides = [1, 1]} : vector<8x512xf32> to vector<1x512xf32>
    %854 = vector.broadcast %852 : vector<16x1xf32> to vector<16x512xf32>
    %855 = vector.broadcast %853 : vector<1x512xf32> to vector<16x512xf32>
    %856 = arith.mulf %854, %855 : vector<16x512xf32>
    %857 = arith.addf %851, %856 : vector<16x512xf32>
    %858 = vector.extract_strided_slice %848 {offsets = [0, 1], sizes = [16, 1], strides = [1, 1]} : vector<16x8xf32> to vector<16x1xf32>
    %859 = vector.extract_strided_slice %835 {offsets = [1, 0], sizes = [1, 512], strides = [1, 1]} : vector<8x512xf32> to vector<1x512xf32>
    %860 = vector.broadcast %858 : vector<16x1xf32> to vector<16x512xf32>
    %861 = vector.broadcast %859 : vector<1x512xf32> to vector<16x512xf32>
    %862 = arith.mulf %860, %861 : vector<16x512xf32>
    %863 = arith.addf %857, %862 : vector<16x512xf32>
    %864 = vector.extract_strided_slice %848 {offsets = [0, 2], sizes = [16, 1], strides = [1, 1]} : vector<16x8xf32> to vector<16x1xf32>
    %865 = vector.extract_strided_slice %835 {offsets = [2, 0], sizes = [1, 512], strides = [1, 1]} : vector<8x512xf32> to vector<1x512xf32>
    %866 = vector.broadcast %864 : vector<16x1xf32> to vector<16x512xf32>
    %867 = vector.broadcast %865 : vector<1x512xf32> to vector<16x512xf32>
    %868 = arith.mulf %866, %867 : vector<16x512xf32>
    %869 = arith.addf %863, %868 : vector<16x512xf32>
    %870 = vector.extract_strided_slice %848 {offsets = [0, 3], sizes = [16, 1], strides = [1, 1]} : vector<16x8xf32> to vector<16x1xf32>
    %871 = vector.extract_strided_slice %835 {offsets = [3, 0], sizes = [1, 512], strides = [1, 1]} : vector<8x512xf32> to vector<1x512xf32>
    %872 = vector.broadcast %870 : vector<16x1xf32> to vector<16x512xf32>
    %873 = vector.broadcast %871 : vector<1x512xf32> to vector<16x512xf32>
    %874 = arith.mulf %872, %873 : vector<16x512xf32>
    %875 = arith.addf %869, %874 : vector<16x512xf32>
    %876 = vector.extract_strided_slice %848 {offsets = [0, 4], sizes = [16, 1], strides = [1, 1]} : vector<16x8xf32> to vector<16x1xf32>
    %877 = vector.extract_strided_slice %835 {offsets = [4, 0], sizes = [1, 512], strides = [1, 1]} : vector<8x512xf32> to vector<1x512xf32>
    %878 = vector.broadcast %876 : vector<16x1xf32> to vector<16x512xf32>
    %879 = vector.broadcast %877 : vector<1x512xf32> to vector<16x512xf32>
    %880 = arith.mulf %878, %879 : vector<16x512xf32>
    %881 = arith.addf %875, %880 : vector<16x512xf32>
    %882 = vector.extract_strided_slice %848 {offsets = [0, 5], sizes = [16, 1], strides = [1, 1]} : vector<16x8xf32> to vector<16x1xf32>
    %883 = vector.extract_strided_slice %835 {offsets = [5, 0], sizes = [1, 512], strides = [1, 1]} : vector<8x512xf32> to vector<1x512xf32>
    %884 = vector.broadcast %882 : vector<16x1xf32> to vector<16x512xf32>
    %885 = vector.broadcast %883 : vector<1x512xf32> to vector<16x512xf32>
    %886 = arith.mulf %884, %885 : vector<16x512xf32>
    %887 = arith.addf %881, %886 : vector<16x512xf32>
    %888 = vector.extract_strided_slice %848 {offsets = [0, 6], sizes = [16, 1], strides = [1, 1]} : vector<16x8xf32> to vector<16x1xf32>
    %889 = vector.extract_strided_slice %835 {offsets = [6, 0], sizes = [1, 512], strides = [1, 1]} : vector<8x512xf32> to vector<1x512xf32>
    %890 = vector.broadcast %888 : vector<16x1xf32> to vector<16x512xf32>
    %891 = vector.broadcast %889 : vector<1x512xf32> to vector<16x512xf32>
    %892 = arith.mulf %890, %891 : vector<16x512xf32>
    %893 = arith.addf %887, %892 : vector<16x512xf32>
    %894 = vector.extract_strided_slice %848 {offsets = [0, 7], sizes = [16, 1], strides = [1, 1]} : vector<16x8xf32> to vector<16x1xf32>
    %895 = vector.extract_strided_slice %835 {offsets = [7, 0], sizes = [1, 512], strides = [1, 1]} : vector<8x512xf32> to vector<1x512xf32>
    %896 = vector.broadcast %894 : vector<16x1xf32> to vector<16x512xf32>
    %897 = vector.broadcast %895 : vector<1x512xf32> to vector<16x512xf32>
    %898 = arith.mulf %896, %897 : vector<16x512xf32>
    %899 = arith.addf %893, %898 : vector<16x512xf32>
    %c0_843 = arith.constant 0 : index
    %c0_844 = arith.constant 0 : index
    %900 = vector.load %arg13[%c0_843, %c0_844] : memref<16x512xf32, #tpu.memory_space<vmem>>, vector<16x512xf32>
    tpu.vector_store %arg13[%c0_843, %c0_844], %899 {strides = array<i32>} : memref<16x512xf32, #tpu.memory_space<vmem>>, vector<16x512xf32>,
    return
  }
  func.func @transform_0(%arg0: i32, %arg1: memref<8xi32, #tpu.memory_space<smem>>, %arg2: memref<8xi32, #tpu.memory_space<smem>>, %arg3: memref<8x8xi32, #tpu.memory_space<smem>>, %arg4: memref<8x8xi32, #tpu.memory_space<smem>>) -> (i32, i32, i32) {
    %c0_i32 = arith.constant 0 : i32
    %c0_i32_0 = arith.constant 0 : i32
    %c0_i32_1 = arith.constant 0 : i32
    %c0_i32_2 = arith.constant 0 : i32
    return %c0_i32, %c0_i32_0, %c0_i32_1 : i32, i32, i32
  }
  func.func @transform_1(%arg0: i32, %arg1: memref<8xi32, #tpu.memory_space<smem>>, %arg2: memref<8xi32, #tpu.memory_space<smem>>, %arg3: memref<8x8xi32, #tpu.memory_space<smem>>, %arg4: memref<8x8xi32, #tpu.memory_space<smem>>) -> (i32, i32, i32) {
    %c0_i32 = arith.constant 0 : i32
    %c0_i32_0 = arith.constant 0 : i32
    %c0_i32_1 = arith.constant 0 : i32
    %c0_i32_2 = arith.constant 0 : i32
    return %c0_i32, %c0_i32_0, %c0_i32_1 : i32, i32, i32
  }
  func.func @transform_2(%arg0: i32, %arg1: memref<8xi32, #tpu.memory_space<smem>>, %arg2: memref<8xi32, #tpu.memory_space<smem>>, %arg3: memref<8x8xi32, #tpu.memory_space<smem>>, %arg4: memref<8x8xi32, #tpu.memory_space<smem>>) -> (i32, i32, i32) {
    %c0_i32 = arith.constant 0 : i32
    %c0_i32_0 = arith.constant 0 : i32
    %c0_i32_1 = arith.constant 0 : i32
    %c0_i32_2 = arith.constant 0 : i32
    return %c0_i32, %c0_i32_0, %c0_i32_1 : i32, i32, i32
  }
  func.func @transform_4(%arg0: i32, %arg1: memref<8xi32, #tpu.memory_space<smem>>, %arg2: memref<8xi32, #tpu.memory_space<smem>>, %arg3: memref<8x8xi32, #tpu.memory_space<smem>>, %arg4: memref<8x8xi32, #tpu.memory_space<smem>>) -> (i32, i32) {
    %c0_i32 = arith.constant 0 : i32
    %c0_i32_0 = arith.constant 0 : i32
    %c0_i32_1 = arith.constant 0 : i32
    return %c0_i32, %c0_i32_0 : i32, i32
  }
  func.func @transform_5(%arg0: i32, %arg1: memref<8xi32, #tpu.memory_space<smem>>, %arg2: memref<8xi32, #tpu.memory_space<smem>>, %arg3: memref<8x8xi32, #tpu.memory_space<smem>>, %arg4: memref<8x8xi32, #tpu.memory_space<smem>>) -> (i32, i32) {
    %c0_i32 = arith.constant 0 : i32
    %c0_i32_0 = arith.constant 0 : i32
    %c0_i32_1 = arith.constant 0 : i32
    return %c0_i32, %c0_i32_0 : i32, i32
  }
  func.func @transform_6(%arg0: i32, %arg1: memref<8xi32, #tpu.memory_space<smem>>, %arg2: memref<8xi32, #tpu.memory_space<smem>>, %arg3: memref<8x8xi32, #tpu.memory_space<smem>>, %arg4: memref<8x8xi32, #tpu.memory_space<smem>>) -> (i32, i32) {
    %c0_i32 = arith.constant 0 : i32
    %c0_i32_0 = arith.constant 0 : i32
    %c0_i32_1 = arith.constant 0 : i32
    return %c0_i32, %c0_i32_0 : i32, i32
  }
  func.func @transform_7(%arg0: i32, %arg1: memref<8xi32, #tpu.memory_space<smem>>, %arg2: memref<8xi32, #tpu.memory_space<smem>>, %arg3: memref<8x8xi32, #tpu.memory_space<smem>>, %arg4: memref<8x8xi32, #tpu.memory_space<smem>>) -> (i32, i32) {
    %c0_i32 = arith.constant 0 : i32
    %c0_i32_0 = arith.constant 0 : i32
    %c0_i32_1 = arith.constant 0 : i32
    return %c0_i32, %c0_i32_0 : i32, i32
  }
  func.func @transform_8(%arg0: i32, %arg1: memref<8xi32, #tpu.memory_space<smem>>, %arg2: memref<8xi32, #tpu.memory_space<smem>>, %arg3: memref<8x8xi32, #tpu.memory_space<smem>>, %arg4: memref<8x8xi32, #tpu.memory_space<smem>>) -> (i32, i32) {
    %c0_i32 = arith.constant 0 : i32
    %c0_i32_0 = arith.constant 0 : i32
    %c0_i32_1 = arith.constant 0 : i32
    return %c0_i32, %c0_i32_0 : i32, i32
  }
  func.func @transform_9(%arg0: i32, %arg1: memref<8xi32, #tpu.memory_space<smem>>, %arg2: memref<8xi32, #tpu.memory_space<smem>>, %arg3: memref<8x8xi32, #tpu.memory_space<smem>>, %arg4: memref<8x8xi32, #tpu.memory_space<smem>>) -> (i32, i32) {
    %c0_i32 = arith.constant 0 : i32
    %c0_i32_0 = arith.constant 0 : i32
    %c0_i32_1 = arith.constant 0 : i32
    return %c0_i32, %c0_i32_0 : i32, i32
  }
}

</mosaic_0001>

<llo_original>
// kernel: tpu_custom_call.1
$region0: #{tpu_custom_call.1}
  #allocation0 [shape = 'u32[]', space=smem, size = 0x4, offset = 0x4, fixed_abs, tag = 'smem constant byte address 0x4 - core index']
  #allocation1 [shape = 'u32[72,128]{1,0:T(1,128)}', space=vmem, size = 0x9000, scoped, tag = 'internal scratch']
  #allocation2 [shape = 'f32[8,512]{1,0:T(8,128)}', space=vmem, size = 0x4000, scoped, tag = 'scratch operand']
  #allocation3 [shape = 'f32[8,512]{1,0:T(8,128)}', space=vmem, size = 0x4000, scoped, tag = 'scratch operand']
  #allocation4 [shape = 'f32[64,512]{1,0:T(8,128)}', space=vmem, size = 0x20000, scoped, tag = 'scratch operand']
  #allocation5 [shape = 'f32[64,512]{1,0:T(8,128)}', space=vmem, size = 0x20000, scoped, tag = 'scratch operand']
  #allocation6 [shape = 'bf16[512,512]{1,0:T(8,128)(2,1)}', space=vmem, size = 0x80000, scoped, tag = 'scratch operand']
  #allocation7 [shape = 's32[1]{0}', space=sflag, size = 0x4, scoped, tag = 'scratch operand']
  #allocation8 [shape = 's32[1]{0}', space=sflag, size = 0x4, scoped, tag = 'scoped memory for tpu_custom_call.1']
  #allocation9 [shape = 'u8[512]{0}', space=smem, size = 0x200, scoped, tag = 'prefetched SMEM operand 0']
  #allocation10 [shape = 'u8[512]{0}', space=smem, size = 0x200, scoped, tag = 'prefetched SMEM operand 1']
  #allocation11 [shape = 'u8[4096]{0}', space=smem, size = 0x1000, scoped, tag = 'prefetched SMEM operand 2']
  #allocation12 [shape = 'u8[4096]{0}', space=smem, size = 0x1000, scoped, tag = 'prefetched SMEM operand 3']
  #allocation23 [shape = 's32[]', space=sflag, size = 0x4, offset = 0, fixed_abs, tag = 'sflag constant byte address 0x0 - dummy sync flag']
  #allocation24 [shape = 's32[]', space=sflag, size = 0x4, offset = 0, fixed_abs, tag = 'sflag constant byte address 0x0 - dummy sync flag']
  #allocation25 [shape = 'u32[]', space=smem, size = 0x4, offset = 0x44, fixed_abs, tag = 'smem constant byte address 0x44 - assertion arg 0']
  #allocation26 [shape = 'u32[]', space=smem, size = 0x4, offset = 0x48, fixed_abs, tag = 'smem constant byte address 0x48 - assertion arg 1']
  %s0 = inlined_call_operand.vmem [shape: s32[8], index: 0, kind: input, shape index: {}]
  %s1 = inlined_call_operand.vmem [shape: s32[8], index: 1, kind: input, shape index: {}]
  %s2 = inlined_call_operand.vmem [shape: s32[8,8], index: 2, kind: input, shape index: {}]
  %s3 = inlined_call_operand.vmem [shape: s32[8,8], index: 3, kind: input, shape index: {}]
  %s4 = inlined_call_operand.hbm [shape: f32[32,1,512], index: 4, kind: input, shape index: {}]
  %s5 = inlined_call_operand.hbm [shape: f32[64,1,512], index: 5, kind: input, shape index: {}]
  %s6 = inlined_call_operand.hbm [shape: f32[17,1,512], index: 6, kind: input, shape index: {}]
  %s7 = inlined_call_operand.hbm [shape: bf16[512,512], index: 7, kind: input, shape index: {}]
  %s8 = inlined_call_operand.vmem [shape: f32[1,512], index: 8, kind: input, shape index: {}]
  %s9 = inlined_call_operand.vmem [shape: f32[16,8], index: 9, kind: input, shape index: {}]
  %s10 = inlined_call_operand.vmem [shape: f32[16,1], index: 10, kind: input, shape index: {}]
  %s11 = inlined_call_operand.hbm [shape: f32[8,128], index: 11, kind: output, shape index: {0}]
  %s12 = inlined_call_operand.hbm [shape: f32[16,512], index: 12, kind: output, shape index: {1}]
  %s13 = inlined_call_operand.hbm [shape: f32[8,512], index: 13, kind: output, shape index: {2}]
  %14 = xla_tuple %s11, %s12, %s13
  %s15 = sld [smem:[#allocation0]]
  $region66: #{tpu_custom_call.1} parent=0
    _
  %s17 = ssub.s32 1, %s15
  %s18 = scalar_select 0, %s17, %s15
  %s20 = sshll.u32 %s0, 4
  %s21 = int_to_ptr.vmem [resolvable:$true] %s20
  %23 = dma.vmem_to_smem %s21, 16, [#allocation9], [#allocation8]
  %s25 = sshll.u32 %s1, 4
  %s26 = int_to_ptr.vmem [resolvable:$true] %s25
  %28 = dma.vmem_to_smem %s26, 16, [#allocation10], [#allocation8]
  %s30 = sshll.u32 %s2, 4
  %s31 = int_to_ptr.vmem [resolvable:$true] %s30
  %33 = dma.vmem_to_smem %s31, 128, [#allocation11], [#allocation8]
  %s35 = sshll.u32 %s3, 4
  %s36 = int_to_ptr.vmem [resolvable:$true] %s35
  %38 = dma.vmem_to_smem %s36, 128, [#allocation12], [#allocation8]
  %40 = dma.done [#allocation8], 288
  %41 = sfence
  $region1: #{tpu_custom_call.1} parent=0
    #allocation13 [shape = 'u8[65536]{0}', space=vmem, size = 0x10000, scoped, tag = 'input window, operand 4, single buffered']
    #allocation14 [shape = 's32[1]{0}', space=sflag, size = 0x4, scoped, tag = 'scoped memory for tpu_custom_call.1']
    #allocation15 [shape = 's32[1]{0}', space=sflag, size = 0x4, scoped, tag = 'scoped memory for tpu_custom_call.1']
    #allocation16 [shape = 'u8[131072]{0}', space=vmem, size = 0x20000, scoped, tag = 'input window, operand 5, single buffered']
    #allocation17 [shape = 's32[1]{0}', space=sflag, size = 0x4, scoped, tag = 'scoped memory for tpu_custom_call.1']
    #allocation18 [shape = 'u8[34816]{0}', space=vmem, size = 0x8800, scoped, tag = 'input window, operand 6, single buffered']
    #allocation19 [shape = 'u8[4096]{0}', space=vmem, size = 0x1000, scoped, tag = 'output window, operand 0, single buffered']
    #allocation20 [shape = 'u8[32768]{0}', space=vmem, size = 0x8000, scoped, tag = 'output window, operand 1, single buffered']
    #allocation21 [shape = 's32[1]{0}', space=sflag, size = 0x4, scoped, tag = 'scoped memory for tpu_custom_call.1']
    #allocation22 [shape = 'u8[16384]{0}', space=vmem, size = 0x4000, scoped, tag = 'output window, operand 2, single buffered']
    %42 = vsyncpa [#allocation14], 0
    %43 = vsyncpa [#allocation17], 0
    %44 = vsyncpa [#allocation15], 0
    %45 = vsyncpa [#allocation21], 0
    // Predicated region
    $region2: #{tpu_custom_call.1} parent=1 // pred_check
      _
    $region3: #{tpu_custom_call.1} parent=1 // pred_check_branch
      %47 = sbr.rel (0) target = $region5
    $region4: #{tpu_custom_call.1} parent=1 // pred_region
      %49 = vsyncadd [#allocation14], 0
      %s50 = sshll.u32 %s4, 4
      %s51 = int_to_ptr.hbm [resolvable:$true] %s50
      %s52 = sshll.u32 [#allocation13], 4
      %s53 = int_to_ptr.vmem [resolvable:$true] %s52
      %58 = dma.hbm_to_vmem [thread:$0]  %s51, 2048, %s53, [#allocation14], 64, 64, 4
    $region5: #{tpu_custom_call.1} parent=1 // pred_fallthru
      _
    // Predicated region
    $region6: #{tpu_custom_call.1} parent=1 // pred_check
      _
    $region7: #{tpu_custom_call.1} parent=1 // pred_check_branch
      %60 = sbr.rel (0) target = $region9
    $region8: #{tpu_custom_call.1} parent=1 // pred_region
      %62 = vsyncadd [#allocation17], 0
      %s63 = sshll.u32 %s5, 4
      %s64 = int_to_ptr.hbm [resolvable:$true] %s63
      %s65 = sshll.u32 [#allocation16], 4
      %s66 = int_to_ptr.vmem [resolvable:$true] %s65
      %71 = dma.hbm_to_vmem [thread:$0]  %s64, 4096, %s66, [#allocation17], 64, 64, 4
    $region9: #{tpu_custom_call.1} parent=1 // pred_fallthru
      _
    // Predicated region
    $region10: #{tpu_custom_call.1} parent=1 // pred_check
      _
    $region11: #{tpu_custom_call.1} parent=1 // pred_check_branch
      %73 = sbr.rel (0) target = $region13
    $region12: #{tpu_custom_call.1} parent=1 // pred_region
      %75 = vsyncadd [#allocation17], 0
      %s76 = sshll.u32 %s6, 4
      %s77 = int_to_ptr.hbm [resolvable:$true] %s76
      %s78 = sshll.u32 [#allocation18], 4
      %s79 = int_to_ptr.vmem [resolvable:$true] %s78
      %84 = dma.hbm_to_vmem [thread:$0]  %s77, 1088, %s79, [#allocation17], 64, 64, 4
    $region13: #{tpu_custom_call.1} parent=1 // pred_fallthru
      _
    // Predicated region
    $region14: #{tpu_custom_call.1} parent=1 // pred_check
      _
    $region15: #{tpu_custom_call.1} parent=1 // pred_check_branch
      %86 = sbr.rel (0) target = $region17
    $region16: #{tpu_custom_call.1} parent=1 // pred_region
      _
    $region17: #{tpu_custom_call.1} parent=1 // pred_fallthru
      _
    // Predicated region
    $region18: #{tpu_custom_call.1} parent=1 // pred_check
      _
    $region19: #{tpu_custom_call.1} parent=1 // pred_check_branch
      %88 = sbr.rel (0) target = $region21
    $region20: #{tpu_custom_call.1} parent=1 // pred_region
      _
    $region21: #{tpu_custom_call.1} parent=1 // pred_fallthru
      _
    // Predicated region
    $region22: #{tpu_custom_call.1} parent=1 // pred_check
      _
    $region23: #{tpu_custom_call.1} parent=1 // pred_check_branch
      %90 = sbr.rel (0) target = $region25
    $region24: #{tpu_custom_call.1} parent=1 // pred_region
      _
    $region25: #{tpu_custom_call.1} parent=1 // pred_fallthru
      _
    // Predicated region
    $region26: #{tpu_custom_call.1} parent=1 // pred_check
      _
    $region27: #{tpu_custom_call.1} parent=1 // pred_check_branch
      %92 = sbr.rel (0) target = $region29
    $region28: #{tpu_custom_call.1} parent=1 // pred_region
      %94 = dma.done [#allocation14], 2048
    $region29: #{tpu_custom_call.1} parent=1 // pred_fallthru
      _
    // Predicated region
    $region30: #{tpu_custom_call.1} parent=1 // pred_check
      _
    $region31: #{tpu_custom_call.1} parent=1 // pred_check_branch
      %96 = sbr.rel (0) target = $region33
    $region32: #{tpu_custom_call.1} parent=1 // pred_region
      %98 = dma.done [#allocation17], 4096
    $region33: #{tpu_custom_call.1} parent=1 // pred_fallthru
      _
    // Predicated region
    $region34: #{tpu_custom_call.1} parent=1 // pred_check
      _
    $region35: #{tpu_custom_call.1} parent=1 // pred_check_branch
      %100 = sbr.rel (0) target = $region37
    $region36: #{tpu_custom_call.1} parent=1 // pred_region
      %102 = dma.done [#allocation17], 1088
    $region37: #{tpu_custom_call.1} parent=1 // pred_fallthru
      _
    // Predicated region
    $region38: #{tpu_custom_call.1} parent=1 // pred_check
      _
    $region39: #{tpu_custom_call.1} parent=1 // pred_check_branch
      %104 = sbr.rel target = $region41
    $region40: #{tpu_custom_call.1} parent=1 // pred_region
      %105 = sst [smem:[#allocation25]] [#allocation24]
      %106 = sst [smem:[#allocation26]] [#allocation23]
    $region41: #{tpu_custom_call.1} parent=1 // pred_fallthru
      _
    %108 = shalt.err (0)
    %s110 = sshll.u32 %s7, 4
    %s111 = int_to_ptr.hbm [resolvable:$true] %s110
    %s112 = sshll.u32 [#allocation6], 4
    %s113 = int_to_ptr.vmem [resolvable:$true] %s112
    %115 = dma.hbm_to_vmem [thread:$0]  %s111, 16384, %s113, [#allocation7]
    %s116 = sld [smem:[#allocation9]]
    %s117 = smul.u32 %s116, 4
    %s118 = scalar_lea.vmem [#allocation13], %s117
    %v119 = vld [vmem:[%s118] sm:$0xf]
    %v120 = vlaneseq
    %vm121 = vcmp.ge.s32.totalorder %v120, 0
    %vm122 = vcmp.lt.s32.totalorder %v120, 512
    %vm123 = vmand %vm121, %vm122
    %124 = vst.msk [vmem:[#allocation2] ss:$8 sm:$0xf] %vm123, %v119
    %125 = vst.msk [vmem:[#allocation2] ss:$8 sm:$0x0] %vm123, %v119
    %s126 = sld [smem:[#allocation10]]
    %s127 = smul.u32 %s126, 4
    %s128 = scalar_lea.vmem [#allocation16], %s127
    %v129 = vld [vmem:[%s128] sm:$0xf]
    %130 = vst.msk [vmem:[#allocation3] ss:$8 sm:$0xf] %vm123, %v129
    %131 = vst.msk [vmem:[#allocation3] ss:$8 sm:$0x0] %vm123, %v129
    %s132 = sld [smem:[#allocation11]]
    %s133 = smul.u32 %s132, 4
    %s134 = scalar_lea.vmem [#allocation16], %s133
    %v135 = vld [vmem:[%s134] sm:$0xf]
    %136 = vst.msk [vmem:[#allocation4] ss:$8 sm:$0xf] %vm123, %v135
    %137 = vst.msk [vmem:[#allocation4] ss:$8 sm:$0x0] %vm123, %v135
    %s138 = sld [smem:[#allocation12]]
    %s139 = smul.u32 %s138, 4
    %s140 = scalar_lea.vmem [#allocation18], %s139
    %v141 = vld [vmem:[%s140] sm:$0xf]
    %142 = vst.msk [vmem:[#allocation5] ss:$8 sm:$0xf] %vm123, %v141
    %143 = vst.msk [vmem:[#allocation5] ss:$8 sm:$0x0] %vm123, %v141
    %s144 = sld [smem:[#allocation11 + $0x1]]
    %s145 = smul.u32 %s144, 4
    %s146 = scalar_lea.vmem [#allocation16], %s145
    %v147 = vld [vmem:[%s146] sm:$0xf]
    %s148 = scalar_lea.vmem [#allocation4], 32
    %149 = vst.msk [vmem:[%s148] ss:$8 sm:$0xf] %vm123, %v147
    %150 = vst.msk [vmem:[%s148] ss:$8 sm:$0x0] %vm123, %v147
    %s151 = sld [smem:[#allocation12 + $0x1]]
    %s152 = smul.u32 %s151, 4
    %s153 = scalar_lea.vmem [#allocation18], %s152
    %v154 = vld [vmem:[%s153] sm:$0xf]
    %s155 = scalar_lea.vmem [#allocation5], 32
    %156 = vst.msk [vmem:[%s155] ss:$8 sm:$0xf] %vm123, %v154
    %157 = vst.msk [vmem:[%s155] ss:$8 sm:$0x0] %vm123, %v154
    %s158 = sld [smem:[#allocation11 + $0x2]]
    %s159 = smul.u32 %s158, 4
    %s160 = scalar_lea.vmem [#allocation16], %s159
    %v161 = vld [vmem:[%s160] sm:$0xf]
    %s162 = scalar_lea.vmem [#allocation4], 64
    %163 = vst.msk [vmem:[%s162] ss:$8 sm:$0xf] %vm123, %v161
    %164 = vst.msk [vmem:[%s162] ss:$8 sm:$0x0] %vm123, %v161
    %s165 = sld [smem:[#allocation12 + $0x2]]
    %s166 = smul.u32 %s165, 4
    %s167 = scalar_lea.vmem [#allocation18], %s166
    %v168 = vld [vmem:[%s167] sm:$0xf]
    %s169 = scalar_lea.vmem [#allocation5], 64
    %170 = vst.msk [vmem:[%s169] ss:$8 sm:$0xf] %vm123, %v168
    %171 = vst.msk [vmem:[%s169] ss:$8 sm:$0x0] %vm123, %v168
    %s172 = sld [smem:[#allocation11 + $0x3]]
    %s173 = smul.u32 %s172, 4
    %s174 = scalar_lea.vmem [#allocation16], %s173
    %v175 = vld [vmem:[%s174] sm:$0xf]
    %s176 = scalar_lea.vmem [#allocation4], 96
    %177 = vst.msk [vmem:[%s176] ss:$8 sm:$0xf] %vm123, %v175
    %178 = vst.msk [vmem:[%s176] ss:$8 sm:$0x0] %vm123, %v175
    %s179 = sld [smem:[#allocation12 + $0x3]]
    %s180 = smul.u32 %s179, 4
    %s181 = scalar_lea.vmem [#allocation18], %s180
    %v182 = vld [vmem:[%s181] sm:$0xf]
    %s183 = scalar_lea.vmem [#allocation5], 96
    %184 = vst.msk [vmem:[%s183] ss:$8 sm:$0xf] %vm123, %v182
    %185 = vst.msk [vmem:[%s183] ss:$8 sm:$0x0] %vm123, %v182
    %s186 = sld [smem:[#allocation11 + $0x4]]
    %s187 = smul.u32 %s186, 4
    %s188 = scalar_lea.vmem [#allocation16], %s187
    %v189 = vld [vmem:[%s188] sm:$0xf]
    %s190 = scalar_lea.vmem [#allocation4], 128
    %191 = vst.msk [vmem:[%s190] ss:$8 sm:$0xf] %vm123, %v189
    %192 = vst.msk [vmem:[%s190] ss:$8 sm:$0x0] %vm123, %v189
    %s193 = sld [smem:[#allocation12 + $0x4]]
    %s194 = smul.u32 %s193, 4
    %s195 = scalar_lea.vmem [#allocation18], %s194
    %v196 = vld [vmem:[%s195] sm:$0xf]
    %s197 = scalar_lea.vmem [#allocation5], 128
    %198 = vst.msk [vmem:[%s197] ss:$8 sm:$0xf] %vm123, %v196
    %199 = vst.msk [vmem:[%s197] ss:$8 sm:$0x0] %vm123, %v196
    %s200 = sld [smem:[#allocation11 + $0x5]]
    %s201 = smul.u32 %s200, 4
    %s202 = scalar_lea.vmem [#allocation16], %s201
    %v203 = vld [vmem:[%s202] sm:$0xf]
    %s204 = scalar_lea.vmem [#allocation4], 160
    %205 = vst.msk [vmem:[%s204] ss:$8 sm:$0xf] %vm123, %v203
    %206 = vst.msk [vmem:[%s204] ss:$8 sm:$0x0] %vm123, %v203
    %s207 = sld [smem:[#allocation12 + $0x5]]
    %s208 = smul.u32 %s207, 4
    %s209 = scalar_lea.vmem [#allocation18], %s208
    %v210 = vld [vmem:[%s209] sm:$0xf]
    %s211 = scalar_lea.vmem [#allocation5], 160
    %212 = vst.msk [vmem:[%s211] ss:$8 sm:$0xf] %vm123, %v210
    %213 = vst.msk [vmem:[%s211] ss:$8 sm:$0x0] %vm123, %v210
    %s214 = sld [smem:[#allocation11 + $0x6]]
    %s215 = smul.u32 %s214, 4
    %s216 = scalar_lea.vmem [#allocation16], %s215
    %v217 = vld [vmem:[%s216] sm:$0xf]
    %s218 = scalar_lea.vmem [#allocation4], 192
    %219 = vst.msk [vmem:[%s218] ss:$8 sm:$0xf] %vm123, %v217
    %220 = vst.msk [vmem:[%s218] ss:$8 sm:$0x0] %vm123, %v217
    %s221 = sld [smem:[#allocation12 + $0x6]]
    %s222 = smul.u32 %s221, 4
    %s223 = scalar_lea.vmem [#allocation18], %s222
    %v224 = vld [vmem:[%s223] sm:$0xf]
    %s225 = scalar_lea.vmem [#allocation5], 192
    %226 = vst.msk [vmem:[%s225] ss:$8 sm:$0xf] %vm123, %v224
    %227 = vst.msk [vmem:[%s225] ss:$8 sm:$0x0] %vm123, %v224
    %s228 = sld [smem:[#allocation11 + $0x7]]
    %s229 = smul.u32 %s228, 4
    %s230 = scalar_lea.vmem [#allocation16], %s229
    %v231 = vld [vmem:[%s230] sm:$0xf]
    %s232 = scalar_lea.vmem [#allocation4], 224
    %233 = vst.msk [vmem:[%s232] ss:$8 sm:$0xf] %vm123, %v231
    %234 = vst.msk [vmem:[%s232] ss:$8 sm:$0x0] %vm123, %v231
    %s235 = sld [smem:[#allocation12 + $0x7]]
    %s236 = smul.u32 %s235, 4
    %s237 = scalar_lea.vmem [#allocation18], %s236
    %v238 = vld [vmem:[%s237] sm:$0xf]
    %s239 = scalar_lea.vmem [#allocation5], 224
    %240 = vst.msk [vmem:[%s239] ss:$8 sm:$0xf] %vm123, %v238
    %241 = vst.msk [vmem:[%s239] ss:$8 sm:$0x0] %vm123, %v238
    %s242 = sld [smem:[#allocation9 + $0x1]]
    %s243 = smul.u32 %s242, 4
    %s244 = scalar_lea.vmem [#allocation13], %s243
    %v245 = vld [vmem:[%s244] sm:$0xf]
    %s246 = scalar_lea.vmem [#allocation2], 1
    %247 = vst.msk [vmem:[%s246] ss:$8 sm:$0xf] %vm123, %v245
    %248 = vst.msk [vmem:[%s246] ss:$8 sm:$0x0] %vm123, %v245
    %s249 = sld [smem:[#allocation10 + $0x1]]
    %s250 = smul.u32 %s249, 4
    %s251 = scalar_lea.vmem [#allocation16], %s250
    %v252 = vld [vmem:[%s251] sm:$0xf]
    %s253 = scalar_lea.vmem [#allocation3], 1
    %254 = vst.msk [vmem:[%s253] ss:$8 sm:$0xf] %vm123, %v252
    %255 = vst.msk [vmem:[%s253] ss:$8 sm:$0x0] %vm123, %v252
    %s256 = sld [smem:[#allocation11 + $0x80]]
    %s257 = smul.u32 %s256, 4
    %s258 = scalar_lea.vmem [#allocation16], %s257
    %v259 = vld [vmem:[%s258] sm:$0xf]
    %s260 = scalar_lea.vmem [#allocation4], 1
    %261 = vst.msk [vmem:[%s260] ss:$8 sm:$0xf] %vm123, %v259
    %262 = vst.msk [vmem:[%s260] ss:$8 sm:$0x0] %vm123, %v259
    %s263 = sld [smem:[#allocation12 + $0x80]]
    %s264 = smul.u32 %s263, 4
    %s265 = scalar_lea.vmem [#allocation18], %s264
    %v266 = vld [vmem:[%s265] sm:$0xf]
    %s267 = scalar_lea.vmem [#allocation5], 1
    %268 = vst.msk [vmem:[%s267] ss:$8 sm:$0xf] %vm123, %v266
    %269 = vst.msk [vmem:[%s267] ss:$8 sm:$0x0] %vm123, %v266
    %s270 = sld [smem:[#allocation11 + $0x81]]
    %s271 = smul.u32 %s270, 4
    %s272 = scalar_lea.vmem [#allocation16], %s271
    %v273 = vld [vmem:[%s272] sm:$0xf]
    %s274 = scalar_lea.vmem [#allocation4], 33
    %275 = vst.msk [vmem:[%s274] ss:$8 sm:$0xf] %vm123, %v273
    %276 = vst.msk [vmem:[%s274] ss:$8 sm:$0x0] %vm123, %v273
    %s277 = sld [smem:[#allocation12 + $0x81]]
    %s278 = smul.u32 %s277, 4
    %s279 = scalar_lea.vmem [#allocation18], %s278
    %v280 = vld [vmem:[%s279] sm:$0xf]
    %s281 = scalar_lea.vmem [#allocation5], 33
    %282 = vst.msk [vmem:[%s281] ss:$8 sm:$0xf] %vm123, %v280
    %283 = vst.msk [vmem:[%s281] ss:$8 sm:$0x0] %vm123, %v280
    %s284 = sld [smem:[#allocation11 + $0x82]]
    %s285 = smul.u32 %s284, 4
    %s286 = scalar_lea.vmem [#allocation16], %s285
    %v287 = vld [vmem:[%s286] sm:$0xf]
    %s288 = scalar_lea.vmem [#allocation4], 65
    %289 = vst.msk [vmem:[%s288] ss:$8 sm:$0xf] %vm123, %v287
    %290 = vst.msk [vmem:[%s288] ss:$8 sm:$0x0] %vm123, %v287
    %s291 = sld [smem:[#allocation12 + $0x82]]
    %s292 = smul.u32 %s291, 4
    %s293 = scalar_lea.vmem [#allocation18], %s292
    %v294 = vld [vmem:[%s293] sm:$0xf]
    %s295 = scalar_lea.vmem [#allocation5], 65
    %296 = vst.msk [vmem:[%s295] ss:$8 sm:$0xf] %vm123, %v294
    %297 = vst.msk [vmem:[%s295] ss:$8 sm:$0x0] %vm123, %v294
    %s298 = sld [smem:[#allocation11 + $0x83]]
    %s299 = smul.u32 %s298, 4
    %s300 = scalar_lea.vmem [#allocation16], %s299
    %v301 = vld [vmem:[%s300] sm:$0xf]
    %s302 = scalar_lea.vmem [#allocation4], 97
    %303 = vst.msk [vmem:[%s302] ss:$8 sm:$0xf] %vm123, %v301
    %304 = vst.msk [vmem:[%s302] ss:$8 sm:$0x0] %vm123, %v301
    %s305 = sld [smem:[#allocation12 + $0x83]]
    %s306 = smul.u32 %s305, 4
    %s307 = scalar_lea.vmem [#allocation18], %s306
    %v308 = vld [vmem:[%s307] sm:$0xf]
    %s309 = scalar_lea.vmem [#allocation5], 97
    %310 = vst.msk [vmem:[%s309] ss:$8 sm:$0xf] %vm123, %v308
    %311 = vst.msk [vmem:[%s309] ss:$8 sm:$0x0] %vm123, %v308
    %s312 = sld [smem:[#allocation11 + $0x84]]
    %s313 = smul.u32 %s312, 4
    %s314 = scalar_lea.vmem [#allocation16], %s313
    %v315 = vld [vmem:[%s314] sm:$0xf]
    %s316 = scalar_lea.vmem [#allocation4], 129
    %317 = vst.msk [vmem:[%s316] ss:$8 sm:$0xf] %vm123, %v315
    %318 = vst.msk [vmem:[%s316] ss:$8 sm:$0x0] %vm123, %v315
    %s319 = sld [smem:[#allocation12 + $0x84]]
    %s320 = smul.u32 %s319, 4
    %s321 = scalar_lea.vmem [#allocation18], %s320
    %v322 = vld [vmem:[%s321] sm:$0xf]
    %s323 = scalar_lea.vmem [#allocation5], 129
    %324 = vst.msk [vmem:[%s323] ss:$8 sm:$0xf] %vm123, %v322
    %325 = vst.msk [vmem:[%s323] ss:$8 sm:$0x0] %vm123, %v322
    %s326 = sld [smem:[#allocation11 + $0x85]]
    %s327 = smul.u32 %s326, 4
    %s328 = scalar_lea.vmem [#allocation16], %s327
    %v329 = vld [vmem:[%s328] sm:$0xf]
    %s330 = scalar_lea.vmem [#allocation4], 161
    %331 = vst.msk [vmem:[%s330] ss:$8 sm:$0xf] %vm123, %v329
    %332 = vst.msk [vmem:[%s330] ss:$8 sm:$0x0] %vm123, %v329
    %s333 = sld [smem:[#allocation12 + $0x85]]
    %s334 = smul.u32 %s333, 4
    %s335 = scalar_lea.vmem [#allocation18], %s334
    %v336 = vld [vmem:[%s335] sm:$0xf]
    %s337 = scalar_lea.vmem [#allocation5], 161
    %338 = vst.msk [vmem:[%s337] ss:$8 sm:$0xf] %vm123, %v336
    %339 = vst.msk [vmem:[%s337] ss:$8 sm:$0x0] %vm123, %v336
    %s340 = sld [smem:[#allocation11 + $0x86]]
    %s341 = smul.u32 %s340, 4
    %s342 = scalar_lea.vmem [#allocation16], %s341
    %v343 = vld [vmem:[%s342] sm:$0xf]
    %s344 = scalar_lea.vmem [#allocation4], 193
    %345 = vst.msk [vmem:[%s344] ss:$8 sm:$0xf] %vm123, %v343
    %346 = vst.msk [vmem:[%s344] ss:$8 sm:$0x0] %vm123, %v343
    %s347 = sld [smem:[#allocation12 + $0x86]]
    %s348 = smul.u32 %s347, 4
    %s349 = scalar_lea.vmem [#allocation18], %s348
    %v350 = vld [vmem:[%s349] sm:$0xf]
    %s351 = scalar_lea.vmem [#allocation5], 193
    %352 = vst.msk [vmem:[%s351] ss:$8 sm:$0xf] %vm123, %v350
    %353 = vst.msk [vmem:[%s351] ss:$8 sm:$0x0] %vm123, %v350
    %s354 = sld [smem:[#allocation11 + $0x87]]
    %s355 = smul.u32 %s354, 4
    %s356 = scalar_lea.vmem [#allocation16], %s355
    %v357 = vld [vmem:[%s356] sm:$0xf]
    %s358 = scalar_lea.vmem [#allocation4], 225
    %359 = vst.msk [vmem:[%s358] ss:$8 sm:$0xf] %vm123, %v357
    %360 = vst.msk [vmem:[%s358] ss:$8 sm:$0x0] %vm123, %v357
    %s361 = sld [smem:[#allocation12 + $0x87]]
    %s362 = smul.u32 %s361, 4
    %s363 = scalar_lea.vmem [#allocation18], %s362
    %v364 = vld [vmem:[%s363] sm:$0xf]
    %s365 = scalar_lea.vmem [#allocation5], 225
    %366 = vst.msk [vmem:[%s365] ss:$8 sm:$0xf] %vm123, %v364
    %367 = vst.msk [vmem:[%s365] ss:$8 sm:$0x0] %vm123, %v364
    %s368 = sld [smem:[#allocation9 + $0x2]]
    %s369 = smul.u32 %s368, 4
    %s370 = scalar_lea.vmem [#allocation13], %s369
    %v371 = vld [vmem:[%s370] sm:$0xf]
    %s372 = scalar_lea.vmem [#allocation2], 2
    %373 = vst.msk [vmem:[%s372] ss:$8 sm:$0xf] %vm123, %v371
    %374 = vst.msk [vmem:[%s372] ss:$8 sm:$0x0] %vm123, %v371
    %s375 = sld [smem:[#allocation10 + $0x2]]
    %s376 = smul.u32 %s375, 4
    %s377 = scalar_lea.vmem [#allocation16], %s376
    %v378 = vld [vmem:[%s377] sm:$0xf]
    %s379 = scalar_lea.vmem [#allocation3], 2
    %380 = vst.msk [vmem:[%s379] ss:$8 sm:$0xf] %vm123, %v378
    %381 = vst.msk [vmem:[%s379] ss:$8 sm:$0x0] %vm123, %v378
    %s382 = sld [smem:[#allocation11 + $0x100]]
    %s383 = smul.u32 %s382, 4
    %s384 = scalar_lea.vmem [#allocation16], %s383
    %v385 = vld [vmem:[%s384] sm:$0xf]
    %s386 = scalar_lea.vmem [#allocation4], 2
    %387 = vst.msk [vmem:[%s386] ss:$8 sm:$0xf] %vm123, %v385
    %388 = vst.msk [vmem:[%s386] ss:$8 sm:$0x0] %vm123, %v385
    %s389 = sld [smem:[#allocation12 + $0x100]]
    %s390 = smul.u32 %s389, 4
    %s391 = scalar_lea.vmem [#allocation18], %s390
    %v392 = vld [vmem:[%s391] sm:$0xf]
    %s393 = scalar_lea.vmem [#allocation5], 2
    %394 = vst.msk [vmem:[%s393] ss:$8 sm:$0xf] %vm123, %v392
    %395 = vst.msk [vmem:[%s393] ss:$8 sm:$0x0] %vm123, %v392
    %s396 = sld [smem:[#allocation11 + $0x101]]
    %s397 = smul.u32 %s396, 4
    %s398 = scalar_lea.vmem [#allocation16], %s397
    %v399 = vld [vmem:[%s398] sm:$0xf]
    %s400 = scalar_lea.vmem [#allocation4], 34
    %401 = vst.msk [vmem:[%s400] ss:$8 sm:$0xf] %vm123, %v399
    %402 = vst.msk [vmem:[%s400] ss:$8 sm:$0x0] %vm123, %v399
    %s403 = sld [smem:[#allocation12 + $0x101]]
    %s404 = smul.u32 %s403, 4
    %s405 = scalar_lea.vmem [#allocation18], %s404
    %v406 = vld [vmem:[%s405] sm:$0xf]
    %s407 = scalar_lea.vmem [#allocation5], 34
    %408 = vst.msk [vmem:[%s407] ss:$8 sm:$0xf] %vm123, %v406
    %409 = vst.msk [vmem:[%s407] ss:$8 sm:$0x0] %vm123, %v406
    %s410 = sld [smem:[#allocation11 + $0x102]]
    %s411 = smul.u32 %s410, 4
    %s412 = scalar_lea.vmem [#allocation16], %s411
    %v413 = vld [vmem:[%s412] sm:$0xf]
    %s414 = scalar_lea.vmem [#allocation4], 66
    %415 = vst.msk [vmem:[%s414] ss:$8 sm:$0xf] %vm123, %v413
    %416 = vst.msk [vmem:[%s414] ss:$8 sm:$0x0] %vm123, %v413
    %s417 = sld [smem:[#allocation12 + $0x102]]
    %s418 = smul.u32 %s417, 4
    %s419 = scalar_lea.vmem [#allocation18], %s418
    %v420 = vld [vmem:[%s419] sm:$0xf]
    %s421 = scalar_lea.vmem [#allocation5], 66
    %422 = vst.msk [vmem:[%s421] ss:$8 sm:$0xf] %vm123, %v420
    %423 = vst.msk [vmem:[%s421] ss:$8 sm:$0x0] %vm123, %v420
    %s424 = sld [smem:[#allocation11 + $0x103]]
    %s425 = smul.u32 %s424, 4
    %s426 = scalar_lea.vmem [#allocation16], %s425
    %v427 = vld [vmem:[%s426] sm:$0xf]
    %s428 = scalar_lea.vmem [#allocation4], 98
    %429 = vst.msk [vmem:[%s428] ss:$8 sm:$0xf] %vm123, %v427
    %430 = vst.msk [vmem:[%s428] ss:$8 sm:$0x0] %vm123, %v427
    %s431 = sld [smem:[#allocation12 + $0x103]]
    %s432 = smul.u32 %s431, 4
    %s433 = scalar_lea.vmem [#allocation18], %s432
    %v434 = vld [vmem:[%s433] sm:$0xf]
    %s435 = scalar_lea.vmem [#allocation5], 98
    %436 = vst.msk [vmem:[%s435] ss:$8 sm:$0xf] %vm123, %v434
    %437 = vst.msk [vmem:[%s435] ss:$8 sm:$0x0] %vm123, %v434
    %s438 = sld [smem:[#allocation11 + $0x104]]
    %s439 = smul.u32 %s438, 4
    %s440 = scalar_lea.vmem [#allocation16], %s439
    %v441 = vld [vmem:[%s440] sm:$0xf]
    %s442 = scalar_lea.vmem [#allocation4], 130
    %443 = vst.msk [vmem:[%s442] ss:$8 sm:$0xf] %vm123, %v441
    %444 = vst.msk [vmem:[%s442] ss:$8 sm:$0x0] %vm123, %v441
    %s445 = sld [smem:[#allocation12 + $0x104]]
    %s446 = smul.u32 %s445, 4
    %s447 = scalar_lea.vmem [#allocation18], %s446
    %v448 = vld [vmem:[%s447] sm:$0xf]
    %s449 = scalar_lea.vmem [#allocation5], 130
    %450 = vst.msk [vmem:[%s449] ss:$8 sm:$0xf] %vm123, %v448
    %451 = vst.msk [vmem:[%s449] ss:$8 sm:$0x0] %vm123, %v448
    %s452 = sld [smem:[#allocation11 + $0x105]]
    %s453 = smul.u32 %s452, 4
    %s454 = scalar_lea.vmem [#allocation16], %s453
    %v455 = vld [vmem:[%s454] sm:$0xf]
    %s456 = scalar_lea.vmem [#allocation4], 162
    %457 = vst.msk [vmem:[%s456] ss:$8 sm:$0xf] %vm123, %v455
    %458 = vst.msk [vmem:[%s456] ss:$8 sm:$0x0] %vm123, %v455
    %s459 = sld [smem:[#allocation12 + $0x105]]
    %s460 = smul.u32 %s459, 4
    %s461 = scalar_lea.vmem [#allocation18], %s460
    %v462 = vld [vmem:[%s461] sm:$0xf]
    %s463 = scalar_lea.vmem [#allocation5], 162
    %464 = vst.msk [vmem:[%s463] ss:$8 sm:$0xf] %vm123, %v462
    %465 = vst.msk [vmem:[%s463] ss:$8 sm:$0x0] %vm123, %v462
    %s466 = sld [smem:[#allocation11 + $0x106]]
    %s467 = smul.u32 %s466, 4
    %s468 = scalar_lea.vmem [#allocation16], %s467
    %v469 = vld [vmem:[%s468] sm:$0xf]
    %s470 = scalar_lea.vmem [#allocation4], 194
    %471 = vst.msk [vmem:[%s470] ss:$8 sm:$0xf] %vm123, %v469
    %472 = vst.msk [vmem:[%s470] ss:$8 sm:$0x0] %vm123, %v469
    %s473 = sld [smem:[#allocation12 + $0x106]]
    %s474 = smul.u32 %s473, 4
    %s475 = scalar_lea.vmem [#allocation18], %s474
    %v476 = vld [vmem:[%s475] sm:$0xf]
    %s477 = scalar_lea.vmem [#allocation5], 194
    %478 = vst.msk [vmem:[%s477] ss:$8 sm:$0xf] %vm123, %v476
    %479 = vst.msk [vmem:[%s477] ss:$8 sm:$0x0] %vm123, %v476
    %s480 = sld [smem:[#allocation11 + $0x107]]
    %s481 = smul.u32 %s480, 4
    %s482 = scalar_lea.vmem [#allocation16], %s481
    %v483 = vld [vmem:[%s482] sm:$0xf]
    %s484 = scalar_lea.vmem [#allocation4], 226
    %485 = vst.msk [vmem:[%s484] ss:$8 sm:$0xf] %vm123, %v483
    %486 = vst.msk [vmem:[%s484] ss:$8 sm:$0x0] %vm123, %v483
    %s487 = sld [smem:[#allocation12 + $0x107]]
    %s488 = smul.u32 %s487, 4
    %s489 = scalar_lea.vmem [#allocation18], %s488
    %v490 = vld [vmem:[%s489] sm:$0xf]
    %s491 = scalar_lea.vmem [#allocation5], 226
    %492 = vst.msk [vmem:[%s491] ss:$8 sm:$0xf] %vm123, %v490
    %493 = vst.msk [vmem:[%s491] ss:$8 sm:$0x0] %vm123, %v490
    %s494 = sld [smem:[#allocation9 + $0x3]]
    %s495 = smul.u32 %s494, 4
    %s496 = scalar_lea.vmem [#allocation13], %s495
    %v497 = vld [vmem:[%s496] sm:$0xf]
    %s498 = scalar_lea.vmem [#allocation2], 3
    %499 = vst.msk [vmem:[%s498] ss:$8 sm:$0xf] %vm123, %v497
    %500 = vst.msk [vmem:[%s498] ss:$8 sm:$0x0] %vm123, %v497
    %s501 = sld [smem:[#allocation10 + $0x3]]
    %s502 = smul.u32 %s501, 4
    %s503 = scalar_lea.vmem [#allocation16], %s502
    %v504 = vld [vmem:[%s503] sm:$0xf]
    %s505 = scalar_lea.vmem [#allocation3], 3
    %506 = vst.msk [vmem:[%s505] ss:$8 sm:$0xf] %vm123, %v504
    %507 = vst.msk [vmem:[%s505] ss:$8 sm:$0x0] %vm123, %v504
    %s508 = sld [smem:[#allocation11 + $0x180]]
    %s509 = smul.u32 %s508, 4
    %s510 = scalar_lea.vmem [#allocation16], %s509
    %v511 = vld [vmem:[%s510] sm:$0xf]
    %s512 = scalar_lea.vmem [#allocation4], 3
    %513 = vst.msk [vmem:[%s512] ss:$8 sm:$0xf] %vm123, %v511
    %514 = vst.msk [vmem:[%s512] ss:$8 sm:$0x0] %vm123, %v511
    %s515 = sld [smem:[#allocation12 + $0x180]]
    %s516 = smul.u32 %s515, 4
    %s517 = scalar_lea.vmem [#allocation18], %s516
    %v518 = vld [vmem:[%s517] sm:$0xf]
    %s519 = scalar_lea.vmem [#allocation5], 3
    %520 = vst.msk [vmem:[%s519] ss:$8 sm:$0xf] %vm123, %v518
    %521 = vst.msk [vmem:[%s519] ss:$8 sm:$0x0] %vm123, %v518
    %s522 = sld [smem:[#allocation11 + $0x181]]
    %s523 = smul.u32 %s522, 4
    %s524 = scalar_lea.vmem [#allocation16], %s523
    %v525 = vld [vmem:[%s524] sm:$0xf]
    %s526 = scalar_lea.vmem [#allocation4], 35
    %527 = vst.msk [vmem:[%s526] ss:$8 sm:$0xf] %vm123, %v525
    %528 = vst.msk [vmem:[%s526] ss:$8 sm:$0x0] %vm123, %v525
    %s529 = sld [smem:[#allocation12 + $0x181]]
    %s530 = smul.u32 %s529, 4
    %s531 = scalar_lea.vmem [#allocation18], %s530
    %v532 = vld [vmem:[%s531] sm:$0xf]
    %s533 = scalar_lea.vmem [#allocation5], 35
    %534 = vst.msk [vmem:[%s533] ss:$8 sm:$0xf] %vm123, %v532
    %535 = vst.msk [vmem:[%s533] ss:$8 sm:$0x0] %vm123, %v532
    %s536 = sld [smem:[#allocation11 + $0x182]]
    %s537 = smul.u32 %s536, 4
    %s538 = scalar_lea.vmem [#allocation16], %s537
    %v539 = vld [vmem:[%s538] sm:$0xf]
    %s540 = scalar_lea.vmem [#allocation4], 67
    %541 = vst.msk [vmem:[%s540] ss:$8 sm:$0xf] %vm123, %v539
    %542 = vst.msk [vmem:[%s540] ss:$8 sm:$0x0] %vm123, %v539
    %s543 = sld [smem:[#allocation12 + $0x182]]
    %s544 = smul.u32 %s543, 4
    %s545 = scalar_lea.vmem [#allocation18], %s544
    %v546 = vld [vmem:[%s545] sm:$0xf]
    %s547 = scalar_lea.vmem [#allocation5], 67
    %548 = vst.msk [vmem:[%s547] ss:$8 sm:$0xf] %vm123, %v546
    %549 = vst.msk [vmem:[%s547] ss:$8 sm:$0x0] %vm123, %v546
    %s550 = sld [smem:[#allocation11 + $0x183]]
    %s551 = smul.u32 %s550, 4
    %s552 = scalar_lea.vmem [#allocation16], %s551
    %v553 = vld [vmem:[%s552] sm:$0xf]
    %s554 = scalar_lea.vmem [#allocation4], 99
    %555 = vst.msk [vmem:[%s554] ss:$8 sm:$0xf] %vm123, %v553
    %556 = vst.msk [vmem:[%s554] ss:$8 sm:$0x0] %vm123, %v553
    %s557 = sld [smem:[#allocation12 + $0x183]]
    %s558 = smul.u32 %s557, 4
    %s559 = scalar_lea.vmem [#allocation18], %s558
    %v560 = vld [vmem:[%s559] sm:$0xf]
    %s561 = scalar_lea.vmem [#allocation5], 99
    %562 = vst.msk [vmem:[%s561] ss:$8 sm:$0xf] %vm123, %v560
    %563 = vst.msk [vmem:[%s561] ss:$8 sm:$0x0] %vm123, %v560
    %s564 = sld [smem:[#allocation11 + $0x184]]
    %s565 = smul.u32 %s564, 4
    %s566 = scalar_lea.vmem [#allocation16], %s565
    %v567 = vld [vmem:[%s566] sm:$0xf]
    %s568 = scalar_lea.vmem [#allocation4], 131
    %569 = vst.msk [vmem:[%s568] ss:$8 sm:$0xf] %vm123, %v567
    %570 = vst.msk [vmem:[%s568] ss:$8 sm:$0x0] %vm123, %v567
    %s571 = sld [smem:[#allocation12 + $0x184]]
    %s572 = smul.u32 %s571, 4
    %s573 = scalar_lea.vmem [#allocation18], %s572
    %v574 = vld [vmem:[%s573] sm:$0xf]
    %s575 = scalar_lea.vmem [#allocation5], 131
    %576 = vst.msk [vmem:[%s575] ss:$8 sm:$0xf] %vm123, %v574
    %577 = vst.msk [vmem:[%s575] ss:$8 sm:$0x0] %vm123, %v574
    %s578 = sld [smem:[#allocation11 + $0x185]]
    %s579 = smul.u32 %s578, 4
    %s580 = scalar_lea.vmem [#allocation16], %s579
    %v581 = vld [vmem:[%s580] sm:$0xf]
    %s582 = scalar_lea.vmem [#allocation4], 163
    %583 = vst.msk [vmem:[%s582] ss:$8 sm:$0xf] %vm123, %v581
    %584 = vst.msk [vmem:[%s582] ss:$8 sm:$0x0] %vm123, %v581
    %s585 = sld [smem:[#allocation12 + $0x185]]
    %s586 = smul.u32 %s585, 4
    %s587 = scalar_lea.vmem [#allocation18], %s586
    %v588 = vld [vmem:[%s587] sm:$0xf]
    %s589 = scalar_lea.vmem [#allocation5], 163
    %590 = vst.msk [vmem:[%s589] ss:$8 sm:$0xf] %vm123, %v588
    %591 = vst.msk [vmem:[%s589] ss:$8 sm:$0x0] %vm123, %v588
    %s592 = sld [smem:[#allocation11 + $0x186]]
    %s593 = smul.u32 %s592, 4
    %s594 = scalar_lea.vmem [#allocation16], %s593
    %v595 = vld [vmem:[%s594] sm:$0xf]
    %s596 = scalar_lea.vmem [#allocation4], 195
    %597 = vst.msk [vmem:[%s596] ss:$8 sm:$0xf] %vm123, %v595
    %598 = vst.msk [vmem:[%s596] ss:$8 sm:$0x0] %vm123, %v595
    %s599 = sld [smem:[#allocation12 + $0x186]]
    %s600 = smul.u32 %s599, 4
    %s601 = scalar_lea.vmem [#allocation18], %s600
    %v602 = vld [vmem:[%s601] sm:$0xf]
    %s603 = scalar_lea.vmem [#allocation5], 195
    %604 = vst.msk [vmem:[%s603] ss:$8 sm:$0xf] %vm123, %v602
    %605 = vst.msk [vmem:[%s603] ss:$8 sm:$0x0] %vm123, %v602
    %s606 = sld [smem:[#allocation11 + $0x187]]
    %s607 = smul.u32 %s606, 4
    %s608 = scalar_lea.vmem [#allocation16], %s607
    %v609 = vld [vmem:[%s608] sm:$0xf]
    %s610 = scalar_lea.vmem [#allocation4], 227
    %611 = vst.msk [vmem:[%s610] ss:$8 sm:$0xf] %vm123, %v609
    %612 = vst.msk [vmem:[%s610] ss:$8 sm:$0x0] %vm123, %v609
    %s613 = sld [smem:[#allocation12 + $0x187]]
    %s614 = smul.u32 %s613, 4
    %s615 = scalar_lea.vmem [#allocation18], %s614
    %v616 = vld [vmem:[%s615] sm:$0xf]
    %s617 = scalar_lea.vmem [#allocation5], 227
    %618 = vst.msk [vmem:[%s617] ss:$8 sm:$0xf] %vm123, %v616
    %619 = vst.msk [vmem:[%s617] ss:$8 sm:$0x0] %vm123, %v616
    %s620 = sld [smem:[#allocation9 + $0x4]]
    %s621 = smul.u32 %s620, 4
    %s622 = scalar_lea.vmem [#allocation13], %s621
    %v623 = vld [vmem:[%s622] sm:$0xf]
    %s624 = scalar_lea.vmem [#allocation2], 4
    %625 = vst.msk [vmem:[%s624] ss:$8 sm:$0xf] %vm123, %v623
    %626 = vst.msk [vmem:[%s624] ss:$8 sm:$0x0] %vm123, %v623
    %s627 = sld [smem:[#allocation10 + $0x4]]
    %s628 = smul.u32 %s627, 4
    %s629 = scalar_lea.vmem [#allocation16], %s628
    %v630 = vld [vmem:[%s629] sm:$0xf]
    %s631 = scalar_lea.vmem [#allocation3], 4
    %632 = vst.msk [vmem:[%s631] ss:$8 sm:$0xf] %vm123, %v630
    %633 = vst.msk [vmem:[%s631] ss:$8 sm:$0x0] %vm123, %v630
    %s634 = sld [smem:[#allocation11 + $0x200]]
    %s635 = smul.u32 %s634, 4
    %s636 = scalar_lea.vmem [#allocation16], %s635
    %v637 = vld [vmem:[%s636] sm:$0xf]
    %s638 = scalar_lea.vmem [#allocation4], 4
    %639 = vst.msk [vmem:[%s638] ss:$8 sm:$0xf] %vm123, %v637
    %640 = vst.msk [vmem:[%s638] ss:$8 sm:$0x0] %vm123, %v637
    %s641 = sld [smem:[#allocation12 + $0x200]]
    %s642 = smul.u32 %s641, 4
    %s643 = scalar_lea.vmem [#allocation18], %s642
    %v644 = vld [vmem:[%s643] sm:$0xf]
    %s645 = scalar_lea.vmem [#allocation5], 4
    %646 = vst.msk [vmem:[%s645] ss:$8 sm:$0xf] %vm123, %v644
    %647 = vst.msk [vmem:[%s645] ss:$8 sm:$0x0] %vm123, %v644
    %s648 = sld [smem:[#allocation11 + $0x201]]
    %s649 = smul.u32 %s648, 4
    %s650 = scalar_lea.vmem [#allocation16], %s649
    %v651 = vld [vmem:[%s650] sm:$0xf]
    %s652 = scalar_lea.vmem [#allocation4], 36
    %653 = vst.msk [vmem:[%s652] ss:$8 sm:$0xf] %vm123, %v651
    %654 = vst.msk [vmem:[%s652] ss:$8 sm:$0x0] %vm123, %v651
    %s655 = sld [smem:[#allocation12 + $0x201]]
    %s656 = smul.u32 %s655, 4
    %s657 = scalar_lea.vmem [#allocation18], %s656
    %v658 = vld [vmem:[%s657] sm:$0xf]
    %s659 = scalar_lea.vmem [#allocation5], 36
    %660 = vst.msk [vmem:[%s659] ss:$8 sm:$0xf] %vm123, %v658
    %661 = vst.msk [vmem:[%s659] ss:$8 sm:$0x0] %vm123, %v658
    %s662 = sld [smem:[#allocation11 + $0x202]]
    %s663 = smul.u32 %s662, 4
    %s664 = scalar_lea.vmem [#allocation16], %s663
    %v665 = vld [vmem:[%s664] sm:$0xf]
    %s666 = scalar_lea.vmem [#allocation4], 68
    %667 = vst.msk [vmem:[%s666] ss:$8 sm:$0xf] %vm123, %v665
    %668 = vst.msk [vmem:[%s666] ss:$8 sm:$0x0] %vm123, %v665
    %s669 = sld [smem:[#allocation12 + $0x202]]
    %s670 = smul.u32 %s669, 4
    %s671 = scalar_lea.vmem [#allocation18], %s670
    %v672 = vld [vmem:[%s671] sm:$0xf]
    %s673 = scalar_lea.vmem [#allocation5], 68
    %674 = vst.msk [vmem:[%s673] ss:$8 sm:$0xf] %vm123, %v672
    %675 = vst.msk [vmem:[%s673] ss:$8 sm:$0x0] %vm123, %v672
    %s676 = sld [smem:[#allocation11 + $0x203]]
    %s677 = smul.u32 %s676, 4
    %s678 = scalar_lea.vmem [#allocation16], %s677
    %v679 = vld [vmem:[%s678] sm:$0xf]
    %s680 = scalar_lea.vmem [#allocation4], 100
    %681 = vst.msk [vmem:[%s680] ss:$8 sm:$0xf] %vm123, %v679
    %682 = vst.msk [vmem:[%s680] ss:$8 sm:$0x0] %vm123, %v679
    %s683 = sld [smem:[#allocation12 + $0x203]]
    %s684 = smul.u32 %s683, 4
    %s685 = scalar_lea.vmem [#allocation18], %s684
    %v686 = vld [vmem:[%s685] sm:$0xf]
    %s687 = scalar_lea.vmem [#allocation5], 100
    %688 = vst.msk [vmem:[%s687] ss:$8 sm:$0xf] %vm123, %v686
    %689 = vst.msk [vmem:[%s687] ss:$8 sm:$0x0] %vm123, %v686
    %s690 = sld [smem:[#allocation11 + $0x204]]
    %s691 = smul.u32 %s690, 4
    %s692 = scalar_lea.vmem [#allocation16], %s691
    %v693 = vld [vmem:[%s692] sm:$0xf]
    %s694 = scalar_lea.vmem [#allocation4], 132
    %695 = vst.msk [vmem:[%s694] ss:$8 sm:$0xf] %vm123, %v693
    %696 = vst.msk [vmem:[%s694] ss:$8 sm:$0x0] %vm123, %v693
    %s697 = sld [smem:[#allocation12 + $0x204]]
    %s698 = smul.u32 %s697, 4
    %s699 = scalar_lea.vmem [#allocation18], %s698
    %v700 = vld [vmem:[%s699] sm:$0xf]
    %s701 = scalar_lea.vmem [#allocation5], 132
    %702 = vst.msk [vmem:[%s701] ss:$8 sm:$0xf] %vm123, %v700
    %703 = vst.msk [vmem:[%s701] ss:$8 sm:$0x0] %vm123, %v700
    %s704 = sld [smem:[#allocation11 + $0x205]]
    %s705 = smul.u32 %s704, 4
    %s706 = scalar_lea.vmem [#allocation16], %s705
    %v707 = vld [vmem:[%s706] sm:$0xf]
    %s708 = scalar_lea.vmem [#allocation4], 164
    %709 = vst.msk [vmem:[%s708] ss:$8 sm:$0xf] %vm123, %v707
    %710 = vst.msk [vmem:[%s708] ss:$8 sm:$0x0] %vm123, %v707
    %s711 = sld [smem:[#allocation12 + $0x205]]
    %s712 = smul.u32 %s711, 4
    %s713 = scalar_lea.vmem [#allocation18], %s712
    %v714 = vld [vmem:[%s713] sm:$0xf]
    %s715 = scalar_lea.vmem [#allocation5], 164
    %716 = vst.msk [vmem:[%s715] ss:$8 sm:$0xf] %vm123, %v714
    %717 = vst.msk [vmem:[%s715] ss:$8 sm:$0x0] %vm123, %v714
    %s718 = sld [smem:[#allocation11 + $0x206]]
    %s719 = smul.u32 %s718, 4
    %s720 = scalar_lea.vmem [#allocation16], %s719
    %v721 = vld [vmem:[%s720] sm:$0xf]
    %s722 = scalar_lea.vmem [#allocation4], 196
    %723 = vst.msk [vmem:[%s722] ss:$8 sm:$0xf] %vm123, %v721
    %724 = vst.msk [vmem:[%s722] ss:$8 sm:$0x0] %vm123, %v721
    %s725 = sld [smem:[#allocation12 + $0x206]]
    %s726 = smul.u32 %s725, 4
    %s727 = scalar_lea.vmem [#allocation18], %s726
    %v728 = vld [vmem:[%s727] sm:$0xf]
    %s729 = scalar_lea.vmem [#allocation5], 196
    %730 = vst.msk [vmem:[%s729] ss:$8 sm:$0xf] %vm123, %v728
    %731 = vst.msk [vmem:[%s729] ss:$8 sm:$0x0] %vm123, %v728
    %s732 = sld [smem:[#allocation11 + $0x207]]
    %s733 = smul.u32 %s732, 4
    %s734 = scalar_lea.vmem [#allocation16], %s733
    %v735 = vld [vmem:[%s734] sm:$0xf]
    %s736 = scalar_lea.vmem [#allocation4], 228
    %737 = vst.msk [vmem:[%s736] ss:$8 sm:$0xf] %vm123, %v735
    %738 = vst.msk [vmem:[%s736] ss:$8 sm:$0x0] %vm123, %v735
    %s739 = sld [smem:[#allocation12 + $0x207]]
    %s740 = smul.u32 %s739, 4
    %s741 = scalar_lea.vmem [#allocation18], %s740
    %v742 = vld [vmem:[%s741] sm:$0xf]
    %s743 = scalar_lea.vmem [#allocation5], 228
    %744 = vst.msk [vmem:[%s743] ss:$8 sm:$0xf] %vm123, %v742
    %745 = vst.msk [vmem:[%s743] ss:$8 sm:$0x0] %vm123, %v742
    %s746 = sld [smem:[#allocation9 + $0x5]]
    %s747 = smul.u32 %s746, 4
    %s748 = scalar_lea.vmem [#allocation13], %s747
    %v749 = vld [vmem:[%s748] sm:$0xf]
    %s750 = scalar_lea.vmem [#allocation2], 5
    %751 = vst.msk [vmem:[%s750] ss:$8 sm:$0xf] %vm123, %v749
    %752 = vst.msk [vmem:[%s750] ss:$8 sm:$0x0] %vm123, %v749
    %s753 = sld [smem:[#allocation10 + $0x5]]
    %s754 = smul.u32 %s753, 4
    %s755 = scalar_lea.vmem [#allocation16], %s754
    %v756 = vld [vmem:[%s755] sm:$0xf]
    %s757 = scalar_lea.vmem [#allocation3], 5
    %758 = vst.msk [vmem:[%s757] ss:$8 sm:$0xf] %vm123, %v756
    %759 = vst.msk [vmem:[%s757] ss:$8 sm:$0x0] %vm123, %v756
    %s760 = sld [smem:[#allocation11 + $0x280]]
    %s761 = smul.u32 %s760, 4
    %s762 = scalar_lea.vmem [#allocation16], %s761
    %v763 = vld [vmem:[%s762] sm:$0xf]
    %s764 = scalar_lea.vmem [#allocation4], 5
    %765 = vst.msk [vmem:[%s764] ss:$8 sm:$0xf] %vm123, %v763
    %766 = vst.msk [vmem:[%s764] ss:$8 sm:$0x0] %vm123, %v763
    %s767 = sld [smem:[#allocation12 + $0x280]]
    %s768 = smul.u32 %s767, 4
    %s769 = scalar_lea.vmem [#allocation18], %s768
    %v770 = vld [vmem:[%s769] sm:$0xf]
    %s771 = scalar_lea.vmem [#allocation5], 5
    %772 = vst.msk [vmem:[%s771] ss:$8 sm:$0xf] %vm123, %v770
    %773 = vst.msk [vmem:[%s771] ss:$8 sm:$0x0] %vm123, %v770
    %s774 = sld [smem:[#allocation11 + $0x281]]
    %s775 = smul.u32 %s774, 4
    %s776 = scalar_lea.vmem [#allocation16], %s775
    %v777 = vld [vmem:[%s776] sm:$0xf]
    %s778 = scalar_lea.vmem [#allocation4], 37
    %779 = vst.msk [vmem:[%s778] ss:$8 sm:$0xf] %vm123, %v777
    %780 = vst.msk [vmem:[%s778] ss:$8 sm:$0x0] %vm123, %v777
    %s781 = sld [smem:[#allocation12 + $0x281]]
    %s782 = smul.u32 %s781, 4
    %s783 = scalar_lea.vmem [#allocation18], %s782
    %v784 = vld [vmem:[%s783] sm:$0xf]
    %s785 = scalar_lea.vmem [#allocation5], 37
    %786 = vst.msk [vmem:[%s785] ss:$8 sm:$0xf] %vm123, %v784
    %787 = vst.msk [vmem:[%s785] ss:$8 sm:$0x0] %vm123, %v784
    %s788 = sld [smem:[#allocation11 + $0x282]]
    %s789 = smul.u32 %s788, 4
    %s790 = scalar_lea.vmem [#allocation16], %s789
    %v791 = vld [vmem:[%s790] sm:$0xf]
    %s792 = scalar_lea.vmem [#allocation4], 69
    %793 = vst.msk [vmem:[%s792] ss:$8 sm:$0xf] %vm123, %v791
    %794 = vst.msk [vmem:[%s792] ss:$8 sm:$0x0] %vm123, %v791
    %s795 = sld [smem:[#allocation12 + $0x282]]
    %s796 = smul.u32 %s795, 4
    %s797 = scalar_lea.vmem [#allocation18], %s796
    %v798 = vld [vmem:[%s797] sm:$0xf]
    %s799 = scalar_lea.vmem [#allocation5], 69
    %800 = vst.msk [vmem:[%s799] ss:$8 sm:$0xf] %vm123, %v798
    %801 = vst.msk [vmem:[%s799] ss:$8 sm:$0x0] %vm123, %v798
    %s802 = sld [smem:[#allocation11 + $0x283]]
    %s803 = smul.u32 %s802, 4
    %s804 = scalar_lea.vmem [#allocation16], %s803
    %v805 = vld [vmem:[%s804] sm:$0xf]
    %s806 = scalar_lea.vmem [#allocation4], 101
    %807 = vst.msk [vmem:[%s806] ss:$8 sm:$0xf] %vm123, %v805
    %808 = vst.msk [vmem:[%s806] ss:$8 sm:$0x0] %vm123, %v805
    %s809 = sld [smem:[#allocation12 + $0x283]]
    %s810 = smul.u32 %s809, 4
    %s811 = scalar_lea.vmem [#allocation18], %s810
    %v812 = vld [vmem:[%s811] sm:$0xf]
    %s813 = scalar_lea.vmem [#allocation5], 101
    %814 = vst.msk [vmem:[%s813] ss:$8 sm:$0xf] %vm123, %v812
    %815 = vst.msk [vmem:[%s813] ss:$8 sm:$0x0] %vm123, %v812
    %s816 = sld [smem:[#allocation11 + $0x284]]
    %s817 = smul.u32 %s816, 4
    %s818 = scalar_lea.vmem [#allocation16], %s817
    %v819 = vld [vmem:[%s818] sm:$0xf]
    %s820 = scalar_lea.vmem [#allocation4], 133
    %821 = vst.msk [vmem:[%s820] ss:$8 sm:$0xf] %vm123, %v819
    %822 = vst.msk [vmem:[%s820] ss:$8 sm:$0x0] %vm123, %v819
    %s823 = sld [smem:[#allocation12 + $0x284]]
    %s824 = smul.u32 %s823, 4
    %s825 = scalar_lea.vmem [#allocation18], %s824
    %v826 = vld [vmem:[%s825] sm:$0xf]
    %s827 = scalar_lea.vmem [#allocation5], 133
    %828 = vst.msk [vmem:[%s827] ss:$8 sm:$0xf] %vm123, %v826
    %829 = vst.msk [vmem:[%s827] ss:$8 sm:$0x0] %vm123, %v826
    %s830 = sld [smem:[#allocation11 + $0x285]]
    %s831 = smul.u32 %s830, 4
    %s832 = scalar_lea.vmem [#allocation16], %s831
    %v833 = vld [vmem:[%s832] sm:$0xf]
    %s834 = scalar_lea.vmem [#allocation4], 165
    %835 = vst.msk [vmem:[%s834] ss:$8 sm:$0xf] %vm123, %v833
    %836 = vst.msk [vmem:[%s834] ss:$8 sm:$0x0] %vm123, %v833
    %s837 = sld [smem:[#allocation12 + $0x285]]
    %s838 = smul.u32 %s837, 4
    %s839 = scalar_lea.vmem [#allocation18], %s838
    %v840 = vld [vmem:[%s839] sm:$0xf]
    %s841 = scalar_lea.vmem [#allocation5], 165
    %842 = vst.msk [vmem:[%s841] ss:$8 sm:$0xf] %vm123, %v840
    %843 = vst.msk [vmem:[%s841] ss:$8 sm:$0x0] %vm123, %v840
    %s844 = sld [smem:[#allocation11 + $0x286]]
    %s845 = smul.u32 %s844, 4
    %s846 = scalar_lea.vmem [#allocation16], %s845
    %v847 = vld [vmem:[%s846] sm:$0xf]
    %s848 = scalar_lea.vmem [#allocation4], 197
    %849 = vst.msk [vmem:[%s848] ss:$8 sm:$0xf] %vm123, %v847
    %850 = vst.msk [vmem:[%s848] ss:$8 sm:$0x0] %vm123, %v847
    %s851 = sld [smem:[#allocation12 + $0x286]]
    %s852 = smul.u32 %s851, 4
    %s853 = scalar_lea.vmem [#allocation18], %s852
    %v854 = vld [vmem:[%s853] sm:$0xf]
    %s855 = scalar_lea.vmem [#allocation5], 197
    %856 = vst.msk [vmem:[%s855] ss:$8 sm:$0xf] %vm123, %v854
    %857 = vst.msk [vmem:[%s855] ss:$8 sm:$0x0] %vm123, %v854
    %s858 = sld [smem:[#allocation11 + $0x287]]
    %s859 = smul.u32 %s858, 4
    %s860 = scalar_lea.vmem [#allocation16], %s859
    %v861 = vld [vmem:[%s860] sm:$0xf]
    %s862 = scalar_lea.vmem [#allocation4], 229
    %863 = vst.msk [vmem:[%s862] ss:$8 sm:$0xf] %vm123, %v861
    %864 = vst.msk [vmem:[%s862] ss:$8 sm:$0x0] %vm123, %v861
    %s865 = sld [smem:[#allocation12 + $0x287]]
    %s866 = smul.u32 %s865, 4
    %s867 = scalar_lea.vmem [#allocation18], %s866
    %v868 = vld [vmem:[%s867] sm:$0xf]
    %s869 = scalar_lea.vmem [#allocation5], 229
    %870 = vst.msk [vmem:[%s869] ss:$8 sm:$0xf] %vm123, %v868
    %871 = vst.msk [vmem:[%s869] ss:$8 sm:$0x0] %vm123, %v868
    %s872 = sld [smem:[#allocation9 + $0x6]]
    %s873 = smul.u32 %s872, 4
    %s874 = scalar_lea.vmem [#allocation13], %s873
    %v875 = vld [vmem:[%s874] sm:$0xf]
    %s876 = scalar_lea.vmem [#allocation2], 6
    %877 = vst.msk [vmem:[%s876] ss:$8 sm:$0xf] %vm123, %v875
    %878 = vst.msk [vmem:[%s876] ss:$8 sm:$0x0] %vm123, %v875
    %s879 = sld [smem:[#allocation10 + $0x6]]
    %s880 = smul.u32 %s879, 4
    %s881 = scalar_lea.vmem [#allocation16], %s880
    %v882 = vld [vmem:[%s881] sm:$0xf]
    %s883 = scalar_lea.vmem [#allocation3], 6
    %884 = vst.msk [vmem:[%s883] ss:$8 sm:$0xf] %vm123, %v882
    %885 = vst.msk [vmem:[%s883] ss:$8 sm:$0x0] %vm123, %v882
    %s886 = sld [smem:[#allocation11 + $0x300]]
    %s887 = smul.u32 %s886, 4
    %s888 = scalar_lea.vmem [#allocation16], %s887
    %v889 = vld [vmem:[%s888] sm:$0xf]
    %s890 = scalar_lea.vmem [#allocation4], 6
    %891 = vst.msk [vmem:[%s890] ss:$8 sm:$0xf] %vm123, %v889
    %892 = vst.msk [vmem:[%s890] ss:$8 sm:$0x0] %vm123, %v889
    %s893 = sld [smem:[#allocation12 + $0x300]]
    %s894 = smul.u32 %s893, 4
    %s895 = scalar_lea.vmem [#allocation18], %s894
    %v896 = vld [vmem:[%s895] sm:$0xf]
    %s897 = scalar_lea.vmem [#allocation5], 6
    %898 = vst.msk [vmem:[%s897] ss:$8 sm:$0xf] %vm123, %v896
    %899 = vst.msk [vmem:[%s897] ss:$8 sm:$0x0] %vm123, %v896
    %s900 = sld [smem:[#allocation11 + $0x301]]
    %s901 = smul.u32 %s900, 4
    %s902 = scalar_lea.vmem [#allocation16], %s901
    %v903 = vld [vmem:[%s902] sm:$0xf]
    %s904 = scalar_lea.vmem [#allocation4], 38
    %905 = vst.msk [vmem:[%s904] ss:$8 sm:$0xf] %vm123, %v903
    %906 = vst.msk [vmem:[%s904] ss:$8 sm:$0x0] %vm123, %v903
    %s907 = sld [smem:[#allocation12 + $0x301]]
    %s908 = smul.u32 %s907, 4
    %s909 = scalar_lea.vmem [#allocation18], %s908
    %v910 = vld [vmem:[%s909] sm:$0xf]
    %s911 = scalar_lea.vmem [#allocation5], 38
    %912 = vst.msk [vmem:[%s911] ss:$8 sm:$0xf] %vm123, %v910
    %913 = vst.msk [vmem:[%s911] ss:$8 sm:$0x0] %vm123, %v910
    %s914 = sld [smem:[#allocation11 + $0x302]]
    %s915 = smul.u32 %s914, 4
    %s916 = scalar_lea.vmem [#allocation16], %s915
    %v917 = vld [vmem:[%s916] sm:$0xf]
    %s918 = scalar_lea.vmem [#allocation4], 70
    %919 = vst.msk [vmem:[%s918] ss:$8 sm:$0xf] %vm123, %v917
    %920 = vst.msk [vmem:[%s918] ss:$8 sm:$0x0] %vm123, %v917
    %s921 = sld [smem:[#allocation12 + $0x302]]
    %s922 = smul.u32 %s921, 4
    %s923 = scalar_lea.vmem [#allocation18], %s922
    %v924 = vld [vmem:[%s923] sm:$0xf]
    %s925 = scalar_lea.vmem [#allocation5], 70
    %926 = vst.msk [vmem:[%s925] ss:$8 sm:$0xf] %vm123, %v924
    %927 = vst.msk [vmem:[%s925] ss:$8 sm:$0x0] %vm123, %v924
    %s928 = sld [smem:[#allocation11 + $0x303]]
    %s929 = smul.u32 %s928, 4
    %s930 = scalar_lea.vmem [#allocation16], %s929
    %v931 = vld [vmem:[%s930] sm:$0xf]
    %s932 = scalar_lea.vmem [#allocation4], 102
    %933 = vst.msk [vmem:[%s932] ss:$8 sm:$0xf] %vm123, %v931
    %934 = vst.msk [vmem:[%s932] ss:$8 sm:$0x0] %vm123, %v931
    %s935 = sld [smem:[#allocation12 + $0x303]]
    %s936 = smul.u32 %s935, 4
    %s937 = scalar_lea.vmem [#allocation18], %s936
    %v938 = vld [vmem:[%s937] sm:$0xf]
    %s939 = scalar_lea.vmem [#allocation5], 102
    %940 = vst.msk [vmem:[%s939] ss:$8 sm:$0xf] %vm123, %v938
    %941 = vst.msk [vmem:[%s939] ss:$8 sm:$0x0] %vm123, %v938
    %s942 = sld [smem:[#allocation11 + $0x304]]
    %s943 = smul.u32 %s942, 4
    %s944 = scalar_lea.vmem [#allocation16], %s943
    %v945 = vld [vmem:[%s944] sm:$0xf]
    %s946 = scalar_lea.vmem [#allocation4], 134
    %947 = vst.msk [vmem:[%s946] ss:$8 sm:$0xf] %vm123, %v945
    %948 = vst.msk [vmem:[%s946] ss:$8 sm:$0x0] %vm123, %v945
    %s949 = sld [smem:[#allocation12 + $0x304]]
    %s950 = smul.u32 %s949, 4
    %s951 = scalar_lea.vmem [#allocation18], %s950
    %v952 = vld [vmem:[%s951] sm:$0xf]
    %s953 = scalar_lea.vmem [#allocation5], 134
    %954 = vst.msk [vmem:[%s953] ss:$8 sm:$0xf] %vm123, %v952
    %955 = vst.msk [vmem:[%s953] ss:$8 sm:$0x0] %vm123, %v952
    %s956 = sld [smem:[#allocation11 + $0x305]]
    %s957 = smul.u32 %s956, 4
    %s958 = scalar_lea.vmem [#allocation16], %s957
    %v959 = vld [vmem:[%s958] sm:$0xf]
    %s960 = scalar_lea.vmem [#allocation4], 166
    %961 = vst.msk [vmem:[%s960] ss:$8 sm:$0xf] %vm123, %v959
    %962 = vst.msk [vmem:[%s960] ss:$8 sm:$0x0] %vm123, %v959
    %s963 = sld [smem:[#allocation12 + $0x305]]
    %s964 = smul.u32 %s963, 4
    %s965 = scalar_lea.vmem [#allocation18], %s964
    %v966 = vld [vmem:[%s965] sm:$0xf]
    %s967 = scalar_lea.vmem [#allocation5], 166
    %968 = vst.msk [vmem:[%s967] ss:$8 sm:$0xf] %vm123, %v966
    %969 = vst.msk [vmem:[%s967] ss:$8 sm:$0x0] %vm123, %v966
    %s970 = sld [smem:[#allocation11 + $0x306]]
    %s971 = smul.u32 %s970, 4
    %s972 = scalar_lea.vmem [#allocation16], %s971
    %v973 = vld [vmem:[%s972] sm:$0xf]
    %s974 = scalar_lea.vmem [#allocation4], 198
    %975 = vst.msk [vmem:[%s974] ss:$8 sm:$0xf] %vm123, %v973
    %976 = vst.msk [vmem:[%s974] ss:$8 sm:$0x0] %vm123, %v973
    %s977 = sld [smem:[#allocation12 + $0x306]]
    %s978 = smul.u32 %s977, 4
    %s979 = scalar_lea.vmem [#allocation18], %s978
    %v980 = vld [vmem:[%s979] sm:$0xf]
    %s981 = scalar_lea.vmem [#allocation5], 198
    %982 = vst.msk [vmem:[%s981] ss:$8 sm:$0xf] %vm123, %v980
    %983 = vst.msk [vmem:[%s981] ss:$8 sm:$0x0] %vm123, %v980
    %s984 = sld [smem:[#allocation11 + $0x307]]
    %s985 = smul.u32 %s984, 4
    %s986 = scalar_lea.vmem [#allocation16], %s985
    %v987 = vld [vmem:[%s986] sm:$0xf]
    %s988 = scalar_lea.vmem [#allocation4], 230
    %989 = vst.msk [vmem:[%s988] ss:$8 sm:$0xf] %vm123, %v987
    %990 = vst.msk [vmem:[%s988] ss:$8 sm:$0x0] %vm123, %v987
    %s991 = sld [smem:[#allocation12 + $0x307]]
    %s992 = smul.u32 %s991, 4
    %s993 = scalar_lea.vmem [#allocation18], %s992
    %v994 = vld [vmem:[%s993] sm:$0xf]
    %s995 = scalar_lea.vmem [#allocation5], 230
    %996 = vst.msk [vmem:[%s995] ss:$8 sm:$0xf] %vm123, %v994
    %997 = vst.msk [vmem:[%s995] ss:$8 sm:$0x0] %vm123, %v994
    %s998 = sld [smem:[#allocation9 + $0x7]]
    %s999 = smul.u32 %s998, 4
    %s1000 = scalar_lea.vmem [#allocation13], %s999
    %v1001 = vld [vmem:[%s1000] sm:$0xf]
    %s1002 = scalar_lea.vmem [#allocation2], 7
    %1003 = vst.msk [vmem:[%s1002] ss:$8 sm:$0xf] %vm123, %v1001
    %1004 = vst.msk [vmem:[%s1002] ss:$8 sm:$0x0] %vm123, %v1001
    %s1005 = sld [smem:[#allocation10 + $0x7]]
    %s1006 = smul.u32 %s1005, 4
    %s1007 = scalar_lea.vmem [#allocation16], %s1006
    %v1008 = vld [vmem:[%s1007] sm:$0xf]
    %s1009 = scalar_lea.vmem [#allocation3], 7
    %1010 = vst.msk [vmem:[%s1009] ss:$8 sm:$0xf] %vm123, %v1008
    %1011 = vst.msk [vmem:[%s1009] ss:$8 sm:$0x0] %vm123, %v1008
    %s1012 = sld [smem:[#allocation11 + $0x380]]
    %s1013 = smul.u32 %s1012, 4
    %s1014 = scalar_lea.vmem [#allocation16], %s1013
    %v1015 = vld [vmem:[%s1014] sm:$0xf]
    %s1016 = scalar_lea.vmem [#allocation4], 7
    %1017 = vst.msk [vmem:[%s1016] ss:$8 sm:$0xf] %vm123, %v1015
    %1018 = vst.msk [vmem:[%s1016] ss:$8 sm:$0x0] %vm123, %v1015
    %s1019 = sld [smem:[#allocation12 + $0x380]]
    %s1020 = smul.u32 %s1019, 4
    %s1021 = scalar_lea.vmem [#allocation18], %s1020
    %v1022 = vld [vmem:[%s1021] sm:$0xf]
    %s1023 = scalar_lea.vmem [#allocation5], 7
    %1024 = vst.msk [vmem:[%s1023] ss:$8 sm:$0xf] %vm123, %v1022
    %1025 = vst.msk [vmem:[%s1023] ss:$8 sm:$0x0] %vm123, %v1022
    %s1026 = sld [smem:[#allocation11 + $0x381]]
    %s1027 = smul.u32 %s1026, 4
    %s1028 = scalar_lea.vmem [#allocation16], %s1027
    %v1029 = vld [vmem:[%s1028] sm:$0xf]
    %s1030 = scalar_lea.vmem [#allocation4], 39
    %1031 = vst.msk [vmem:[%s1030] ss:$8 sm:$0xf] %vm123, %v1029
    %1032 = vst.msk [vmem:[%s1030] ss:$8 sm:$0x0] %vm123, %v1029
    %s1033 = sld [smem:[#allocation12 + $0x381]]
    %s1034 = smul.u32 %s1033, 4
    %s1035 = scalar_lea.vmem [#allocation18], %s1034
    %v1036 = vld [vmem:[%s1035] sm:$0xf]
    %s1037 = scalar_lea.vmem [#allocation5], 39
    %1038 = vst.msk [vmem:[%s1037] ss:$8 sm:$0xf] %vm123, %v1036
    %1039 = vst.msk [vmem:[%s1037] ss:$8 sm:$0x0] %vm123, %v1036
    %s1040 = sld [smem:[#allocation11 + $0x382]]
    %s1041 = smul.u32 %s1040, 4
    %s1042 = scalar_lea.vmem [#allocation16], %s1041
    %v1043 = vld [vmem:[%s1042] sm:$0xf]
    %s1044 = scalar_lea.vmem [#allocation4], 71
    %1045 = vst.msk [vmem:[%s1044] ss:$8 sm:$0xf] %vm123, %v1043
    %1046 = vst.msk [vmem:[%s1044] ss:$8 sm:$0x0] %vm123, %v1043
    %s1047 = sld [smem:[#allocation12 + $0x382]]
    %s1048 = smul.u32 %s1047, 4
    %s1049 = scalar_lea.vmem [#allocation18], %s1048
    %v1050 = vld [vmem:[%s1049] sm:$0xf]
    %s1051 = scalar_lea.vmem [#allocation5], 71
    %1052 = vst.msk [vmem:[%s1051] ss:$8 sm:$0xf] %vm123, %v1050
    %1053 = vst.msk [vmem:[%s1051] ss:$8 sm:$0x0] %vm123, %v1050
    %s1054 = sld [smem:[#allocation11 + $0x383]]
    %s1055 = smul.u32 %s1054, 4
    %s1056 = scalar_lea.vmem [#allocation16], %s1055
    %v1057 = vld [vmem:[%s1056] sm:$0xf]
    %s1058 = scalar_lea.vmem [#allocation4], 103
    %1059 = vst.msk [vmem:[%s1058] ss:$8 sm:$0xf] %vm123, %v1057
    %1060 = vst.msk [vmem:[%s1058] ss:$8 sm:$0x0] %vm123, %v1057
    %s1061 = sld [smem:[#allocation12 + $0x383]]
    %s1062 = smul.u32 %s1061, 4
    %s1063 = scalar_lea.vmem [#allocation18], %s1062
    %v1064 = vld [vmem:[%s1063] sm:$0xf]
    %s1065 = scalar_lea.vmem [#allocation5], 103
    %1066 = vst.msk [vmem:[%s1065] ss:$8 sm:$0xf] %vm123, %v1064
    %1067 = vst.msk [vmem:[%s1065] ss:$8 sm:$0x0] %vm123, %v1064
    %s1068 = sld [smem:[#allocation11 + $0x384]]
    %s1069 = smul.u32 %s1068, 4
    %s1070 = scalar_lea.vmem [#allocation16], %s1069
    %v1071 = vld [vmem:[%s1070] sm:$0xf]
    %s1072 = scalar_lea.vmem [#allocation4], 135
    %1073 = vst.msk [vmem:[%s1072] ss:$8 sm:$0xf] %vm123, %v1071
    %1074 = vst.msk [vmem:[%s1072] ss:$8 sm:$0x0] %vm123, %v1071
    %s1075 = sld [smem:[#allocation12 + $0x384]]
    %s1076 = smul.u32 %s1075, 4
    %s1077 = scalar_lea.vmem [#allocation18], %s1076
    %v1078 = vld [vmem:[%s1077] sm:$0xf]
    %s1079 = scalar_lea.vmem [#allocation5], 135
    %1080 = vst.msk [vmem:[%s1079] ss:$8 sm:$0xf] %vm123, %v1078
    %1081 = vst.msk [vmem:[%s1079] ss:$8 sm:$0x0] %vm123, %v1078
    %s1082 = sld [smem:[#allocation11 + $0x385]]
    %s1083 = smul.u32 %s1082, 4
    %s1084 = scalar_lea.vmem [#allocation16], %s1083
    %v1085 = vld [vmem:[%s1084] sm:$0xf]
    %s1086 = scalar_lea.vmem [#allocation4], 167
    %1087 = vst.msk [vmem:[%s1086] ss:$8 sm:$0xf] %vm123, %v1085
    %1088 = vst.msk [vmem:[%s1086] ss:$8 sm:$0x0] %vm123, %v1085
    %s1089 = sld [smem:[#allocation12 + $0x385]]
    %s1090 = smul.u32 %s1089, 4
    %s1091 = scalar_lea.vmem [#allocation18], %s1090
    %v1092 = vld [vmem:[%s1091] sm:$0xf]
    %s1093 = scalar_lea.vmem [#allocation5], 167
    %1094 = vst.msk [vmem:[%s1093] ss:$8 sm:$0xf] %vm123, %v1092
    %1095 = vst.msk [vmem:[%s1093] ss:$8 sm:$0x0] %vm123, %v1092
    %s1096 = sld [smem:[#allocation11 + $0x386]]
    %s1097 = smul.u32 %s1096, 4
    %s1098 = scalar_lea.vmem [#allocation16], %s1097
    %v1099 = vld [vmem:[%s1098] sm:$0xf]
    %s1100 = scalar_lea.vmem [#allocation4], 199
    %1101 = vst.msk [vmem:[%s1100] ss:$8 sm:$0xf] %vm123, %v1099
    %1102 = vst.msk [vmem:[%s1100] ss:$8 sm:$0x0] %vm123, %v1099
    %s1103 = sld [smem:[#allocation12 + $0x386]]
    %s1104 = smul.u32 %s1103, 4
    %s1105 = scalar_lea.vmem [#allocation18], %s1104
    %v1106 = vld [vmem:[%s1105] sm:$0xf]
    %s1107 = scalar_lea.vmem [#allocation5], 199
    %1108 = vst.msk [vmem:[%s1107] ss:$8 sm:$0xf] %vm123, %v1106
    %1109 = vst.msk [vmem:[%s1107] ss:$8 sm:$0x0] %vm123, %v1106
    %s1110 = sld [smem:[#allocation11 + $0x387]]
    %s1111 = smul.u32 %s1110, 4
    %s1112 = scalar_lea.vmem [#allocation16], %s1111
    %v1113 = vld [vmem:[%s1112] sm:$0xf]
    %s1114 = scalar_lea.vmem [#allocation4], 231
    %1115 = vst.msk [vmem:[%s1114] ss:$8 sm:$0xf] %vm123, %v1113
    %1116 = vst.msk [vmem:[%s1114] ss:$8 sm:$0x0] %vm123, %v1113
    %s1117 = sld [smem:[#allocation12 + $0x387]]
    %s1118 = smul.u32 %s1117, 4
    %s1119 = scalar_lea.vmem [#allocation18], %s1118
    %v1120 = vld [vmem:[%s1119] sm:$0xf]
    %s1121 = scalar_lea.vmem [#allocation5], 231
    %1122 = vst.msk [vmem:[%s1121] ss:$8 sm:$0xf] %vm123, %v1120
    %1123 = vst.msk [vmem:[%s1121] ss:$8 sm:$0x0] %vm123, %v1120
    %v1124 = vld [vmem:[#allocation2] sm:$0xff]
    %v1125 = vld [vmem:[#allocation2 + $0x8] sm:$0xff]
    %v1126 = vld [vmem:[#allocation2 + $0x10] sm:$0xff]
    %v1127 = vld [vmem:[#allocation2 + $0x18] sm:$0xff]
    %v1128 = vld [vmem:[#allocation5] sm:$0xff]
    %v1129 = vld [vmem:[#allocation5 + $0x8] sm:$0xff]
    %v1130 = vld [vmem:[#allocation5 + $0x10] sm:$0xff]
    %v1131 = vld [vmem:[#allocation5 + $0x18] sm:$0xff]
    %v1132 = vmul.f32 %v1124, %v1128
    %v1133 = vmul.f32 %v1125, %v1129
    %v1134 = vmul.f32 %v1126, %v1130
    %v1135 = vmul.f32 %v1127, %v1131
    %v1136 = vadd.f32 %v1132, %v1133
    %v1137 = vadd.f32 %v1136, %v1134
    %v1138 = vadd.f32 %v1137, %v1135
    %1139 = vadd.xlane.f32.xlu0 %v1138
    %v1140 = vpop.xlane.xlu0 %1139
    %v1141 = vld [vmem:[#allocation5 + $0x20] sm:$0xff]
    %v1142 = vld [vmem:[#allocation5 + $0x28] sm:$0xff]
    %v1143 = vld [vmem:[#allocation5 + $0x30] sm:$0xff]
    %v1144 = vld [vmem:[#allocation5 + $0x38] sm:$0xff]
    %v1145 = vmul.f32 %v1124, %v1141
    %v1146 = vmul.f32 %v1125, %v1142
    %v1147 = vmul.f32 %v1126, %v1143
    %v1148 = vmul.f32 %v1127, %v1144
    %v1149 = vadd.f32 %v1145, %v1146
    %v1150 = vadd.f32 %v1149, %v1147
    %v1151 = vadd.f32 %v1150, %v1148
    %1152 = vadd.xlane.f32.xlu0 %v1151
    %v1153 = vpop.xlane.xlu0 %1152
    %v1154 = vld [vmem:[#allocation5 + $0x40] sm:$0xff]
    %v1155 = vld [vmem:[#allocation5 + $0x48] sm:$0xff]
    %v1156 = vld [vmem:[#allocation5 + $0x50] sm:$0xff]
    %v1157 = vld [vmem:[#allocation5 + $0x58] sm:$0xff]
    %v1158 = vmul.f32 %v1124, %v1154
    %v1159 = vmul.f32 %v1125, %v1155
    %v1160 = vmul.f32 %v1126, %v1156
    %v1161 = vmul.f32 %v1127, %v1157
    %v1162 = vadd.f32 %v1158, %v1159
    %v1163 = vadd.f32 %v1162, %v1160
    %v1164 = vadd.f32 %v1163, %v1161
    %1165 = vadd.xlane.f32.xlu0 %v1164
    %v1166 = vpop.xlane.xlu0 %1165
    %v1167 = vld [vmem:[#allocation5 + $0x60] sm:$0xff]
    %v1168 = vld [vmem:[#allocation5 + $0x68] sm:$0xff]
    %v1169 = vld [vmem:[#allocation5 + $0x70] sm:$0xff]
    %v1170 = vld [vmem:[#allocation5 + $0x78] sm:$0xff]
    %v1171 = vmul.f32 %v1124, %v1167
    %v1172 = vmul.f32 %v1125, %v1168
    %v1173 = vmul.f32 %v1126, %v1169
    %v1174 = vmul.f32 %v1127, %v1170
    %v1175 = vadd.f32 %v1171, %v1172
    %v1176 = vadd.f32 %v1175, %v1173
    %v1177 = vadd.f32 %v1176, %v1174
    %1178 = vadd.xlane.f32.xlu0 %v1177
    %v1179 = vpop.xlane.xlu0 %1178
    %v1180 = vld [vmem:[#allocation5 + $0x80] sm:$0xff]
    %v1181 = vld [vmem:[#allocation5 + $0x88] sm:$0xff]
    %v1182 = vld [vmem:[#allocation5 + $0x90] sm:$0xff]
    %v1183 = vld [vmem:[#allocation5 + $0x98] sm:$0xff]
    %v1184 = vmul.f32 %v1124, %v1180
    %v1185 = vmul.f32 %v1125, %v1181
    %v1186 = vmul.f32 %v1126, %v1182
    %v1187 = vmul.f32 %v1127, %v1183
    %v1188 = vadd.f32 %v1184, %v1185
    %v1189 = vadd.f32 %v1188, %v1186
    %v1190 = vadd.f32 %v1189, %v1187
    %1191 = vadd.xlane.f32.xlu0 %v1190
    %v1192 = vpop.xlane.xlu0 %1191
    %v1193 = vld [vmem:[#allocation5 + $0xa0] sm:$0xff]
    %v1194 = vld [vmem:[#allocation5 + $0xa8] sm:$0xff]
    %v1195 = vld [vmem:[#allocation5 + $0xb0] sm:$0xff]
    %v1196 = vld [vmem:[#allocation5 + $0xb8] sm:$0xff]
    %v1197 = vmul.f32 %v1124, %v1193
    %v1198 = vmul.f32 %v1125, %v1194
    %v1199 = vmul.f32 %v1126, %v1195
    %v1200 = vmul.f32 %v1127, %v1196
    %v1201 = vadd.f32 %v1197, %v1198
    %v1202 = vadd.f32 %v1201, %v1199
    %v1203 = vadd.f32 %v1202, %v1200
    %1204 = vadd.xlane.f32.xlu0 %v1203
    %v1205 = vpop.xlane.xlu0 %1204
    %v1206 = vld [vmem:[#allocation5 + $0xc0] sm:$0xff]
    %v1207 = vld [vmem:[#allocation5 + $0xc8] sm:$0xff]
    %v1208 = vld [vmem:[#allocation5 + $0xd0] sm:$0xff]
    %v1209 = vld [vmem:[#allocation5 + $0xd8] sm:$0xff]
    %v1210 = vmul.f32 %v1124, %v1206
    %v1211 = vmul.f32 %v1125, %v1207
    %v1212 = vmul.f32 %v1126, %v1208
    %v1213 = vmul.f32 %v1127, %v1209
    %v1214 = vadd.f32 %v1210, %v1211
    %v1215 = vadd.f32 %v1214, %v1212
    %v1216 = vadd.f32 %v1215, %v1213
    %1217 = vadd.xlane.f32.xlu0 %v1216
    %v1218 = vpop.xlane.xlu0 %1217
    %v1219 = vld [vmem:[#allocation5 + $0xe0] sm:$0xff]
    %v1220 = vld [vmem:[#allocation5 + $0xe8] sm:$0xff]
    %v1221 = vld [vmem:[#allocation5 + $0xf0] sm:$0xff]
    %v1222 = vld [vmem:[#allocation5 + $0xf8] sm:$0xff]
    %v1223 = vmul.f32 %v1124, %v1219
    %v1224 = vmul.f32 %v1125, %v1220
    %v1225 = vmul.f32 %v1126, %v1221
    %v1226 = vmul.f32 %v1127, %v1222
    %v1227 = vadd.f32 %v1223, %v1224
    %v1228 = vadd.f32 %v1227, %v1225
    %v1229 = vadd.f32 %v1228, %v1226
    %1230 = vadd.xlane.f32.xlu0 %v1229
    %v1231 = vpop.xlane.xlu0 %1230
    %v1232 = vmax.f32 %v1140, %v1153
    %v1233 = vmax.f32 %v1232, %v1166
    %v1234 = vmax.f32 %v1233, %v1179
    %v1235 = vmax.f32 %v1234, %v1192
    %v1236 = vmax.f32 %v1235, %v1205
    %v1237 = vmax.f32 %v1236, %v1218
    %v1238 = vmax.f32 %v1237, %v1231
    %v1239 = vsub.f32 %v1140, %v1238
    %v1240 = vmul.f32 %v1239, 1.442695
    %v1241 = vpow.pop %v1240
    %v1242 = vsub.f32 %v1153, %v1238
    %v1243 = vmul.f32 %v1242, 1.442695
    %v1244 = vpow.pop %v1243
    %v1245 = vsub.f32 %v1166, %v1238
    %v1246 = vmul.f32 %v1245, 1.442695
    %v1247 = vpow.pop %v1246
    %v1248 = vsub.f32 %v1179, %v1238
    %v1249 = vmul.f32 %v1248, 1.442695
    %v1250 = vpow.pop %v1249
    %v1251 = vsub.f32 %v1192, %v1238
    %v1252 = vmul.f32 %v1251, 1.442695
    %v1253 = vpow.pop %v1252
    %v1254 = vsub.f32 %v1205, %v1238
    %v1255 = vmul.f32 %v1254, 1.442695
    %v1256 = vpow.pop %v1255
    %v1257 = vsub.f32 %v1218, %v1238
    %v1258 = vmul.f32 %v1257, 1.442695
    %v1259 = vpow.pop %v1258
    %v1260 = vsub.f32 %v1231, %v1238
    %v1261 = vmul.f32 %v1260, 1.442695
    %v1262 = vpow.pop %v1261
    %v1263 = vadd.f32 %v1241, %v1244
    %v1264 = vadd.f32 %v1263, %v1247
    %v1265 = vadd.f32 %v1264, %v1250
    %v1266 = vadd.f32 %v1265, %v1253
    %v1267 = vadd.f32 %v1266, %v1256
    %v1268 = vadd.f32 %v1267, %v1259
    %v1269 = vadd.f32 %v1268, %v1262
    %v1270 = vrcp.pop %v1269
    %v1271 = vmul.f32 %v1241, %v1270
    %v1272 = vld [vmem:[#allocation4] sm:$0xff]
    %v1273 = vld [vmem:[#allocation4 + $0x8] sm:$0xff]
    %v1274 = vld [vmem:[#allocation4 + $0x10] sm:$0xff]
    %v1275 = vld [vmem:[#allocation4 + $0x18] sm:$0xff]
    %v1276 = vmul.f32 %v1271, %v1272
    %v1277 = vmul.f32 %v1271, %v1273
    %v1278 = vmul.f32 %v1271, %v1274
    %v1279 = vmul.f32 %v1271, %v1275
    %v1280 = vld [vmem:[#allocation4 + $0x20] sm:$0xff]
    %v1281 = vld [vmem:[#allocation4 + $0x28] sm:$0xff]
    %v1282 = vld [vmem:[#allocation4 + $0x30] sm:$0xff]
    %v1283 = vld [vmem:[#allocation4 + $0x38] sm:$0xff]
    %v1284 = vmul.f32 %v1244, %v1270
    %v1285 = vmul.f32 %v1284, %v1280
    %v1286 = vmul.f32 %v1284, %v1281
    %v1287 = vmul.f32 %v1284, %v1282
    %v1288 = vmul.f32 %v1284, %v1283
    %v1289 = vadd.f32 %v1276, %v1285
    %v1290 = vadd.f32 %v1277, %v1286
    %v1291 = vadd.f32 %v1278, %v1287
    %v1292 = vadd.f32 %v1279, %v1288
    %v1293 = vld [vmem:[#allocation4 + $0x40] sm:$0xff]
    %v1294 = vld [vmem:[#allocation4 + $0x48] sm:$0xff]
    %v1295 = vld [vmem:[#allocation4 + $0x50] sm:$0xff]
    %v1296 = vld [vmem:[#allocation4 + $0x58] sm:$0xff]
    %v1297 = vmul.f32 %v1247, %v1270
    %v1298 = vmul.f32 %v1297, %v1293
    %v1299 = vmul.f32 %v1297, %v1294
    %v1300 = vmul.f32 %v1297, %v1295
    %v1301 = vmul.f32 %v1297, %v1296
    %v1302 = vadd.f32 %v1289, %v1298
    %v1303 = vadd.f32 %v1290, %v1299
    %v1304 = vadd.f32 %v1291, %v1300
    %v1305 = vadd.f32 %v1292, %v1301
    %v1306 = vld [vmem:[#allocation4 + $0x60] sm:$0xff]
    %v1307 = vld [vmem:[#allocation4 + $0x68] sm:$0xff]
    %v1308 = vld [vmem:[#allocation4 + $0x70] sm:$0xff]
    %v1309 = vld [vmem:[#allocation4 + $0x78] sm:$0xff]
    %v1310 = vmul.f32 %v1250, %v1270
    %v1311 = vmul.f32 %v1310, %v1306
    %v1312 = vmul.f32 %v1310, %v1307
    %v1313 = vmul.f32 %v1310, %v1308
    %v1314 = vmul.f32 %v1310, %v1309
    %v1315 = vadd.f32 %v1302, %v1311
    %v1316 = vadd.f32 %v1303, %v1312
    %v1317 = vadd.f32 %v1304, %v1313
    %v1318 = vadd.f32 %v1305, %v1314
    %v1319 = vld [vmem:[#allocation4 + $0x80] sm:$0xff]
    %v1320 = vld [vmem:[#allocation4 + $0x88] sm:$0xff]
    %v1321 = vld [vmem:[#allocation4 + $0x90] sm:$0xff]
    %v1322 = vld [vmem:[#allocation4 + $0x98] sm:$0xff]
    %v1323 = vmul.f32 %v1253, %v1270
    %v1324 = vmul.f32 %v1323, %v1319
    %v1325 = vmul.f32 %v1323, %v1320
    %v1326 = vmul.f32 %v1323, %v1321
    %v1327 = vmul.f32 %v1323, %v1322
    %v1328 = vadd.f32 %v1315, %v1324
    %v1329 = vadd.f32 %v1316, %v1325
    %v1330 = vadd.f32 %v1317, %v1326
    %v1331 = vadd.f32 %v1318, %v1327
    %v1332 = vld [vmem:[#allocation4 + $0xa0] sm:$0xff]
    %v1333 = vld [vmem:[#allocation4 + $0xa8] sm:$0xff]
    %v1334 = vld [vmem:[#allocation4 + $0xb0] sm:$0xff]
    %v1335 = vld [vmem:[#allocation4 + $0xb8] sm:$0xff]
    %v1336 = vmul.f32 %v1256, %v1270
    %v1337 = vmul.f32 %v1336, %v1332
    %v1338 = vmul.f32 %v1336, %v1333
    %v1339 = vmul.f32 %v1336, %v1334
    %v1340 = vmul.f32 %v1336, %v1335
    %v1341 = vadd.f32 %v1328, %v1337
    %v1342 = vadd.f32 %v1329, %v1338
    %v1343 = vadd.f32 %v1330, %v1339
    %v1344 = vadd.f32 %v1331, %v1340
    %v1345 = vld [vmem:[#allocation4 + $0xc0] sm:$0xff]
    %v1346 = vld [vmem:[#allocation4 + $0xc8] sm:$0xff]
    %v1347 = vld [vmem:[#allocation4 + $0xd0] sm:$0xff]
    %v1348 = vld [vmem:[#allocation4 + $0xd8] sm:$0xff]
    %v1349 = vmul.f32 %v1259, %v1270
    %v1350 = vmul.f32 %v1349, %v1345
    %v1351 = vmul.f32 %v1349, %v1346
    %v1352 = vmul.f32 %v1349, %v1347
    %v1353 = vmul.f32 %v1349, %v1348
    %v1354 = vadd.f32 %v1341, %v1350
    %v1355 = vadd.f32 %v1342, %v1351
    %v1356 = vadd.f32 %v1343, %v1352
    %v1357 = vadd.f32 %v1344, %v1353
    %v1358 = vld [vmem:[#allocation4 + $0xe0] sm:$0xff]
    %v1359 = vld [vmem:[#allocation4 + $0xe8] sm:$0xff]
    %v1360 = vld [vmem:[#allocation4 + $0xf0] sm:$0xff]
    %v1361 = vld [vmem:[#allocation4 + $0xf8] sm:$0xff]
    %v1362 = vmul.f32 %v1262, %v1270
    %v1363 = vmul.f32 %v1362, %v1358
    %v1364 = vmul.f32 %v1362, %v1359
    %v1365 = vmul.f32 %v1362, %v1360
    %v1366 = vmul.f32 %v1362, %v1361
    %v1367 = vadd.f32 %v1354, %v1363
    %v1368 = vadd.f32 %v1355, %v1364
    %v1369 = vadd.f32 %v1356, %v1365
    %v1370 = vadd.f32 %v1357, %v1366
    %v1371 = vld [vmem:[#allocation3] sm:$0xff]
    %v1372 = vld [vmem:[#allocation3 + $0x8] sm:$0xff]
    %v1373 = vld [vmem:[#allocation3 + $0x10] sm:$0xff]
    %v1374 = vld [vmem:[#allocation3 + $0x18] sm:$0xff]
    %v1375 = vadd.f32 %v1371, %v1367
    %v1376 = vadd.f32 %v1372, %v1368
    %v1377 = vadd.f32 %v1373, %v1369
    %v1378 = vadd.f32 %v1374, %v1370
    %v1379 = vpack.c.bf16 %v1375, %v1375
    %v1380 = vpack.c.bf16 %v1376, %v1376
    %v1381 = vpack.c.bf16 %v1377, %v1377
    %v1382 = vpack.c.bf16 %v1378, %v1378
    %s1383 = smul.u32 4, 64
    %s1384 = smul.u32 %s1383, 4
    %s1385 = sshll.u32 %s1384, 4
    %1386 = dma.done [#allocation7], %s1385
    %v1387 = vld [vmem:[#allocation6] sm:$0xff]
    %v1388 = vld [vmem:[#allocation6 + $0x8] sm:$0xff]
    %v1389 = vld [vmem:[#allocation6 + $0x10] sm:$0xff]
    %v1390 = vld [vmem:[#allocation6 + $0x18] sm:$0xff]
    %v1391 = vld [vmem:[#allocation6 + $0x20] sm:$0xff]
    %v1392 = vld [vmem:[#allocation6 + $0x28] sm:$0xff]
    %v1393 = vld [vmem:[#allocation6 + $0x30] sm:$0xff]
    %v1394 = vld [vmem:[#allocation6 + $0x38] sm:$0xff]
    %v1395 = vld [vmem:[#allocation6 + $0x40] sm:$0xff]
    %v1396 = vld [vmem:[#allocation6 + $0x48] sm:$0xff]
    %v1397 = vld [vmem:[#allocation6 + $0x50] sm:$0xff]
    %v1398 = vld [vmem:[#allocation6 + $0x58] sm:$0xff]
    %v1399 = vld [vmem:[#allocation6 + $0x60] sm:$0xff]
    %v1400 = vld [vmem:[#allocation6 + $0x68] sm:$0xff]
    %v1401 = vld [vmem:[#allocation6 + $0x70] sm:$0xff]
    %v1402 = vld [vmem:[#allocation6 + $0x78] sm:$0xff]
    %v1403 = vld [vmem:[#allocation6 + $0x80] sm:$0xff]
    %v1404 = vld [vmem:[#allocation6 + $0x88] sm:$0xff]
    %v1405 = vld [vmem:[#allocation6 + $0x90] sm:$0xff]
    %v1406 = vld [vmem:[#allocation6 + $0x98] sm:$0xff]
    %v1407 = vld [vmem:[#allocation6 + $0xa0] sm:$0xff]
    %v1408 = vld [vmem:[#allocation6 + $0xa8] sm:$0xff]
    %v1409 = vld [vmem:[#allocation6 + $0xb0] sm:$0xff]
    %v1410 = vld [vmem:[#allocation6 + $0xb8] sm:$0xff]
    %v1411 = vld [vmem:[#allocation6 + $0xc0] sm:$0xff]
    %v1412 = vld [vmem:[#allocation6 + $0xc8] sm:$0xff]
    %v1413 = vld [vmem:[#allocation6 + $0xd0] sm:$0xff]
    %v1414 = vld [vmem:[#allocation6 + $0xd8] sm:$0xff]
    %v1415 = vld [vmem:[#allocation6 + $0xe0] sm:$0xff]
    %v1416 = vld [vmem:[#allocation6 + $0xe8] sm:$0xff]
    %v1417 = vld [vmem:[#allocation6 + $0xf0] sm:$0xff]
    %v1418 = vld [vmem:[#allocation6 + $0xf8] sm:$0xff]
    %v1419 = vld [vmem:[#allocation6 + $0x100] sm:$0xff]
    %v1420 = vld [vmem:[#allocation6 + $0x108] sm:$0xff]
    %v1421 = vld [vmem:[#allocation6 + $0x110] sm:$0xff]
    %v1422 = vld [vmem:[#allocation6 + $0x118] sm:$0xff]
    %v1423 = vld [vmem:[#allocation6 + $0x120] sm:$0xff]
    %v1424 = vld [vmem:[#allocation6 + $0x128] sm:$0xff]
    %v1425 = vld [vmem:[#allocation6 + $0x130] sm:$0xff]
    %v1426 = vld [vmem:[#allocation6 + $0x138] sm:$0xff]
    %v1427 = vld [vmem:[#allocation6 + $0x140] sm:$0xff]
    %v1428 = vld [vmem:[#allocation6 + $0x148] sm:$0xff]
    %v1429 = vld [vmem:[#allocation6 + $0x150] sm:$0xff]
    %v1430 = vld [vmem:[#allocation6 + $0x158] sm:$0xff]
    %v1431 = vld [vmem:[#allocation6 + $0x160] sm:$0xff]
    %v1432 = vld [vmem:[#allocation6 + $0x168] sm:$0xff]
    %v1433 = vld [vmem:[#allocation6 + $0x170] sm:$0xff]
    %v1434 = vld [vmem:[#allocation6 + $0x178] sm:$0xff]
    %v1435 = vld [vmem:[#allocation6 + $0x180] sm:$0xff]
    %v1436 = vld [vmem:[#allocation6 + $0x188] sm:$0xff]
    %v1437 = vld [vmem:[#allocation6 + $0x190] sm:$0xff]
    %v1438 = vld [vmem:[#allocation6 + $0x198] sm:$0xff]
    %v1439 = vld [vmem:[#allocation6 + $0x1a0] sm:$0xff]
    %v1440 = vld [vmem:[#allocation6 + $0x1a8] sm:$0xff]
    %v1441 = vld [vmem:[#allocation6 + $0x1b0] sm:$0xff]
    %v1442 = vld [vmem:[#allocation6 + $0x1b8] sm:$0xff]
    %v1443 = vld [vmem:[#allocation6 + $0x1c0] sm:$0xff]
    %v1444 = vld [vmem:[#allocation6 + $0x1c8] sm:$0xff]
    %v1445 = vld [vmem:[#allocation6 + $0x1d0] sm:$0xff]
    %v1446 = vld [vmem:[#allocation6 + $0x1d8] sm:$0xff]
    %v1447 = vld [vmem:[#allocation6 + $0x1e0] sm:$0xff]
    %v1448 = vld [vmem:[#allocation6 + $0x1e8] sm:$0xff]
    %v1449 = vld [vmem:[#allocation6 + $0x1f0] sm:$0xff]
    %v1450 = vld [vmem:[#allocation6 + $0x1f8] sm:$0xff]
    %v1451 = vld [vmem:[#allocation6 + $0x200] sm:$0xff]
    %v1452 = vld [vmem:[#allocation6 + $0x208] sm:$0xff]
    %v1453 = vld [vmem:[#allocation6 + $0x210] sm:$0xff]
    %v1454 = vld [vmem:[#allocation6 + $0x218] sm:$0xff]
    %v1455 = vld [vmem:[#allocation6 + $0x220] sm:$0xff]
    %v1456 = vld [vmem:[#allocation6 + $0x228] sm:$0xff]
    %v1457 = vld [vmem:[#allocation6 + $0x230] sm:$0xff]
    %v1458 = vld [vmem:[#allocation6 + $0x238] sm:$0xff]
    %v1459 = vld [vmem:[#allocation6 + $0x240] sm:$0xff]
    %v1460 = vld [vmem:[#allocation6 + $0x248] sm:$0xff]
    %v1461 = vld [vmem:[#allocation6 + $0x250] sm:$0xff]
    %v1462 = vld [vmem:[#allocation6 + $0x258] sm:$0xff]
    %v1463 = vld [vmem:[#allocation6 + $0x260] sm:$0xff]
    %v1464 = vld [vmem:[#allocation6 + $0x268] sm:$0xff]
    %v1465 = vld [vmem:[#allocation6 + $0x270] sm:$0xff]
    %v1466 = vld [vmem:[#allocation6 + $0x278] sm:$0xff]
    %v1467 = vld [vmem:[#allocation6 + $0x280] sm:$0xff]
    %v1468 = vld [vmem:[#allocation6 + $0x288] sm:$0xff]
    %v1469 = vld [vmem:[#allocation6 + $0x290] sm:$0xff]
    %v1470 = vld [vmem:[#allocation6 + $0x298] sm:$0xff]
    %v1471 = vld [vmem:[#allocation6 + $0x2a0] sm:$0xff]
    %v1472 = vld [vmem:[#allocation6 + $0x2a8] sm:$0xff]
    %v1473 = vld [vmem:[#allocation6 + $0x2b0] sm:$0xff]
    %v1474 = vld [vmem:[#allocation6 + $0x2b8] sm:$0xff]
    %v1475 = vld [vmem:[#allocation6 + $0x2c0] sm:$0xff]
    %v1476 = vld [vmem:[#allocation6 + $0x2c8] sm:$0xff]
    %v1477 = vld [vmem:[#allocation6 + $0x2d0] sm:$0xff]
    %v1478 = vld [vmem:[#allocation6 + $0x2d8] sm:$0xff]
    %v1479 = vld [vmem:[#allocation6 + $0x2e0] sm:$0xff]
    %v1480 = vld [vmem:[#allocation6 + $0x2e8] sm:$0xff]
    %v1481 = vld [vmem:[#allocation6 + $0x2f0] sm:$0xff]
    %v1482 = vld [vmem:[#allocation6 + $0x2f8] sm:$0xff]
    %v1483 = vld [vmem:[#allocation6 + $0x300] sm:$0xff]
    %v1484 = vld [vmem:[#allocation6 + $0x308] sm:$0xff]
    %v1485 = vld [vmem:[#allocation6 + $0x310] sm:$0xff]
    %v1486 = vld [vmem:[#allocation6 + $0x318] sm:$0xff]
    %v1487 = vld [vmem:[#allocation6 + $0x320] sm:$0xff]
    %v1488 = vld [vmem:[#allocation6 + $0x328] sm:$0xff]
    %v1489 = vld [vmem:[#allocation6 + $0x330] sm:$0xff]
    %v1490 = vld [vmem:[#allocation6 + $0x338] sm:$0xff]
    %v1491 = vld [vmem:[#allocation6 + $0x340] sm:$0xff]
    %v1492 = vld [vmem:[#allocation6 + $0x348] sm:$0xff]
    %v1493 = vld [vmem:[#allocation6 + $0x350] sm:$0xff]
    %v1494 = vld [vmem:[#allocation6 + $0x358] sm:$0xff]
    %v1495 = vld [vmem:[#allocation6 + $0x360] sm:$0xff]
    %v1496 = vld [vmem:[#allocation6 + $0x368] sm:$0xff]
    %v1497 = vld [vmem:[#allocation6 + $0x370] sm:$0xff]
    %v1498 = vld [vmem:[#allocation6 + $0x378] sm:$0xff]
    %v1499 = vld [vmem:[#allocation6 + $0x380] sm:$0xff]
    %v1500 = vld [vmem:[#allocation6 + $0x388] sm:$0xff]
    %v1501 = vld [vmem:[#allocation6 + $0x390] sm:$0xff]
    %v1502 = vld [vmem:[#allocation6 + $0x398] sm:$0xff]
    %v1503 = vld [vmem:[#allocation6 + $0x3a0] sm:$0xff]
    %v1504 = vld [vmem:[#allocation6 + $0x3a8] sm:$0xff]
    %v1505 = vld [vmem:[#allocation6 + $0x3b0] sm:$0xff]
    %v1506 = vld [vmem:[#allocation6 + $0x3b8] sm:$0xff]
    %v1507 = vld [vmem:[#allocation6 + $0x3c0] sm:$0xff]
    %v1508 = vld [vmem:[#allocation6 + $0x3c8] sm:$0xff]
    %v1509 = vld [vmem:[#allocation6 + $0x3d0] sm:$0xff]
    %v1510 = vld [vmem:[#allocation6 + $0x3d8] sm:$0xff]
    %v1511 = vld [vmem:[#allocation6 + $0x3e0] sm:$0xff]
    %v1512 = vld [vmem:[#allocation6 + $0x3e8] sm:$0xff]
    %v1513 = vld [vmem:[#allocation6 + $0x3f0] sm:$0xff]
    %v1514 = vld [vmem:[#allocation6 + $0x3f8] sm:$0xff]
    %v1515 = vld [vmem:[%s8] sm:$0xf]
    %v1517 = vperm.slane %v1515, 0
    %v1518 = vperm.slane %v1515, 1
    %v1519 = vperm.slane %v1515, 2
    %v1520 = vperm.slane %v1515, 3
    %v1653 = vunpack.c.l.b16 %v1387
    %v1654 = vunpack.c.h.b16 %v1387
    %v1655 = vunpack.c.l.b16 %v1388
    %v1656 = vunpack.c.h.b16 %v1388
    %v1657 = vunpack.c.l.b16 %v1389
    %v1658 = vunpack.c.h.b16 %v1389
    %v1659 = vunpack.c.l.b16 %v1390
    %v1660 = vunpack.c.h.b16 %v1390
    %v1661 = vunpack.c.l.b16 %v1391
    %v1662 = vunpack.c.h.b16 %v1391
    %v1663 = vunpack.c.l.b16 %v1392
    %v1664 = vunpack.c.h.b16 %v1392
    %v1665 = vunpack.c.l.b16 %v1393
    %v1666 = vunpack.c.h.b16 %v1393
    %v1667 = vunpack.c.l.b16 %v1394
    %v1668 = vunpack.c.h.b16 %v1394
    %v1669 = vunpack.c.l.b16 %v1395
    %v1670 = vunpack.c.h.b16 %v1395
    %v1671 = vunpack.c.l.b16 %v1396
    %v1672 = vunpack.c.h.b16 %v1396
    %v1673 = vunpack.c.l.b16 %v1397
    %v1674 = vunpack.c.h.b16 %v1397
    %v1675 = vunpack.c.l.b16 %v1398
    %v1676 = vunpack.c.h.b16 %v1398
    %v1677 = vunpack.c.l.b16 %v1399
    %v1678 = vunpack.c.h.b16 %v1399
    %v1679 = vunpack.c.l.b16 %v1400
    %v1680 = vunpack.c.h.b16 %v1400
    %v1681 = vunpack.c.l.b16 %v1401
    %v1682 = vunpack.c.h.b16 %v1401
    %v1683 = vunpack.c.l.b16 %v1402
    %v1684 = vunpack.c.h.b16 %v1402
    %v1685 = vunpack.c.l.b16 %v1403
    %v1686 = vunpack.c.h.b16 %v1403
    %v1687 = vunpack.c.l.b16 %v1404
    %v1688 = vunpack.c.h.b16 %v1404
    %v1689 = vunpack.c.l.b16 %v1405
    %v1690 = vunpack.c.h.b16 %v1405
    %v1691 = vunpack.c.l.b16 %v1406
    %v1692 = vunpack.c.h.b16 %v1406
    %v1693 = vunpack.c.l.b16 %v1407
    %v1694 = vunpack.c.h.b16 %v1407
    %v1695 = vunpack.c.l.b16 %v1408
    %v1696 = vunpack.c.h.b16 %v1408
    %v1697 = vunpack.c.l.b16 %v1409
    %v1698 = vunpack.c.h.b16 %v1409
    %v1699 = vunpack.c.l.b16 %v1410
    %v1700 = vunpack.c.h.b16 %v1410
    %v1701 = vunpack.c.l.b16 %v1411
    %v1702 = vunpack.c.h.b16 %v1411
    %v1703 = vunpack.c.l.b16 %v1412
    %v1704 = vunpack.c.h.b16 %v1412
    %v1705 = vunpack.c.l.b16 %v1413
    %v1706 = vunpack.c.h.b16 %v1413
    %v1707 = vunpack.c.l.b16 %v1414
    %v1708 = vunpack.c.h.b16 %v1414
    %v1709 = vunpack.c.l.b16 %v1415
    %v1710 = vunpack.c.h.b16 %v1415
    %v1711 = vunpack.c.l.b16 %v1416
    %v1712 = vunpack.c.h.b16 %v1416
    %v1713 = vunpack.c.l.b16 %v1417
    %v1714 = vunpack.c.h.b16 %v1417
    %v1715 = vunpack.c.l.b16 %v1418
    %v1716 = vunpack.c.h.b16 %v1418
    %v1717 = vunpack.c.l.b16 %v1419
    %v1718 = vunpack.c.h.b16 %v1419
    %v1719 = vunpack.c.l.b16 %v1420
    %v1720 = vunpack.c.h.b16 %v1420
    %v1721 = vunpack.c.l.b16 %v1421
    %v1722 = vunpack.c.h.b16 %v1421
    %v1723 = vunpack.c.l.b16 %v1422
    %v1724 = vunpack.c.h.b16 %v1422
    %v1725 = vunpack.c.l.b16 %v1423
    %v1726 = vunpack.c.h.b16 %v1423
    %v1727 = vunpack.c.l.b16 %v1424
    %v1728 = vunpack.c.h.b16 %v1424
    %v1729 = vunpack.c.l.b16 %v1425
    %v1730 = vunpack.c.h.b16 %v1425
    %v1731 = vunpack.c.l.b16 %v1426
    %v1732 = vunpack.c.h.b16 %v1426
    %v1733 = vunpack.c.l.b16 %v1427
    %v1734 = vunpack.c.h.b16 %v1427
    %v1735 = vunpack.c.l.b16 %v1428
    %v1736 = vunpack.c.h.b16 %v1428
    %v1737 = vunpack.c.l.b16 %v1429
    %v1738 = vunpack.c.h.b16 %v1429
    %v1739 = vunpack.c.l.b16 %v1430
    %v1740 = vunpack.c.h.b16 %v1430
    %v1741 = vunpack.c.l.b16 %v1431
    %v1742 = vunpack.c.h.b16 %v1431
    %v1743 = vunpack.c.l.b16 %v1432
    %v1744 = vunpack.c.h.b16 %v1432
    %v1745 = vunpack.c.l.b16 %v1433
    %v1746 = vunpack.c.h.b16 %v1433
    %v1747 = vunpack.c.l.b16 %v1434
    %v1748 = vunpack.c.h.b16 %v1434
    %v1749 = vunpack.c.l.b16 %v1435
    %v1750 = vunpack.c.h.b16 %v1435
    %v1751 = vunpack.c.l.b16 %v1436
    %v1752 = vunpack.c.h.b16 %v1436
    %v1753 = vunpack.c.l.b16 %v1437
    %v1754 = vunpack.c.h.b16 %v1437
    %v1755 = vunpack.c.l.b16 %v1438
    %v1756 = vunpack.c.h.b16 %v1438
    %v1757 = vunpack.c.l.b16 %v1439
    %v1758 = vunpack.c.h.b16 %v1439
    %v1759 = vunpack.c.l.b16 %v1440
    %v1760 = vunpack.c.h.b16 %v1440
    %v1761 = vunpack.c.l.b16 %v1441
    %v1762 = vunpack.c.h.b16 %v1441
    %v1763 = vunpack.c.l.b16 %v1442
    %v1764 = vunpack.c.h.b16 %v1442
    %v1765 = vunpack.c.l.b16 %v1443
    %v1766 = vunpack.c.h.b16 %v1443
    %v1767 = vunpack.c.l.b16 %v1444
    %v1768 = vunpack.c.h.b16 %v1444
    %v1769 = vunpack.c.l.b16 %v1445
    %v1770 = vunpack.c.h.b16 %v1445
    %v1771 = vunpack.c.l.b16 %v1446
    %v1772 = vunpack.c.h.b16 %v1446
    %v1773 = vunpack.c.l.b16 %v1447
    %v1774 = vunpack.c.h.b16 %v1447
    %v1775 = vunpack.c.l.b16 %v1448
    %v1776 = vunpack.c.h.b16 %v1448
    %v1777 = vunpack.c.l.b16 %v1449
    %v1778 = vunpack.c.h.b16 %v1449
    %v1779 = vunpack.c.l.b16 %v1450
    %v1780 = vunpack.c.h.b16 %v1450
    %v1781 = vunpack.c.l.b16 %v1451
    %v1782 = vunpack.c.h.b16 %v1451
    %v1783 = vunpack.c.l.b16 %v1452
    %v1784 = vunpack.c.h.b16 %v1452
    %v1785 = vunpack.c.l.b16 %v1453
    %v1786 = vunpack.c.h.b16 %v1453
    %v1787 = vunpack.c.l.b16 %v1454
    %v1788 = vunpack.c.h.b16 %v1454
    %v1789 = vunpack.c.l.b16 %v1455
    %v1790 = vunpack.c.h.b16 %v1455
    %v1791 = vunpack.c.l.b16 %v1456
    %v1792 = vunpack.c.h.b16 %v1456
    %v1793 = vunpack.c.l.b16 %v1457
    %v1794 = vunpack.c.h.b16 %v1457
    %v1795 = vunpack.c.l.b16 %v1458
    %v1796 = vunpack.c.h.b16 %v1458
    %v1797 = vunpack.c.l.b16 %v1459
    %v1798 = vunpack.c.h.b16 %v1459
    %v1799 = vunpack.c.l.b16 %v1460
    %v1800 = vunpack.c.h.b16 %v1460
    %v1801 = vunpack.c.l.b16 %v1461
    %v1802 = vunpack.c.h.b16 %v1461
    %v1803 = vunpack.c.l.b16 %v1462
    %v1804 = vunpack.c.h.b16 %v1462
    %v1805 = vunpack.c.l.b16 %v1463
    %v1806 = vunpack.c.h.b16 %v1463
    %v1807 = vunpack.c.l.b16 %v1464
    %v1808 = vunpack.c.h.b16 %v1464
    %v1809 = vunpack.c.l.b16 %v1465
    %v1810 = vunpack.c.h.b16 %v1465
    %v1811 = vunpack.c.l.b16 %v1466
    %v1812 = vunpack.c.h.b16 %v1466
    %v1813 = vunpack.c.l.b16 %v1467
    %v1814 = vunpack.c.h.b16 %v1467
    %v1815 = vunpack.c.l.b16 %v1468
    %v1816 = vunpack.c.h.b16 %v1468
    %v1817 = vunpack.c.l.b16 %v1469
    %v1818 = vunpack.c.h.b16 %v1469
    %v1819 = vunpack.c.l.b16 %v1470
    %v1820 = vunpack.c.h.b16 %v1470
    %v1821 = vunpack.c.l.b16 %v1471
    %v1822 = vunpack.c.h.b16 %v1471
    %v1823 = vunpack.c.l.b16 %v1472
    %v1824 = vunpack.c.h.b16 %v1472
    %v1825 = vunpack.c.l.b16 %v1473
    %v1826 = vunpack.c.h.b16 %v1473
    %v1827 = vunpack.c.l.b16 %v1474
    %v1828 = vunpack.c.h.b16 %v1474
    %v1829 = vunpack.c.l.b16 %v1475
    %v1830 = vunpack.c.h.b16 %v1475
    %v1831 = vunpack.c.l.b16 %v1476
    %v1832 = vunpack.c.h.b16 %v1476
    %v1833 = vunpack.c.l.b16 %v1477
    %v1834 = vunpack.c.h.b16 %v1477
    %v1835 = vunpack.c.l.b16 %v1478
    %v1836 = vunpack.c.h.b16 %v1478
    %v1837 = vunpack.c.l.b16 %v1479
    %v1838 = vunpack.c.h.b16 %v1479
    %v1839 = vunpack.c.l.b16 %v1480
    %v1840 = vunpack.c.h.b16 %v1480
    %v1841 = vunpack.c.l.b16 %v1481
    %v1842 = vunpack.c.h.b16 %v1481
    %v1843 = vunpack.c.l.b16 %v1482
    %v1844 = vunpack.c.h.b16 %v1482
    %v1845 = vunpack.c.l.b16 %v1483
    %v1846 = vunpack.c.h.b16 %v1483
    %v1847 = vunpack.c.l.b16 %v1484
    %v1848 = vunpack.c.h.b16 %v1484
    %v1849 = vunpack.c.l.b16 %v1485
    %v1850 = vunpack.c.h.b16 %v1485
    %v1851 = vunpack.c.l.b16 %v1486
    %v1852 = vunpack.c.h.b16 %v1486
    %v1853 = vunpack.c.l.b16 %v1487
    %v1854 = vunpack.c.h.b16 %v1487
    %v1855 = vunpack.c.l.b16 %v1488
    %v1856 = vunpack.c.h.b16 %v1488
    %v1857 = vunpack.c.l.b16 %v1489
    %v1858 = vunpack.c.h.b16 %v1489
    %v1859 = vunpack.c.l.b16 %v1490
    %v1860 = vunpack.c.h.b16 %v1490
    %v1861 = vunpack.c.l.b16 %v1491
    %v1862 = vunpack.c.h.b16 %v1491
    %v1863 = vunpack.c.l.b16 %v1492
    %v1864 = vunpack.c.h.b16 %v1492
    %v1865 = vunpack.c.l.b16 %v1493
    %v1866 = vunpack.c.h.b16 %v1493
    %v1867 = vunpack.c.l.b16 %v1494
    %v1868 = vunpack.c.h.b16 %v1494
    %v1869 = vunpack.c.l.b16 %v1495
    %v1870 = vunpack.c.h.b16 %v1495
    %v1871 = vunpack.c.l.b16 %v1496
    %v1872 = vunpack.c.h.b16 %v1496
    %v1873 = vunpack.c.l.b16 %v1497
    %v1874 = vunpack.c.h.b16 %v1497
    %v1875 = vunpack.c.l.b16 %v1498
    %v1876 = vunpack.c.h.b16 %v1498
    %v1877 = vunpack.c.l.b16 %v1499
    %v1878 = vunpack.c.h.b16 %v1499
    %v1879 = vunpack.c.l.b16 %v1500
    %v1880 = vunpack.c.h.b16 %v1500
    %v1881 = vunpack.c.l.b16 %v1501
    %v1882 = vunpack.c.h.b16 %v1501
    %v1883 = vunpack.c.l.b16 %v1502
    %v1884 = vunpack.c.h.b16 %v1502
    %v1885 = vunpack.c.l.b16 %v1503
    %v1886 = vunpack.c.h.b16 %v1503
    %v1887 = vunpack.c.l.b16 %v1504
    %v1888 = vunpack.c.h.b16 %v1504
    %v1889 = vunpack.c.l.b16 %v1505
    %v1890 = vunpack.c.h.b16 %v1505
    %v1891 = vunpack.c.l.b16 %v1506
    %v1892 = vunpack.c.h.b16 %v1506
    %v1893 = vunpack.c.l.b16 %v1507
    %v1894 = vunpack.c.h.b16 %v1507
    %v1895 = vunpack.c.l.b16 %v1508
    %v1896 = vunpack.c.h.b16 %v1508
    %v1897 = vunpack.c.l.b16 %v1509
    %v1898 = vunpack.c.h.b16 %v1509
    %v1899 = vunpack.c.l.b16 %v1510
    %v1900 = vunpack.c.h.b16 %v1510
    %v1901 = vunpack.c.l.b16 %v1511
    %v1902 = vunpack.c.h.b16 %v1511
    %v1903 = vunpack.c.l.b16 %v1512
    %v1904 = vunpack.c.h.b16 %v1512
    %v1905 = vunpack.c.l.b16 %v1513
    %v1906 = vunpack.c.h.b16 %v1513
    %v1907 = vunpack.c.l.b16 %v1514
    %v1908 = vunpack.c.h.b16 %v1514
    %v1909 = vpack.c.b16 %v1657, %v1653
    %v1910 = vpack.c.b16 %v1658, %v1654
    %v1911 = vpack.c.b16 %v1659, %v1655
    %v1912 = vpack.c.b16 %v1660, %v1656
    %v1913 = vpack.c.b16 %v1665, %v1661
    %v1914 = vpack.c.b16 %v1666, %v1662
    %v1915 = vpack.c.b16 %v1667, %v1663
    %v1916 = vpack.c.b16 %v1668, %v1664
    %v1917 = vpack.c.b16 %v1673, %v1669
    %v1918 = vpack.c.b16 %v1674, %v1670
    %v1919 = vpack.c.b16 %v1675, %v1671
    %v1920 = vpack.c.b16 %v1676, %v1672
    %v1921 = vpack.c.b16 %v1681, %v1677
    %v1922 = vpack.c.b16 %v1682, %v1678
    %v1923 = vpack.c.b16 %v1683, %v1679
    %v1924 = vpack.c.b16 %v1684, %v1680
    %v1925 = vpack.c.b16 %v1689, %v1685
    %v1926 = vpack.c.b16 %v1690, %v1686
    %v1927 = vpack.c.b16 %v1691, %v1687
    %v1928 = vpack.c.b16 %v1692, %v1688
    %v1929 = vpack.c.b16 %v1697, %v1693
    %v1930 = vpack.c.b16 %v1698, %v1694
    %v1931 = vpack.c.b16 %v1699, %v1695
    %v1932 = vpack.c.b16 %v1700, %v1696
    %v1933 = vpack.c.b16 %v1705, %v1701
    %v1934 = vpack.c.b16 %v1706, %v1702
    %v1935 = vpack.c.b16 %v1707, %v1703
    %v1936 = vpack.c.b16 %v1708, %v1704
    %v1937 = vpack.c.b16 %v1713, %v1709
    %v1938 = vpack.c.b16 %v1714, %v1710
    %v1939 = vpack.c.b16 %v1715, %v1711
    %v1940 = vpack.c.b16 %v1716, %v1712
    %v1941 = vpack.c.b16 %v1721, %v1717
    %v1942 = vpack.c.b16 %v1722, %v1718
    %v1943 = vpack.c.b16 %v1723, %v1719
    %v1944 = vpack.c.b16 %v1724, %v1720
    %v1945 = vpack.c.b16 %v1729, %v1725
    %v1946 = vpack.c.b16 %v1730, %v1726
    %v1947 = vpack.c.b16 %v1731, %v1727
    %v1948 = vpack.c.b16 %v1732, %v1728
    %v1949 = vpack.c.b16 %v1737, %v1733
    %v1950 = vpack.c.b16 %v1738, %v1734
    %v1951 = vpack.c.b16 %v1739, %v1735
    %v1952 = vpack.c.b16 %v1740, %v1736
    %v1953 = vpack.c.b16 %v1745, %v1741
    %v1954 = vpack.c.b16 %v1746, %v1742
    %v1955 = vpack.c.b16 %v1747, %v1743
    %v1956 = vpack.c.b16 %v1748, %v1744
    %v1957 = vpack.c.b16 %v1753, %v1749
    %v1958 = vpack.c.b16 %v1754, %v1750
    %v1959 = vpack.c.b16 %v1755, %v1751
    %v1960 = vpack.c.b16 %v1756, %v1752
    %v1961 = vpack.c.b16 %v1761, %v1757
    %v1962 = vpack.c.b16 %v1762, %v1758
    %v1963 = vpack.c.b16 %v1763, %v1759
    %v1964 = vpack.c.b16 %v1764, %v1760
    %v1965 = vpack.c.b16 %v1769, %v1765
    %v1966 = vpack.c.b16 %v1770, %v1766
    %v1967 = vpack.c.b16 %v1771, %v1767
    %v1968 = vpack.c.b16 %v1772, %v1768
    %v1969 = vpack.c.b16 %v1777, %v1773
    %v1970 = vpack.c.b16 %v1778, %v1774
    %v1971 = vpack.c.b16 %v1779, %v1775
    %v1972 = vpack.c.b16 %v1780, %v1776
    %v1973 = vpack.c.b16 %v1785, %v1781
    %v1974 = vpack.c.b16 %v1786, %v1782
    %v1975 = vpack.c.b16 %v1787, %v1783
    %v1976 = vpack.c.b16 %v1788, %v1784
    %v1977 = vpack.c.b16 %v1793, %v1789
    %v1978 = vpack.c.b16 %v1794, %v1790
    %v1979 = vpack.c.b16 %v1795, %v1791
    %v1980 = vpack.c.b16 %v1796, %v1792
    %v1981 = vpack.c.b16 %v1801, %v1797
    %v1982 = vpack.c.b16 %v1802, %v1798
    %v1983 = vpack.c.b16 %v1803, %v1799
    %v1984 = vpack.c.b16 %v1804, %v1800
    %v1985 = vpack.c.b16 %v1809, %v1805
    %v1986 = vpack.c.b16 %v1810, %v1806
    %v1987 = vpack.c.b16 %v1811, %v1807
    %v1988 = vpack.c.b16 %v1812, %v1808
    %v1989 = vpack.c.b16 %v1817, %v1813
    %v1990 = vpack.c.b16 %v1818, %v1814
    %v1991 = vpack.c.b16 %v1819, %v1815
    %v1992 = vpack.c.b16 %v1820, %v1816
    %v1993 = vpack.c.b16 %v1825, %v1821
    %v1994 = vpack.c.b16 %v1826, %v1822
    %v1995 = vpack.c.b16 %v1827, %v1823
    %v1996 = vpack.c.b16 %v1828, %v1824
    %v1997 = vpack.c.b16 %v1833, %v1829
    %v1998 = vpack.c.b16 %v1834, %v1830
    %v1999 = vpack.c.b16 %v1835, %v1831
    %v2000 = vpack.c.b16 %v1836, %v1832
    %v2001 = vpack.c.b16 %v1841, %v1837
    %v2002 = vpack.c.b16 %v1842, %v1838
    %v2003 = vpack.c.b16 %v1843, %v1839
    %v2004 = vpack.c.b16 %v1844, %v1840
    %v2005 = vpack.c.b16 %v1849, %v1845
    %v2006 = vpack.c.b16 %v1850, %v1846
    %v2007 = vpack.c.b16 %v1851, %v1847
    %v2008 = vpack.c.b16 %v1852, %v1848
    %v2009 = vpack.c.b16 %v1857, %v1853
    %v2010 = vpack.c.b16 %v1858, %v1854
    %v2011 = vpack.c.b16 %v1859, %v1855
    %v2012 = vpack.c.b16 %v1860, %v1856
    %v2013 = vpack.c.b16 %v1865, %v1861
    %v2014 = vpack.c.b16 %v1866, %v1862
    %v2015 = vpack.c.b16 %v1867, %v1863
    %v2016 = vpack.c.b16 %v1868, %v1864
    %v2017 = vpack.c.b16 %v1873, %v1869
    %v2018 = vpack.c.b16 %v1874, %v1870
    %v2019 = vpack.c.b16 %v1875, %v1871
    %v2020 = vpack.c.b16 %v1876, %v1872
    %v2021 = vpack.c.b16 %v1881, %v1877
    %v2022 = vpack.c.b16 %v1882, %v1878
    %v2023 = vpack.c.b16 %v1883, %v1879
    %v2024 = vpack.c.b16 %v1884, %v1880
    %v2025 = vpack.c.b16 %v1889, %v1885
    %v2026 = vpack.c.b16 %v1890, %v1886
    %v2027 = vpack.c.b16 %v1891, %v1887
    %v2028 = vpack.c.b16 %v1892, %v1888
    %v2029 = vpack.c.b16 %v1897, %v1893
    %v2030 = vpack.c.b16 %v1898, %v1894
    %v2031 = vpack.c.b16 %v1899, %v1895
    %v2032 = vpack.c.b16 %v1900, %v1896
    %v2033 = vpack.c.b16 %v1905, %v1901
    %v2034 = vpack.c.b16 %v1906, %v1902
    %v2035 = vpack.c.b16 %v1907, %v1903
    %v2036 = vpack.c.b16 %v1908, %v1904
    %2165 = vmatpush.bf16.msra.mxu0 %v1937
    %2166 = vmatpush.bf16.msra.mxu0 %v1933
    %2167 = vmatpush.bf16.msra.mxu0 %v1929
    %2168 = vmatpush.bf16.msra.mxu0 %v1925
    %2169 = vmatpush.bf16.msra.mxu0 %v1921
    %2170 = vmatpush.bf16.msra.mxu0 %v1917
    %2171 = vmatpush.bf16.msra.mxu0 %v1913
    %2172 = vmatpush.bf16.msra.mxu0 %v1909
    %2173 = vmatmul.bf16.gmra.mxu0 %v1379
    %v2174 = vpop.f32.mrf.mxu0
    %v2175 = vadd.f32 %v1517, %v2174
    %v2176 = vpop.f32.mrf.mxu0
    %2177 = vdwg.mxu0
    %2178 = vmatpush.bf16.msra.mxu0 %v1969
    %2179 = vmatpush.bf16.msra.mxu0 %v1965
    %2180 = vmatpush.bf16.msra.mxu0 %v1961
    %2181 = vmatpush.bf16.msra.mxu0 %v1957
    %2182 = vmatpush.bf16.msra.mxu0 %v1953
    %2183 = vmatpush.bf16.msra.mxu0 %v1949
    %2184 = vmatpush.bf16.msra.mxu0 %v1945
    %2185 = vmatpush.bf16.msra.mxu0 %v1941
    %2186 = vmatmul.bf16.gmra.mxu0 %v1380
    %v2187 = vpop.f32.mrf.mxu0
    %v2188 = vadd.f32 %v2175, %v2187
    %v2189 = vpop.f32.mrf.mxu0
    %2190 = vdwg.mxu0
    %2191 = vmatpush.bf16.msra.mxu0 %v2001
    %2192 = vmatpush.bf16.msra.mxu0 %v1997
    %2193 = vmatpush.bf16.msra.mxu0 %v1993
    %2194 = vmatpush.bf16.msra.mxu0 %v1989
    %2195 = vmatpush.bf16.msra.mxu0 %v1985
    %2196 = vmatpush.bf16.msra.mxu0 %v1981
    %2197 = vmatpush.bf16.msra.mxu0 %v1977
    %2198 = vmatpush.bf16.msra.mxu0 %v1973
    %2199 = vmatmul.bf16.gmra.mxu0 %v1381
    %v2200 = vpop.f32.mrf.mxu0
    %v2201 = vadd.f32 %v2188, %v2200
    %v2202 = vpop.f32.mrf.mxu0
    %2203 = vdwg.mxu0
    %2204 = vmatpush.bf16.msra.mxu0 %v2033
    %2205 = vmatpush.bf16.msra.mxu0 %v2029
    %2206 = vmatpush.bf16.msra.mxu0 %v2025
    %2207 = vmatpush.bf16.msra.mxu0 %v2021
    %2208 = vmatpush.bf16.msra.mxu0 %v2017
    %2209 = vmatpush.bf16.msra.mxu0 %v2013
    %2210 = vmatpush.bf16.msra.mxu0 %v2009
    %2211 = vmatpush.bf16.msra.mxu0 %v2005
    %2212 = vmatmul.bf16.gmra.mxu0 %v1382
    %v2213 = vpop.f32.mrf.mxu0
    %v2214 = vadd.f32 %v2201, %v2213
    %v2215 = vpop.f32.mrf.mxu0
    %2216 = vdwg.mxu0
    %2217 = vmatpush.bf16.msra.mxu0 %v1938
    %2218 = vmatpush.bf16.msra.mxu0 %v1934
    %2219 = vmatpush.bf16.msra.mxu0 %v1930
    %2220 = vmatpush.bf16.msra.mxu0 %v1926
    %2221 = vmatpush.bf16.msra.mxu0 %v1922
    %2222 = vmatpush.bf16.msra.mxu0 %v1918
    %2223 = vmatpush.bf16.msra.mxu0 %v1914
    %2224 = vmatpush.bf16.msra.mxu0 %v1910
    %2225 = vmatmul.bf16.gmra.mxu0 %v1379
    %v2226 = vpop.f32.mrf.mxu0
    %v2227 = vadd.f32 %v1518, %v2226
    %v2228 = vpop.f32.mrf.mxu0
    %2229 = vdwg.mxu0
    %2230 = vmatpush.bf16.msra.mxu0 %v1970
    %2231 = vmatpush.bf16.msra.mxu0 %v1966
    %2232 = vmatpush.bf16.msra.mxu0 %v1962
    %2233 = vmatpush.bf16.msra.mxu0 %v1958
    %2234 = vmatpush.bf16.msra.mxu0 %v1954
    %2235 = vmatpush.bf16.msra.mxu0 %v1950
    %2236 = vmatpush.bf16.msra.mxu0 %v1946
    %2237 = vmatpush.bf16.msra.mxu0 %v1942
    %2238 = vmatmul.bf16.gmra.mxu0 %v1380
    %v2239 = vpop.f32.mrf.mxu0
    %v2240 = vadd.f32 %v2227, %v2239
    %v2241 = vpop.f32.mrf.mxu0
    %2242 = vdwg.mxu0
    %2243 = vmatpush.bf16.msra.mxu0 %v2002
    %2244 = vmatpush.bf16.msra.mxu0 %v1998
    %2245 = vmatpush.bf16.msra.mxu0 %v1994
    %2246 = vmatpush.bf16.msra.mxu0 %v1990
    %2247 = vmatpush.bf16.msra.mxu0 %v1986
    %2248 = vmatpush.bf16.msra.mxu0 %v1982
    %2249 = vmatpush.bf16.msra.mxu0 %v1978
    %2250 = vmatpush.bf16.msra.mxu0 %v1974
    %2251 = vmatmul.bf16.gmra.mxu0 %v1381
    %v2252 = vpop.f32.mrf.mxu0
    %v2253 = vadd.f32 %v2240, %v2252
    %v2254 = vpop.f32.mrf.mxu0
    %2255 = vdwg.mxu0
    %2256 = vmatpush.bf16.msra.mxu0 %v2034
    %2257 = vmatpush.bf16.msra.mxu0 %v2030
    %2258 = vmatpush.bf16.msra.mxu0 %v2026
    %2259 = vmatpush.bf16.msra.mxu0 %v2022
    %2260 = vmatpush.bf16.msra.mxu0 %v2018
    %2261 = vmatpush.bf16.msra.mxu0 %v2014
    %2262 = vmatpush.bf16.msra.mxu0 %v2010
    %2263 = vmatpush.bf16.msra.mxu0 %v2006
    %2264 = vmatmul.bf16.gmra.mxu0 %v1382
    %v2265 = vpop.f32.mrf.mxu0
    %v2266 = vadd.f32 %v2253, %v2265
    %v2267 = vpop.f32.mrf.mxu0
    %2268 = vdwg.mxu0
    %2269 = vmatpush.bf16.msra.mxu0 %v1939
    %2270 = vmatpush.bf16.msra.mxu0 %v1935
    %2271 = vmatpush.bf16.msra.mxu0 %v1931
    %2272 = vmatpush.bf16.msra.mxu0 %v1927
    %2273 = vmatpush.bf16.msra.mxu0 %v1923
    %2274 = vmatpush.bf16.msra.mxu0 %v1919
    %2275 = vmatpush.bf16.msra.mxu0 %v1915
    %2276 = vmatpush.bf16.msra.mxu0 %v1911
    %2277 = vmatmul.bf16.gmra.mxu0 %v1379
    %v2278 = vpop.f32.mrf.mxu0
    %v2279 = vadd.f32 %v1519, %v2278
    %v2280 = vpop.f32.mrf.mxu0
    %2281 = vdwg.mxu0
    %2282 = vmatpush.bf16.msra.mxu0 %v1971
    %2283 = vmatpush.bf16.msra.mxu0 %v1967
    %2284 = vmatpush.bf16.msra.mxu0 %v1963
    %2285 = vmatpush.bf16.msra.mxu0 %v1959
    %2286 = vmatpush.bf16.msra.mxu0 %v1955
    %2287 = vmatpush.bf16.msra.mxu0 %v1951
    %2288 = vmatpush.bf16.msra.mxu0 %v1947
    %2289 = vmatpush.bf16.msra.mxu0 %v1943
    %2290 = vmatmul.bf16.gmra.mxu0 %v1380
    %v2291 = vpop.f32.mrf.mxu0
    %v2292 = vadd.f32 %v2279, %v2291
    %v2293 = vpop.f32.mrf.mxu0
    %2294 = vdwg.mxu0
    %2295 = vmatpush.bf16.msra.mxu0 %v2003
    %2296 = vmatpush.bf16.msra.mxu0 %v1999
    %2297 = vmatpush.bf16.msra.mxu0 %v1995
    %2298 = vmatpush.bf16.msra.mxu0 %v1991
    %2299 = vmatpush.bf16.msra.mxu0 %v1987
    %2300 = vmatpush.bf16.msra.mxu0 %v1983
    %2301 = vmatpush.bf16.msra.mxu0 %v1979
    %2302 = vmatpush.bf16.msra.mxu0 %v1975
    %2303 = vmatmul.bf16.gmra.mxu0 %v1381
    %v2304 = vpop.f32.mrf.mxu0
    %v2305 = vadd.f32 %v2292, %v2304
    %v2306 = vpop.f32.mrf.mxu0
    %2307 = vdwg.mxu0
    %2308 = vmatpush.bf16.msra.mxu0 %v2035
    %2309 = vmatpush.bf16.msra.mxu0 %v2031
    %2310 = vmatpush.bf16.msra.mxu0 %v2027
    %2311 = vmatpush.bf16.msra.mxu0 %v2023
    %2312 = vmatpush.bf16.msra.mxu0 %v2019
    %2313 = vmatpush.bf16.msra.mxu0 %v2015
    %2314 = vmatpush.bf16.msra.mxu0 %v2011
    %2315 = vmatpush.bf16.msra.mxu0 %v2007
    %2316 = vmatmul.bf16.gmra.mxu0 %v1382
    %v2317 = vpop.f32.mrf.mxu0
    %v2318 = vadd.f32 %v2305, %v2317
    %v2319 = vpop.f32.mrf.mxu0
    %2320 = vdwg.mxu0
    %2321 = vmatpush.bf16.msra.mxu0 %v1940
    %2322 = vmatpush.bf16.msra.mxu0 %v1936
    %2323 = vmatpush.bf16.msra.mxu0 %v1932
    %2324 = vmatpush.bf16.msra.mxu0 %v1928
    %2325 = vmatpush.bf16.msra.mxu0 %v1924
    %2326 = vmatpush.bf16.msra.mxu0 %v1920
    %2327 = vmatpush.bf16.msra.mxu0 %v1916
    %2328 = vmatpush.bf16.msra.mxu0 %v1912
    %2329 = vmatmul.bf16.gmra.mxu0 %v1379
    %v2330 = vpop.f32.mrf.mxu0
    %v2331 = vadd.f32 %v1520, %v2330
    %v2332 = vpop.f32.mrf.mxu0
    %2333 = vdwg.mxu0
    %2334 = vmatpush.bf16.msra.mxu0 %v1972
    %2335 = vmatpush.bf16.msra.mxu0 %v1968
    %2336 = vmatpush.bf16.msra.mxu0 %v1964
    %2337 = vmatpush.bf16.msra.mxu0 %v1960
    %2338 = vmatpush.bf16.msra.mxu0 %v1956
    %2339 = vmatpush.bf16.msra.mxu0 %v1952
    %2340 = vmatpush.bf16.msra.mxu0 %v1948
    %2341 = vmatpush.bf16.msra.mxu0 %v1944
    %2342 = vmatmul.bf16.gmra.mxu0 %v1380
    %v2343 = vpop.f32.mrf.mxu0
    %v2344 = vadd.f32 %v2331, %v2343
    %v2345 = vpop.f32.mrf.mxu0
    %2346 = vdwg.mxu0
    %2347 = vmatpush.bf16.msra.mxu0 %v2004
    %2348 = vmatpush.bf16.msra.mxu0 %v2000
    %2349 = vmatpush.bf16.msra.mxu0 %v1996
    %2350 = vmatpush.bf16.msra.mxu0 %v1992
    %2351 = vmatpush.bf16.msra.mxu0 %v1988
    %2352 = vmatpush.bf16.msra.mxu0 %v1984
    %2353 = vmatpush.bf16.msra.mxu0 %v1980
    %2354 = vmatpush.bf16.msra.mxu0 %v1976
    %2355 = vmatmul.bf16.gmra.mxu0 %v1381
    %v2356 = vpop.f32.mrf.mxu0
    %v2357 = vadd.f32 %v2344, %v2356
    %v2358 = vpop.f32.mrf.mxu0
    %2359 = vdwg.mxu0
    %2360 = vmatpush.bf16.msra.mxu0 %v2036
    %2361 = vmatpush.bf16.msra.mxu0 %v2032
    %2362 = vmatpush.bf16.msra.mxu0 %v2028
    %2363 = vmatpush.bf16.msra.mxu0 %v2024
    %2364 = vmatpush.bf16.msra.mxu0 %v2020
    %2365 = vmatpush.bf16.msra.mxu0 %v2016
    %2366 = vmatpush.bf16.msra.mxu0 %v2012
    %2367 = vmatpush.bf16.msra.mxu0 %v2008
    %2368 = vmatmul.bf16.gmra.mxu0 %v1382
    %v2369 = vpop.f32.mrf.mxu0
    %v2370 = vadd.f32 %v2357, %v2369
    %v2371 = vpop.f32.mrf.mxu0
    %2372 = vdwg.mxu0
    %v2373 = vtanh.pop %v2214
    %v2374 = vtanh.pop %v2266
    %v2375 = vtanh.pop %v2318
    %v2376 = vtanh.pop %v2370
    %2377 = vst [vmem:[#allocation22] sm:$0xff] %v2373
    %2378 = vst [vmem:[#allocation22 + $0x8] sm:$0xff] %v2374
    %2379 = vst [vmem:[#allocation22 + $0x10] sm:$0xff] %v2375
    %2380 = vst [vmem:[#allocation22 + $0x18] sm:$0xff] %v2376
    %v2381 = vmul.f32 %v1124, %v2373
    %v2382 = vmul.f32 %v1125, %v2374
    %v2383 = vmul.f32 %v1126, %v2375
    %v2384 = vmul.f32 %v1127, %v2376
    %v2385 = vadd.f32 %v2381, %v2382
    %v2386 = vadd.f32 %v2385, %v2383
    %v2387 = vadd.f32 %v2386, %v2384
    %2388 = vadd.xlane.f32.xlu0 %v2387
    %v2389 = vpop.xlane.xlu0 %2388
    %v2390 = vxor.u32 %v2389, 2147483648
    %v2391 = vmul.f32 %v2390, 1.442695
    %v2392 = vpow.pop %v2391
    %v2393 = vadd.f32 %v2392, 1.0
    %v2394 = vrcp.pop %v2393
    %v2395 = vmul.f32 %v2393, %v2394
    %v2396 = vsub.f32 1.0, %v2395
    %v2397 = vmul.f32 %v2394, %v2396
    %v2398 = vadd.f32 %v2394, %v2397
    %vm2399 = vweird.f32 %v2393
    %vm2400 = vweird.f32 %v2394
    %vm2401 = vmor %vm2399, %vm2400
    %v2402 = vsel %vm2401, %v2394, %v2398
    %v2403 = vand.u32 2147483647, %v2393
    %vm2404 = vcmp.eq.f32.partialorder %v2403, 8.507059e+37
    %v2405 = vand.u32 %v2393, 2147483648
    %v2406 = vor.u32 1.1754944e-38, %v2405
    %v2407 = vsel %vm2404, %v2406, %v2402
    %v2408 = vmul.f32 1.0, %v2407
    %2409 = vst [vmem:[#allocation19] sm:$0xff] %v2408
    %v2410 = vld [vmem:[%s9] sm:$0xff]
    %v2411 = vld [vmem:[%s9 + $0x8] sm:$0xff]
    %v2412 = vld [vmem:[%s10] sm:$0xff]
    %v2413 = vld [vmem:[%s10 + $0x8] sm:$0xff]
    %2415 = vset.pattern.permute.xlu0 0
    %2416 = vperm.xlu0 %2415, %v2412
    %v2417 = vpop.permute.xlu0 %2416
    %2420 = vset.pattern.permute.xlu0 0
    %2421 = vperm.xlu0 %2420, %v2413
    %v2422 = vpop.permute.xlu0 %2421
    %2425 = vset.pattern.permute.xlu0 0
    %2426 = vperm.xlu0 %2425, %v2410
    %v2427 = vpop.permute.xlu0 %2426
    %2430 = vset.pattern.permute.xlu0 0
    %2431 = vperm.xlu0 %2430, %v2411
    %v2432 = vpop.permute.xlu0 %2431
    %v2434 = vperm.slane %v2373, 0
    %v2435 = vperm.slane %v2374, 0
    %v2436 = vperm.slane %v2375, 0
    %v2437 = vperm.slane %v2376, 0
    %v2438 = vmul.f32 %v2427, %v2434
    %v2439 = vmul.f32 %v2427, %v2435
    %v2440 = vmul.f32 %v2427, %v2436
    %v2441 = vmul.f32 %v2427, %v2437
    %v2442 = vmul.f32 %v2432, %v2434
    %v2443 = vmul.f32 %v2432, %v2435
    %v2444 = vmul.f32 %v2432, %v2436
    %v2445 = vmul.f32 %v2432, %v2437
    %v2446 = vadd.f32 %v2417, %v2438
    %v2447 = vadd.f32 %v2417, %v2439
    %v2448 = vadd.f32 %v2417, %v2440
    %v2449 = vadd.f32 %v2417, %v2441
    %v2450 = vadd.f32 %v2422, %v2442
    %v2451 = vadd.f32 %v2422, %v2443
    %v2452 = vadd.f32 %v2422, %v2444
    %v2453 = vadd.f32 %v2422, %v2445
    %2454 = vset.pattern.permute.xlu0 1
    %2455 = vperm.xlu0 %2454, %v2410
    %v2456 = vpop.permute.xlu0 %2455
    %2458 = vset.pattern.permute.xlu0 1
    %2459 = vperm.xlu0 %2458, %v2411
    %v2460 = vpop.permute.xlu0 %2459
    %v2462 = vperm.slane %v2373, 1
    %v2463 = vperm.slane %v2374, 1
    %v2464 = vperm.slane %v2375, 1
    %v2465 = vperm.slane %v2376, 1
    %v2466 = vmul.f32 %v2456, %v2462
    %v2467 = vmul.f32 %v2456, %v2463
    %v2468 = vmul.f32 %v2456, %v2464
    %v2469 = vmul.f32 %v2456, %v2465
    %v2470 = vmul.f32 %v2460, %v2462
    %v2471 = vmul.f32 %v2460, %v2463
    %v2472 = vmul.f32 %v2460, %v2464
    %v2473 = vmul.f32 %v2460, %v2465
    %v2474 = vadd.f32 %v2446, %v2466
    %v2475 = vadd.f32 %v2447, %v2467
    %v2476 = vadd.f32 %v2448, %v2468
    %v2477 = vadd.f32 %v2449, %v2469
    %v2478 = vadd.f32 %v2450, %v2470
    %v2479 = vadd.f32 %v2451, %v2471
    %v2480 = vadd.f32 %v2452, %v2472
    %v2481 = vadd.f32 %v2453, %v2473
    %2482 = vset.pattern.permute.xlu0 2
    %2483 = vperm.xlu0 %2482, %v2410
    %v2484 = vpop.permute.xlu0 %2483
    %2486 = vset.pattern.permute.xlu0 2
    %2487 = vperm.xlu0 %2486, %v2411
    %v2488 = vpop.permute.xlu0 %2487
    %v2490 = vperm.slane %v2373, 2
    %v2491 = vperm.slane %v2374, 2
    %v2492 = vperm.slane %v2375, 2
    %v2493 = vperm.slane %v2376, 2
    %v2494 = vmul.f32 %v2484, %v2490
    %v2495 = vmul.f32 %v2484, %v2491
    %v2496 = vmul.f32 %v2484, %v2492
    %v2497 = vmul.f32 %v2484, %v2493
    %v2498 = vmul.f32 %v2488, %v2490
    %v2499 = vmul.f32 %v2488, %v2491
    %v2500 = vmul.f32 %v2488, %v2492
    %v2501 = vmul.f32 %v2488, %v2493
    %v2502 = vadd.f32 %v2474, %v2494
    %v2503 = vadd.f32 %v2475, %v2495
    %v2504 = vadd.f32 %v2476, %v2496
    %v2505 = vadd.f32 %v2477, %v2497
    %v2506 = vadd.f32 %v2478, %v2498
    %v2507 = vadd.f32 %v2479, %v2499
    %v2508 = vadd.f32 %v2480, %v2500
    %v2509 = vadd.f32 %v2481, %v2501
    %2510 = vset.pattern.permute.xlu0 3
    %2511 = vperm.xlu0 %2510, %v2410
    %v2512 = vpop.permute.xlu0 %2511
    %2514 = vset.pattern.permute.xlu0 3
    %2515 = vperm.xlu0 %2514, %v2411
    %v2516 = vpop.permute.xlu0 %2515
    %v2518 = vperm.slane %v2373, 3
    %v2519 = vperm.slane %v2374, 3
    %v2520 = vperm.slane %v2375, 3
    %v2521 = vperm.slane %v2376, 3
    %v2522 = vmul.f32 %v2512, %v2518
    %v2523 = vmul.f32 %v2512, %v2519
    %v2524 = vmul.f32 %v2512, %v2520
    %v2525 = vmul.f32 %v2512, %v2521
    %v2526 = vmul.f32 %v2516, %v2518
    %v2527 = vmul.f32 %v2516, %v2519
    %v2528 = vmul.f32 %v2516, %v2520
    %v2529 = vmul.f32 %v2516, %v2521
    %v2530 = vadd.f32 %v2502, %v2522
    %v2531 = vadd.f32 %v2503, %v2523
    %v2532 = vadd.f32 %v2504, %v2524
    %v2533 = vadd.f32 %v2505, %v2525
    %v2534 = vadd.f32 %v2506, %v2526
    %v2535 = vadd.f32 %v2507, %v2527
    %v2536 = vadd.f32 %v2508, %v2528
    %v2537 = vadd.f32 %v2509, %v2529
    %2538 = vset.pattern.permute.xlu0 4
    %2539 = vperm.xlu0 %2538, %v2410
    %v2540 = vpop.permute.xlu0 %2539
    %2542 = vset.pattern.permute.xlu0 4
    %2543 = vperm.xlu0 %2542, %v2411
    %v2544 = vpop.permute.xlu0 %2543
    %v2546 = vperm.slane %v2373, 4
    %v2547 = vperm.slane %v2374, 4
    %v2548 = vperm.slane %v2375, 4
    %v2549 = vperm.slane %v2376, 4
    %v2550 = vmul.f32 %v2540, %v2546
    %v2551 = vmul.f32 %v2540, %v2547
    %v2552 = vmul.f32 %v2540, %v2548
    %v2553 = vmul.f32 %v2540, %v2549
    %v2554 = vmul.f32 %v2544, %v2546
    %v2555 = vmul.f32 %v2544, %v2547
    %v2556 = vmul.f32 %v2544, %v2548
    %v2557 = vmul.f32 %v2544, %v2549
    %v2558 = vadd.f32 %v2530, %v2550
    %v2559 = vadd.f32 %v2531, %v2551
    %v2560 = vadd.f32 %v2532, %v2552
    %v2561 = vadd.f32 %v2533, %v2553
    %v2562 = vadd.f32 %v2534, %v2554
    %v2563 = vadd.f32 %v2535, %v2555
    %v2564 = vadd.f32 %v2536, %v2556
    %v2565 = vadd.f32 %v2537, %v2557
    %2566 = vset.pattern.permute.xlu0 5
    %2567 = vperm.xlu0 %2566, %v2410
    %v2568 = vpop.permute.xlu0 %2567
    %2570 = vset.pattern.permute.xlu0 5
    %2571 = vperm.xlu0 %2570, %v2411
    %v2572 = vpop.permute.xlu0 %2571
    %v2574 = vperm.slane %v2373, 5
    %v2575 = vperm.slane %v2374, 5
    %v2576 = vperm.slane %v2375, 5
    %v2577 = vperm.slane %v2376, 5
    %v2578 = vmul.f32 %v2568, %v2574
    %v2579 = vmul.f32 %v2568, %v2575
    %v2580 = vmul.f32 %v2568, %v2576
    %v2581 = vmul.f32 %v2568, %v2577
    %v2582 = vmul.f32 %v2572, %v2574
    %v2583 = vmul.f32 %v2572, %v2575
    %v2584 = vmul.f32 %v2572, %v2576
    %v2585 = vmul.f32 %v2572, %v2577
    %v2586 = vadd.f32 %v2558, %v2578
    %v2587 = vadd.f32 %v2559, %v2579
    %v2588 = vadd.f32 %v2560, %v2580
    %v2589 = vadd.f32 %v2561, %v2581
    %v2590 = vadd.f32 %v2562, %v2582
    %v2591 = vadd.f32 %v2563, %v2583
    %v2592 = vadd.f32 %v2564, %v2584
    %v2593 = vadd.f32 %v2565, %v2585
    %2594 = vset.pattern.permute.xlu0 6
    %2595 = vperm.xlu0 %2594, %v2410
    %v2596 = vpop.permute.xlu0 %2595
    %2598 = vset.pattern.permute.xlu0 6
    %2599 = vperm.xlu0 %2598, %v2411
    %v2600 = vpop.permute.xlu0 %2599
    %v2602 = vperm.slane %v2373, 6
    %v2603 = vperm.slane %v2374, 6
    %v2604 = vperm.slane %v2375, 6
    %v2605 = vperm.slane %v2376, 6
    %v2606 = vmul.f32 %v2596, %v2602
    %v2607 = vmul.f32 %v2596, %v2603
    %v2608 = vmul.f32 %v2596, %v2604
    %v2609 = vmul.f32 %v2596, %v2605
    %v2610 = vmul.f32 %v2600, %v2602
    %v2611 = vmul.f32 %v2600, %v2603
    %v2612 = vmul.f32 %v2600, %v2604
    %v2613 = vmul.f32 %v2600, %v2605
    %v2614 = vadd.f32 %v2586, %v2606
    %v2615 = vadd.f32 %v2587, %v2607
    %v2616 = vadd.f32 %v2588, %v2608
    %v2617 = vadd.f32 %v2589, %v2609
    %v2618 = vadd.f32 %v2590, %v2610
    %v2619 = vadd.f32 %v2591, %v2611
    %v2620 = vadd.f32 %v2592, %v2612
    %v2621 = vadd.f32 %v2593, %v2613
    %2622 = vset.pattern.permute.xlu0 7
    %2623 = vperm.xlu0 %2622, %v2410
    %v2624 = vpop.permute.xlu0 %2623
    %2626 = vset.pattern.permute.xlu0 7
    %2627 = vperm.xlu0 %2626, %v2411
    %v2628 = vpop.permute.xlu0 %2627
    %v2630 = vperm.slane %v2373, 7
    %v2631 = vperm.slane %v2374, 7
    %v2632 = vperm.slane %v2375, 7
    %v2633 = vperm.slane %v2376, 7
    %v2634 = vmul.f32 %v2624, %v2630
    %v2635 = vmul.f32 %v2624, %v2631
    %v2636 = vmul.f32 %v2624, %v2632
    %v2637 = vmul.f32 %v2624, %v2633
    %v2638 = vmul.f32 %v2628, %v2630
    %v2639 = vmul.f32 %v2628, %v2631
    %v2640 = vmul.f32 %v2628, %v2632
    %v2641 = vmul.f32 %v2628, %v2633
    %v2642 = vadd.f32 %v2614, %v2634
    %v2643 = vadd.f32 %v2615, %v2635
    %v2644 = vadd.f32 %v2616, %v2636
    %v2645 = vadd.f32 %v2617, %v2637
    %v2646 = vadd.f32 %v2618, %v2638
    %v2647 = vadd.f32 %v2619, %v2639
    %v2648 = vadd.f32 %v2620, %v2640
    %v2649 = vadd.f32 %v2621, %v2641
    %2650 = vst [vmem:[#allocation20] sm:$0xff] %v2642
    %2651 = vst [vmem:[#allocation20 + $0x8] sm:$0xff] %v2643
    %2652 = vst [vmem:[#allocation20 + $0x10] sm:$0xff] %v2644
    %2653 = vst [vmem:[#allocation20 + $0x18] sm:$0xff] %v2645
    %2654 = vst [vmem:[#allocation20 + $0x20] sm:$0xff] %v2646
    %2655 = vst [vmem:[#allocation20 + $0x28] sm:$0xff] %v2647
    %2656 = vst [vmem:[#allocation20 + $0x30] sm:$0xff] %v2648
    %2657 = vst [vmem:[#allocation20 + $0x38] sm:$0xff] %v2649
    // Predicated region
    $region42: #{tpu_custom_call.1} parent=1 // pred_check
      _
    $region43: #{tpu_custom_call.1} parent=1 // pred_check_branch
      %2659 = sbr.rel (0) target = $region45
    $region44: #{tpu_custom_call.1} parent=1 // pred_region
      %2661 = vsyncadd [#allocation15], 0
      %s2663 = sshll.u32 [#allocation19], 4
      %s2664 = int_to_ptr.vmem [resolvable:$true] %s2663
      %s2665 = sshll.u32 %s11, 4
      %s2666 = int_to_ptr.hbm [resolvable:$true] %s2665
      %2668 = dma.vmem_to_hbm [thread:$0]  %s2664, 128, %s2666, [#allocation15]
    $region45: #{tpu_custom_call.1} parent=1 // pred_fallthru
      _
    // Predicated region
    $region46: #{tpu_custom_call.1} parent=1 // pred_check
      _
    $region47: #{tpu_custom_call.1} parent=1 // pred_check_branch
      %2670 = sbr.rel (0) target = $region49
    $region48: #{tpu_custom_call.1} parent=1 // pred_region
      %2672 = vsyncadd [#allocation21], 0
      %s2673 = sshll.u32 [#allocation20], 4
      %s2674 = int_to_ptr.vmem [resolvable:$true] %s2673
      %s2675 = sshll.u32 %s12, 4
      %s2676 = int_to_ptr.hbm [resolvable:$true] %s2675
      %2681 = dma.vmem_to_hbm [thread:$0]  %s2674, 1024, %s2676, [#allocation21], 512, 512, 32
    $region49: #{tpu_custom_call.1} parent=1 // pred_fallthru
      _
    // Predicated region
    $region50: #{tpu_custom_call.1} parent=1 // pred_check
      _
    $region51: #{tpu_custom_call.1} parent=1 // pred_check_branch
      %2683 = sbr.rel (0) target = $region53
    $region52: #{tpu_custom_call.1} parent=1 // pred_region
      %2685 = vsyncadd [#allocation21], 0
      %s2687 = sshll.u32 [#allocation22], 4
      %s2688 = int_to_ptr.vmem [resolvable:$true] %s2687
      %s2689 = sshll.u32 %s13, 4
      %s2690 = int_to_ptr.hbm [resolvable:$true] %s2689
      %2692 = dma.vmem_to_hbm [thread:$0]  %s2688, 512, %s2690, [#allocation21]
    $region53: #{tpu_custom_call.1} parent=1 // pred_fallthru
      _
    // Predicated region
    $region54: #{tpu_custom_call.1} parent=1 // pred_check
      _
    $region55: #{tpu_custom_call.1} parent=1 // pred_check_branch
      %2694 = sbr.rel (0) target = $region57
    $region56: #{tpu_custom_call.1} parent=1 // pred_region
      %2696 = dma.done [#allocation15], 128
    $region57: #{tpu_custom_call.1} parent=1 // pred_fallthru
      _
    // Predicated region
    $region58: #{tpu_custom_call.1} parent=1 // pred_check
      _
    $region59: #{tpu_custom_call.1} parent=1 // pred_check_branch
      %2698 = sbr.rel (0) target = $region61
    $region60: #{tpu_custom_call.1} parent=1 // pred_region
      %2700 = dma.done [#allocation21], 1024
    $region61: #{tpu_custom_call.1} parent=1 // pred_fallthru
      _
    // Predicated region
    $region62: #{tpu_custom_call.1} parent=1 // pred_check
      _
    $region63: #{tpu_custom_call.1} parent=1 // pred_check_branch
      %2702 = sbr.rel (0) target = $region65
    $region64: #{tpu_custom_call.1} parent=1 // pred_region
      %2704 = dma.done [#allocation21], 512
    $region65: #{tpu_custom_call.1} parent=1 // pred_fallthru
      _
    %2705 = vsyncpa [#allocation14], 1
    %2706 = vsyncpa [#allocation17], 1
    %2707 = vsyncpa [#allocation15], 1
    %2708 = vsyncpa [#allocation21], 1
  %2709 = vsyncmov [#allocation7]
  %s2710 = vpop.sfrf %2709
  %p2711 = scmp.eq.s32.totalorder %s2710, 0
  %p2712 = pneg %p2711
  %2714 = shalt.err (%p2712)

</llo_original>
